<compile_context>
chip_gen: v6e
topology: v6e:2x2x1
jax: 0.10.0
libtpu: 0.0.40
codegen_flags: <defaults>
</compile_context>

<pallas_src>
import jax
import jax.numpy as jnp
from jax.experimental import pallas as pl
from jax.experimental.pallas import tpu as pltpu

# ---- small, lane-aligned sizes (module hardcodes emb_dim=300; we use a small
#      lane-aligned hidden; N=128 keeps the MXU rows busy on all generations) --
L = 5            # num GNN layers (num_layer=5)
N = 128          # number of nodes in the batch
D = 128          # emb_dim
H = 2 * D        # GIN MLP hidden (2 * emb_dim)
PD = 128         # projection_dim
G = 8            # number of graphs in the batch
GP = 8           # graph rows in the pooled output (sublane multiple)
E = 256          # number of edges (before self loops)

NUM_ATOM_TYPE = 121
NUM_CHIRALITY = 11
NUM_BOND_TYPE = 7
NUM_BOND_DIR = 3


# --------------------------- Pallas kernel ----------------------------------
def hvqvae2_kernel(xemb_ref, a_ref, eagg_ref, w1_ref, b1_ref, w2_ref, b2_ref,
                   p_ref, wp_ref, bp_ref, hgraph_ref, hnode_ref):
    a = a_ref[...]          # (N, N) bf16 adjacency (with self loops)
    h = xemb_ref[...]       # (N, D) f32 initial node embeddings
    for l in range(L):      # statically unrolled; all weights VMEM-resident
        # GIN aggregation (aggr='add'): A @ h + per-target edge-embedding sum
        agg = jnp.dot(a, h.astype(jnp.bfloat16),
                      preferred_element_type=jnp.float32) + eagg_ref[l]
        # GIN MLP: Linear(D,2D) -> ReLU -> Linear(2D,D); BN folded into W2/b2
        z = jnp.dot(agg.astype(jnp.bfloat16), w1_ref[l],
                    preferred_element_type=jnp.float32) + b1_ref[l]
        z = jnp.maximum(z, 0.0)
        z = jnp.dot(z.astype(jnp.bfloat16), w2_ref[l],
                    preferred_element_type=jnp.float32) + b2_ref[l]
        # ReLU on all but the last layer (dropout = identity in eval mode)
        h = z if l == L - 1 else jnp.maximum(z, 0.0)
    # projector Linear on node reps, then mean-pool (P rows sum to 1, so
    # pooling commutes with the affine projector) -> smaller pool matmul
    hn = jnp.dot(h.astype(jnp.bfloat16), wp_ref[...],
                 preferred_element_type=jnp.float32) + bp_ref[...]
    hnode_ref[...] = hn
    hgraph_ref[...] = jnp.dot(p_ref[...], hn.astype(jnp.bfloat16),
                              preferred_element_type=jnp.float32)


def hvqvae2_forward(xemb, A, Eagg, W1, b1, W2f, b2f, P, Wp, bp):
    vmem = pl.BlockSpec(memory_space=pltpu.MemorySpace.VMEM)
    hg, hn = pl.pallas_call(
        hvqvae2_kernel,
        out_shape=(jax.ShapeDtypeStruct((GP, PD), jnp.float32),
                   jax.ShapeDtypeStruct((N, PD), jnp.float32)),
        in_specs=[vmem] * 10,
        out_specs=(vmem, vmem),
    )(xemb, A, Eagg, W1, b1, W2f, b2f, P, Wp, bp)
    return hg[:G], hn


# --------------------------- parameters (deterministic) ---------------------
def init_params(key):
    ks = jax.random.split(key, 14)
    p = {}
    p["x_emb1"] = 0.1 * jax.random.normal(ks[0], (NUM_ATOM_TYPE, D), jnp.float32)
    p["x_emb2"] = 0.1 * jax.random.normal(ks[1], (NUM_CHIRALITY, D), jnp.float32)
    p["edge_emb1"] = 0.1 * jax.random.normal(ks[2], (L, NUM_BOND_TYPE, D), jnp.float32)
    p["edge_emb2"] = 0.1 * jax.random.normal(ks[3], (L, NUM_BOND_DIR, D), jnp.float32)
    p["W1"] = 0.05 * jax.random.normal(ks[4], (L, D, H), jnp.float32)
    p["b1"] = 0.01 * jax.random.normal(ks[5], (L, 1, H), jnp.float32)
    p["W2"] = 0.05 * jax.random.normal(ks[6], (L, H, D), jnp.float32)
    p["b2"] = 0.01 * jax.random.normal(ks[7], (L, 1, D), jnp.float32)
    p["bn_gamma"] = 1.0 + 0.05 * jax.random.normal(ks[8], (L, 1, D), jnp.float32)
    p["bn_beta"] = 0.05 * jax.random.normal(ks[9], (L, 1, D), jnp.float32)
    p["bn_mean"] = 0.05 * jax.random.normal(ks[10], (L, 1, D), jnp.float32)
    p["bn_var"] = 1.0 + 0.1 * jnp.abs(jax.random.normal(ks[11], (L, 1, D), jnp.float32))
    p["Wp"] = 0.05 * jax.random.normal(ks[12], (D, PD), jnp.float32)
    p["bp"] = 0.01 * jax.random.normal(ks[13], (1, PD), jnp.float32)
    return p


# --------------------------- glue (plain JAX) --------------------------------
def build_operands(p, x, edge_index, edge_attr, batch):
    # node input embeddings (atom type + chirality)
    xemb = p["x_emb1"][x[:, 0]] + p["x_emb2"][x[:, 1]]
    # add self loops with attr [4, 0] as in GINConv.forward
    sl = jnp.arange(N, dtype=edge_index.dtype)
    src = jnp.concatenate([edge_index[0], sl])
    tgt = jnp.concatenate([edge_index[1], sl])
    sl_attr = jnp.stack([jnp.full((N,), 4, edge_attr.dtype),
                         jnp.zeros((N,), edge_attr.dtype)], axis=1)
    ea = jnp.concatenate([edge_attr, sl_attr], axis=0)
    # dense adjacency: messages x_j = x[src] aggregated (add) at target
    A = jnp.zeros((N, N), jnp.float32).at[tgt, src].add(1.0)

    # per-layer scatter-add of edge embeddings to target nodes
    def layer_eagg(l):
        eemb = p["edge_emb1"][l][ea[:, 0]] + p["edge_emb2"][l][ea[:, 1]]
        return jnp.zeros((N, D), jnp.float32).at[tgt].add(eemb)
    Eagg = jnp.stack([layer_eagg(l) for l in range(L)])

    # eval-mode BatchNorm1d folded into affine scale/shift
    bn_scale = p["bn_gamma"] / jnp.sqrt(p["bn_var"] + 1e-5)
    bn_shift = p["bn_beta"] - p["bn_mean"] * bn_scale

    # mean-pool matrix
    onehot = (batch[None, :] == jnp.arange(GP, dtype=batch.dtype)[:, None])
    onehot = onehot.astype(jnp.float32)
    counts = jnp.maximum(onehot.sum(axis=1, keepdims=True), 1.0)
    P = onehot / counts
    return xemb, A, Eagg, bn_scale, bn_shift, P


def fold_and_cast(p, A, P, bn_scale, bn_shift):
    # fold BN into the second GIN-MLP Linear, cast MXU operands to bf16
    W2f = (p["W2"] * bn_scale).astype(jnp.bfloat16)      # (L, H, D)
    b2f = p["b2"] * bn_scale + bn_shift                   # (L, 1, D) f32
    W1 = p["W1"].astype(jnp.bfloat16)
    Wp = p["Wp"].astype(jnp.bfloat16)
    A16 = A.astype(jnp.bfloat16)
    P16 = P.astype(jnp.bfloat16)
    return A16, W1, W2f, b2f, P16, Wp


def reference_forward(p, xemb, A, Eagg, bn_scale, bn_shift, P):
    h = xemb
    for l in range(L):
        agg = A @ h + Eagg[l]
        z = jnp.maximum(agg @ p["W1"][l] + p["b1"][l], 0.0)
        z = z @ p["W2"][l] + p["b2"][l]
        z = z * bn_scale[l] + bn_shift[l]
        h = z if l == L - 1 else jnp.maximum(z, 0.0)
    hg = (P @ h) @ p["Wp"] + p["bp"]
    hn = h @ p["Wp"] + p["bp"]
    return hg[:G], hn


if __name__ == "__main__":
    key = jax.random.PRNGKey(0)
    kp, kx, kc, ke, kea, keb = jax.random.split(key, 6)
    params = init_params(kp)

    # synthetic "mol" graph batch (deterministic)
    x = jnp.stack([jax.random.randint(kx, (N,), 0, NUM_ATOM_TYPE),
                   jax.random.randint(kc, (N,), 0, NUM_CHIRALITY)], axis=1)
    edge_index = jax.random.randint(ke, (2, E), 0, N)
    edge_attr = jnp.stack([jax.random.randint(kea, (E,), 0, NUM_BOND_TYPE),
                           jax.random.randint(keb, (E,), 0, NUM_BOND_DIR)], axis=1)
    batch = jnp.repeat(jnp.arange(G, dtype=jnp.int32), N // G)

    xemb, A, Eagg, bn_scale, bn_shift, P = build_operands(
        params, x, edge_index, edge_attr, batch)
    A16, W1, W2f, b2f, P16, Wp = fold_and_cast(params, A, P, bn_scale, bn_shift)

    h_graph, h_node = hvqvae2_forward(
        xemb, A16, Eagg, W1, params["b1"], W2f, b2f, P16, Wp, params["bp"])
    jax.block_until_ready((h_graph, h_node))

    hg_ref, hn_ref = reference_forward(params, xemb, A, Eagg,
                                       bn_scale, bn_shift, P)
    assert h_graph.shape == (G, PD) and h_node.shape == (N, PD)
    assert jnp.allclose(h_graph, hg_ref, rtol=3e-2, atol=3e-2)
    assert jnp.allclose(h_node, hn_ref, rtol=3e-2, atol=3e-2)
    # TODO(synk): checkpoint loading (from_pretrained) and the inactive
    # VectorQuantizer codebook branch are not represented (codebook is None).
    print("KERNEL_OK")
</pallas_src>

<mosaic_0001>
module attributes {stable_mosaic.version = 11 : i64} {
  func.func @hvqvae2_kernel(%arg0: memref<128x128xf32, #tpu.memory_space<vmem>>, %arg1: memref<128x128xbf16, #tpu.memory_space<vmem>>, %arg2: memref<5x128x128xf32, #tpu.memory_space<vmem>>, %arg3: memref<5x128x256xbf16, #tpu.memory_space<vmem>>, %arg4: memref<5x1x256xf32, #tpu.memory_space<vmem>>, %arg5: memref<5x256x128xbf16, #tpu.memory_space<vmem>>, %arg6: memref<5x1x128xf32, #tpu.memory_space<vmem>>, %arg7: memref<8x128xbf16, #tpu.memory_space<vmem>>, %arg8: memref<128x128xbf16, #tpu.memory_space<vmem>>, %arg9: memref<1x128xf32, #tpu.memory_space<vmem>>, %arg10: memref<8x128xf32, #tpu.memory_space<vmem>>, %arg11: memref<128x128xf32, #tpu.memory_space<vmem>>) attributes {dimension_semantics = [], scalar_prefetch = 0 : i64, scratch_operands = 0 : i64, tpu.core_type = #tpu.core_type<tc>} {
    %c0 = arith.constant 0 : index
    %c0_0 = arith.constant 0 : index
    %0 = vector.load %arg1[%c0, %c0_0] : memref<128x128xbf16, #tpu.memory_space<vmem>>, vector<128x128xbf16>
    %c0_1 = arith.constant 0 : index
    %c0_2 = arith.constant 0 : index
    %1 = vector.load %arg0[%c0_1, %c0_2] : memref<128x128xf32, #tpu.memory_space<vmem>>, vector<128x128xf32>
    %2 = arith.truncf %1 : vector<128x128xf32> to vector<128x128xbf16>
    %cst = arith.constant dense<0.000000e+00> : vector<128x128xf32>
    %3 = tpu.matmul %0, %2, %cst {dimension_numbers = #tpu.dot_dimension_numbers<[1], [0], [0], [1], [0, 0, 1, 1], [], []>} : vector<128x128xbf16>, vector<128x128xbf16>, vector<128x128xf32> -> vector<128x128xf32>
    %c0_3 = arith.constant 0 : index
    %c0_4 = arith.constant 0 : index
    %c0_5 = arith.constant 0 : index
    %4 = vector.load %arg2[%c0_3, %c0_4, %c0_5] : memref<5x128x128xf32, #tpu.memory_space<vmem>>, vector<1x128x128xf32>
    %5 = vector.shape_cast %4 : vector<1x128x128xf32> to vector<128x128xf32>
    %6 = arith.addf %3, %5 : vector<128x128xf32>
    %7 = arith.truncf %6 : vector<128x128xf32> to vector<128x128xbf16>
    %c0_6 = arith.constant 0 : index
    %c0_7 = arith.constant 0 : index
    %c0_8 = arith.constant 0 : index
    %8 = vector.load %arg3[%c0_6, %c0_7, %c0_8] : memref<5x128x256xbf16, #tpu.memory_space<vmem>>, vector<1x128x256xbf16>
    %9 = vector.shape_cast %8 : vector<1x128x256xbf16> to vector<128x256xbf16>
    %cst_9 = arith.constant dense<0.000000e+00> : vector<128x256xf32>
    %10 = tpu.matmul %7, %9, %cst_9 {dimension_numbers = #tpu.dot_dimension_numbers<[1], [0], [0], [1], [0, 0, 1, 1], [], []>} : vector<128x128xbf16>, vector<128x256xbf16>, vector<128x256xf32> -> vector<128x256xf32>
    %c0_10 = arith.constant 0 : index
    %c0_11 = arith.constant 0 : index
    %c0_12 = arith.constant 0 : index
    %11 = vector.load %arg4[%c0_10, %c0_11, %c0_12] : memref<5x1x256xf32, #tpu.memory_space<vmem>>, vector<1x1x256xf32>
    %12 = vector.shape_cast %11 : vector<1x1x256xf32> to vector<1x256xf32>
    %13 = vector.broadcast %12 : vector<1x256xf32> to vector<128x256xf32>
    %14 = arith.addf %10, %13 : vector<128x256xf32>
    %cst_13 = arith.constant 0.000000e+00 : f32
    %15 = vector.broadcast %cst_13 : f32 to vector<128x256xf32>
    %16 = arith.maximumf %14, %15 : vector<128x256xf32>
    %17 = arith.truncf %16 : vector<128x256xf32> to vector<128x256xbf16>
    %c0_14 = arith.constant 0 : index
    %c0_15 = arith.constant 0 : index
    %c0_16 = arith.constant 0 : index
    %18 = vector.load %arg5[%c0_14, %c0_15, %c0_16] : memref<5x256x128xbf16, #tpu.memory_space<vmem>>, vector<1x256x128xbf16>
    %19 = vector.shape_cast %18 : vector<1x256x128xbf16> to vector<256x128xbf16>
    %cst_17 = arith.constant dense<0.000000e+00> : vector<128x128xf32>
    %20 = tpu.matmul %17, %19, %cst_17 {dimension_numbers = #tpu.dot_dimension_numbers<[1], [0], [0], [1], [0, 0, 1, 1], [], []>} : vector<128x256xbf16>, vector<256x128xbf16>, vector<128x128xf32> -> vector<128x128xf32>
    %c0_18 = arith.constant 0 : index
    %c0_19 = arith.constant 0 : index
    %c0_20 = arith.constant 0 : index
    %21 = vector.load %arg6[%c0_18, %c0_19, %c0_20] : memref<5x1x128xf32, #tpu.memory_space<vmem>>, vector<1x1x128xf32>
    %22 = vector.shape_cast %21 : vector<1x1x128xf32> to vector<1x128xf32>
    %23 = vector.broadcast %22 : vector<1x128xf32> to vector<128x128xf32>
    %24 = arith.addf %20, %23 : vector<128x128xf32>
    %cst_21 = arith.constant 0.000000e+00 : f32
    %25 = vector.broadcast %cst_21 : f32 to vector<128x128xf32>
    %26 = arith.maximumf %24, %25 : vector<128x128xf32>
    %27 = arith.truncf %26 : vector<128x128xf32> to vector<128x128xbf16>
    %cst_22 = arith.constant dense<0.000000e+00> : vector<128x128xf32>
    %28 = tpu.matmul %0, %27, %cst_22 {dimension_numbers = #tpu.dot_dimension_numbers<[1], [0], [0], [1], [0, 0, 1, 1], [], []>} : vector<128x128xbf16>, vector<128x128xbf16>, vector<128x128xf32> -> vector<128x128xf32>
    %c1 = arith.constant 1 : index
    %c0_23 = arith.constant 0 : index
    %c0_24 = arith.constant 0 : index
    %29 = vector.load %arg2[%c1, %c0_23, %c0_24] : memref<5x128x128xf32, #tpu.memory_space<vmem>>, vector<1x128x128xf32>
    %30 = vector.shape_cast %29 : vector<1x128x128xf32> to vector<128x128xf32>
    %31 = arith.addf %28, %30 : vector<128x128xf32>
    %32 = arith.truncf %31 : vector<128x128xf32> to vector<128x128xbf16>
    %c1_25 = arith.constant 1 : index
    %c0_26 = arith.constant 0 : index
    %c0_27 = arith.constant 0 : index
    %33 = vector.load %arg3[%c1_25, %c0_26, %c0_27] : memref<5x128x256xbf16, #tpu.memory_space<vmem>>, vector<1x128x256xbf16>
    %34 = vector.shape_cast %33 : vector<1x128x256xbf16> to vector<128x256xbf16>
    %cst_28 = arith.constant dense<0.000000e+00> : vector<128x256xf32>
    %35 = tpu.matmul %32, %34, %cst_28 {dimension_numbers = #tpu.dot_dimension_numbers<[1], [0], [0], [1], [0, 0, 1, 1], [], []>} : vector<128x128xbf16>, vector<128x256xbf16>, vector<128x256xf32> -> vector<128x256xf32>
    %c1_29 = arith.constant 1 : index
    %c0_30 = arith.constant 0 : index
    %c0_31 = arith.constant 0 : index
    %36 = vector.load %arg4[%c1_29, %c0_30, %c0_31] : memref<5x1x256xf32, #tpu.memory_space<vmem>>, vector<1x1x256xf32>
    %37 = vector.shape_cast %36 : vector<1x1x256xf32> to vector<1x256xf32>
    %38 = vector.broadcast %37 : vector<1x256xf32> to vector<128x256xf32>
    %39 = arith.addf %35, %38 : vector<128x256xf32>
    %cst_32 = arith.constant 0.000000e+00 : f32
    %40 = vector.broadcast %cst_32 : f32 to vector<128x256xf32>
    %41 = arith.maximumf %39, %40 : vector<128x256xf32>
    %42 = arith.truncf %41 : vector<128x256xf32> to vector<128x256xbf16>
    %c1_33 = arith.constant 1 : index
    %c0_34 = arith.constant 0 : index
    %c0_35 = arith.constant 0 : index
    %43 = vector.load %arg5[%c1_33, %c0_34, %c0_35] : memref<5x256x128xbf16, #tpu.memory_space<vmem>>, vector<1x256x128xbf16>
    %44 = vector.shape_cast %43 : vector<1x256x128xbf16> to vector<256x128xbf16>
    %cst_36 = arith.constant dense<0.000000e+00> : vector<128x128xf32>
    %45 = tpu.matmul %42, %44, %cst_36 {dimension_numbers = #tpu.dot_dimension_numbers<[1], [0], [0], [1], [0, 0, 1, 1], [], []>} : vector<128x256xbf16>, vector<256x128xbf16>, vector<128x128xf32> -> vector<128x128xf32>
    %c1_37 = arith.constant 1 : index
    %c0_38 = arith.constant 0 : index
    %c0_39 = arith.constant 0 : index
    %46 = vector.load %arg6[%c1_37, %c0_38, %c0_39] : memref<5x1x128xf32, #tpu.memory_space<vmem>>, vector<1x1x128xf32>
    %47 = vector.shape_cast %46 : vector<1x1x128xf32> to vector<1x128xf32>
    %48 = vector.broadcast %47 : vector<1x128xf32> to vector<128x128xf32>
    %49 = arith.addf %45, %48 : vector<128x128xf32>
    %cst_40 = arith.constant 0.000000e+00 : f32
    %50 = vector.broadcast %cst_40 : f32 to vector<128x128xf32>
    %51 = arith.maximumf %49, %50 : vector<128x128xf32>
    %52 = arith.truncf %51 : vector<128x128xf32> to vector<128x128xbf16>
    %cst_41 = arith.constant dense<0.000000e+00> : vector<128x128xf32>
    %53 = tpu.matmul %0, %52, %cst_41 {dimension_numbers = #tpu.dot_dimension_numbers<[1], [0], [0], [1], [0, 0, 1, 1], [], []>} : vector<128x128xbf16>, vector<128x128xbf16>, vector<128x128xf32> -> vector<128x128xf32>
    %c2 = arith.constant 2 : index
    %c0_42 = arith.constant 0 : index
    %c0_43 = arith.constant 0 : index
    %54 = vector.load %arg2[%c2, %c0_42, %c0_43] : memref<5x128x128xf32, #tpu.memory_space<vmem>>, vector<1x128x128xf32>
    %55 = vector.shape_cast %54 : vector<1x128x128xf32> to vector<128x128xf32>
    %56 = arith.addf %53, %55 : vector<128x128xf32>
    %57 = arith.truncf %56 : vector<128x128xf32> to vector<128x128xbf16>
    %c2_44 = arith.constant 2 : index
    %c0_45 = arith.constant 0 : index
    %c0_46 = arith.constant 0 : index
    %58 = vector.load %arg3[%c2_44, %c0_45, %c0_46] : memref<5x128x256xbf16, #tpu.memory_space<vmem>>, vector<1x128x256xbf16>
    %59 = vector.shape_cast %58 : vector<1x128x256xbf16> to vector<128x256xbf16>
    %cst_47 = arith.constant dense<0.000000e+00> : vector<128x256xf32>
    %60 = tpu.matmul %57, %59, %cst_47 {dimension_numbers = #tpu.dot_dimension_numbers<[1], [0], [0], [1], [0, 0, 1, 1], [], []>} : vector<128x128xbf16>, vector<128x256xbf16>, vector<128x256xf32> -> vector<128x256xf32>
    %c2_48 = arith.constant 2 : index
    %c0_49 = arith.constant 0 : index
    %c0_50 = arith.constant 0 : index
    %61 = vector.load %arg4[%c2_48, %c0_49, %c0_50] : memref<5x1x256xf32, #tpu.memory_space<vmem>>, vector<1x1x256xf32>
    %62 = vector.shape_cast %61 : vector<1x1x256xf32> to vector<1x256xf32>
    %63 = vector.broadcast %62 : vector<1x256xf32> to vector<128x256xf32>
    %64 = arith.addf %60, %63 : vector<128x256xf32>
    %cst_51 = arith.constant 0.000000e+00 : f32
    %65 = vector.broadcast %cst_51 : f32 to vector<128x256xf32>
    %66 = arith.maximumf %64, %65 : vector<128x256xf32>
    %67 = arith.truncf %66 : vector<128x256xf32> to vector<128x256xbf16>
    %c2_52 = arith.constant 2 : index
    %c0_53 = arith.constant 0 : index
    %c0_54 = arith.constant 0 : index
    %68 = vector.load %arg5[%c2_52, %c0_53, %c0_54] : memref<5x256x128xbf16, #tpu.memory_space<vmem>>, vector<1x256x128xbf16>
    %69 = vector.shape_cast %68 : vector<1x256x128xbf16> to vector<256x128xbf16>
    %cst_55 = arith.constant dense<0.000000e+00> : vector<128x128xf32>
    %70 = tpu.matmul %67, %69, %cst_55 {dimension_numbers = #tpu.dot_dimension_numbers<[1], [0], [0], [1], [0, 0, 1, 1], [], []>} : vector<128x256xbf16>, vector<256x128xbf16>, vector<128x128xf32> -> vector<128x128xf32>
    %c2_56 = arith.constant 2 : index
    %c0_57 = arith.constant 0 : index
    %c0_58 = arith.constant 0 : index
    %71 = vector.load %arg6[%c2_56, %c0_57, %c0_58] : memref<5x1x128xf32, #tpu.memory_space<vmem>>, vector<1x1x128xf32>
    %72 = vector.shape_cast %71 : vector<1x1x128xf32> to vector<1x128xf32>
    %73 = vector.broadcast %72 : vector<1x128xf32> to vector<128x128xf32>
    %74 = arith.addf %70, %73 : vector<128x128xf32>
    %cst_59 = arith.constant 0.000000e+00 : f32
    %75 = vector.broadcast %cst_59 : f32 to vector<128x128xf32>
    %76 = arith.maximumf %74, %75 : vector<128x128xf32>
    %77 = arith.truncf %76 : vector<128x128xf32> to vector<128x128xbf16>
    %cst_60 = arith.constant dense<0.000000e+00> : vector<128x128xf32>
    %78 = tpu.matmul %0, %77, %cst_60 {dimension_numbers = #tpu.dot_dimension_numbers<[1], [0], [0], [1], [0, 0, 1, 1], [], []>} : vector<128x128xbf16>, vector<128x128xbf16>, vector<128x128xf32> -> vector<128x128xf32>
    %c3 = arith.constant 3 : index
    %c0_61 = arith.constant 0 : index
    %c0_62 = arith.constant 0 : index
    %79 = vector.load %arg2[%c3, %c0_61, %c0_62] : memref<5x128x128xf32, #tpu.memory_space<vmem>>, vector<1x128x128xf32>
    %80 = vector.shape_cast %79 : vector<1x128x128xf32> to vector<128x128xf32>
    %81 = arith.addf %78, %80 : vector<128x128xf32>
    %82 = arith.truncf %81 : vector<128x128xf32> to vector<128x128xbf16>
    %c3_63 = arith.constant 3 : index
    %c0_64 = arith.constant 0 : index
    %c0_65 = arith.constant 0 : index
    %83 = vector.load %arg3[%c3_63, %c0_64, %c0_65] : memref<5x128x256xbf16, #tpu.memory_space<vmem>>, vector<1x128x256xbf16>
    %84 = vector.shape_cast %83 : vector<1x128x256xbf16> to vector<128x256xbf16>
    %cst_66 = arith.constant dense<0.000000e+00> : vector<128x256xf32>
    %85 = tpu.matmul %82, %84, %cst_66 {dimension_numbers = #tpu.dot_dimension_numbers<[1], [0], [0], [1], [0, 0, 1, 1], [], []>} : vector<128x128xbf16>, vector<128x256xbf16>, vector<128x256xf32> -> vector<128x256xf32>
    %c3_67 = arith.constant 3 : index
    %c0_68 = arith.constant 0 : index
    %c0_69 = arith.constant 0 : index
    %86 = vector.load %arg4[%c3_67, %c0_68, %c0_69] : memref<5x1x256xf32, #tpu.memory_space<vmem>>, vector<1x1x256xf32>
    %87 = vector.shape_cast %86 : vector<1x1x256xf32> to vector<1x256xf32>
    %88 = vector.broadcast %87 : vector<1x256xf32> to vector<128x256xf32>
    %89 = arith.addf %85, %88 : vector<128x256xf32>
    %cst_70 = arith.constant 0.000000e+00 : f32
    %90 = vector.broadcast %cst_70 : f32 to vector<128x256xf32>
    %91 = arith.maximumf %89, %90 : vector<128x256xf32>
    %92 = arith.truncf %91 : vector<128x256xf32> to vector<128x256xbf16>
    %c3_71 = arith.constant 3 : index
    %c0_72 = arith.constant 0 : index
    %c0_73 = arith.constant 0 : index
    %93 = vector.load %arg5[%c3_71, %c0_72, %c0_73] : memref<5x256x128xbf16, #tpu.memory_space<vmem>>, vector<1x256x128xbf16>
    %94 = vector.shape_cast %93 : vector<1x256x128xbf16> to vector<256x128xbf16>
    %cst_74 = arith.constant dense<0.000000e+00> : vector<128x128xf32>
    %95 = tpu.matmul %92, %94, %cst_74 {dimension_numbers = #tpu.dot_dimension_numbers<[1], [0], [0], [1], [0, 0, 1, 1], [], []>} : vector<128x256xbf16>, vector<256x128xbf16>, vector<128x128xf32> -> vector<128x128xf32>
    %c3_75 = arith.constant 3 : index
    %c0_76 = arith.constant 0 : index
    %c0_77 = arith.constant 0 : index
    %96 = vector.load %arg6[%c3_75, %c0_76, %c0_77] : memref<5x1x128xf32, #tpu.memory_space<vmem>>, vector<1x1x128xf32>
    %97 = vector.shape_cast %96 : vector<1x1x128xf32> to vector<1x128xf32>
    %98 = vector.broadcast %97 : vector<1x128xf32> to vector<128x128xf32>
    %99 = arith.addf %95, %98 : vector<128x128xf32>
    %cst_78 = arith.constant 0.000000e+00 : f32
    %100 = vector.broadcast %cst_78 : f32 to vector<128x128xf32>
    %101 = arith.maximumf %99, %100 : vector<128x128xf32>
    %102 = arith.truncf %101 : vector<128x128xf32> to vector<128x128xbf16>
    %cst_79 = arith.constant dense<0.000000e+00> : vector<128x128xf32>
    %103 = tpu.matmul %0, %102, %cst_79 {dimension_numbers = #tpu.dot_dimension_numbers<[1], [0], [0], [1], [0, 0, 1, 1], [], []>} : vector<128x128xbf16>, vector<128x128xbf16>, vector<128x128xf32> -> vector<128x128xf32>
    %c4 = arith.constant 4 : index
    %c0_80 = arith.constant 0 : index
    %c0_81 = arith.constant 0 : index
    %104 = vector.load %arg2[%c4, %c0_80, %c0_81] : memref<5x128x128xf32, #tpu.memory_space<vmem>>, vector<1x128x128xf32>
    %105 = vector.shape_cast %104 : vector<1x128x128xf32> to vector<128x128xf32>
    %106 = arith.addf %103, %105 : vector<128x128xf32>
    %107 = arith.truncf %106 : vector<128x128xf32> to vector<128x128xbf16>
    %c4_82 = arith.constant 4 : index
    %c0_83 = arith.constant 0 : index
    %c0_84 = arith.constant 0 : index
    %108 = vector.load %arg3[%c4_82, %c0_83, %c0_84] : memref<5x128x256xbf16, #tpu.memory_space<vmem>>, vector<1x128x256xbf16>
    %109 = vector.shape_cast %108 : vector<1x128x256xbf16> to vector<128x256xbf16>
    %cst_85 = arith.constant dense<0.000000e+00> : vector<128x256xf32>
    %110 = tpu.matmul %107, %109, %cst_85 {dimension_numbers = #tpu.dot_dimension_numbers<[1], [0], [0], [1], [0, 0, 1, 1], [], []>} : vector<128x128xbf16>, vector<128x256xbf16>, vector<128x256xf32> -> vector<128x256xf32>
    %c4_86 = arith.constant 4 : index
    %c0_87 = arith.constant 0 : index
    %c0_88 = arith.constant 0 : index
    %111 = vector.load %arg4[%c4_86, %c0_87, %c0_88] : memref<5x1x256xf32, #tpu.memory_space<vmem>>, vector<1x1x256xf32>
    %112 = vector.shape_cast %111 : vector<1x1x256xf32> to vector<1x256xf32>
    %113 = vector.broadcast %112 : vector<1x256xf32> to vector<128x256xf32>
    %114 = arith.addf %110, %113 : vector<128x256xf32>
    %cst_89 = arith.constant 0.000000e+00 : f32
    %115 = vector.broadcast %cst_89 : f32 to vector<128x256xf32>
    %116 = arith.maximumf %114, %115 : vector<128x256xf32>
    %117 = arith.truncf %116 : vector<128x256xf32> to vector<128x256xbf16>
    %c4_90 = arith.constant 4 : index
    %c0_91 = arith.constant 0 : index
    %c0_92 = arith.constant 0 : index
    %118 = vector.load %arg5[%c4_90, %c0_91, %c0_92] : memref<5x256x128xbf16, #tpu.memory_space<vmem>>, vector<1x256x128xbf16>
    %119 = vector.shape_cast %118 : vector<1x256x128xbf16> to vector<256x128xbf16>
    %cst_93 = arith.constant dense<0.000000e+00> : vector<128x128xf32>
    %120 = tpu.matmul %117, %119, %cst_93 {dimension_numbers = #tpu.dot_dimension_numbers<[1], [0], [0], [1], [0, 0, 1, 1], [], []>} : vector<128x256xbf16>, vector<256x128xbf16>, vector<128x128xf32> -> vector<128x128xf32>
    %c4_94 = arith.constant 4 : index
    %c0_95 = arith.constant 0 : index
    %c0_96 = arith.constant 0 : index
    %121 = vector.load %arg6[%c4_94, %c0_95, %c0_96] : memref<5x1x128xf32, #tpu.memory_space<vmem>>, vector<1x1x128xf32>
    %122 = vector.shape_cast %121 : vector<1x1x128xf32> to vector<1x128xf32>
    %123 = vector.broadcast %122 : vector<1x128xf32> to vector<128x128xf32>
    %124 = arith.addf %120, %123 : vector<128x128xf32>
    %125 = arith.truncf %124 : vector<128x128xf32> to vector<128x128xbf16>
    %c0_97 = arith.constant 0 : index
    %c0_98 = arith.constant 0 : index
    %126 = vector.load %arg8[%c0_97, %c0_98] : memref<128x128xbf16, #tpu.memory_space<vmem>>, vector<128x128xbf16>
    %cst_99 = arith.constant dense<0.000000e+00> : vector<128x128xf32>
    %127 = tpu.matmul %125, %126, %cst_99 {dimension_numbers = #tpu.dot_dimension_numbers<[1], [0], [0], [1], [0, 0, 1, 1], [], []>} : vector<128x128xbf16>, vector<128x128xbf16>, vector<128x128xf32> -> vector<128x128xf32>
    %c0_100 = arith.constant 0 : index
    %c0_101 = arith.constant 0 : index
    %128 = vector.load %arg9[%c0_100, %c0_101] : memref<1x128xf32, #tpu.memory_space<vmem>>, vector<1x128xf32>
    %129 = vector.broadcast %128 : vector<1x128xf32> to vector<128x128xf32>
    %130 = arith.addf %127, %129 : vector<128x128xf32>
    %c0_102 = arith.constant 0 : index
    %c0_103 = arith.constant 0 : index
    %131 = vector.load %arg11[%c0_102, %c0_103] : memref<128x128xf32, #tpu.memory_space<vmem>>, vector<128x128xf32>
    tpu.vector_store %arg11[%c0_102, %c0_103], %130 {strides = array<i32>} : memref<128x128xf32, #tpu.memory_space<vmem>>, vector<128x128xf32>,
    %c0_104 = arith.constant 0 : index
    %c0_105 = arith.constant 0 : index
    %132 = vector.load %arg7[%c0_104, %c0_105] : memref<8x128xbf16, #tpu.memory_space<vmem>>, vector<8x128xbf16>
    %133 = arith.truncf %130 : vector<128x128xf32> to vector<128x128xbf16>
    %cst_106 = arith.constant dense<0.000000e+00> : vector<8x128xf32>
    %134 = tpu.matmul %132, %133, %cst_106 {dimension_numbers = #tpu.dot_dimension_numbers<[1], [0], [0], [1], [0, 0, 1, 1], [], []>} : vector<8x128xbf16>, vector<128x128xbf16>, vector<8x128xf32> -> vector<8x128xf32>
    %c0_107 = arith.constant 0 : index
    %c0_108 = arith.constant 0 : index
    %135 = vector.load %arg10[%c0_107, %c0_108] : memref<8x128xf32, #tpu.memory_space<vmem>>, vector<8x128xf32>
    tpu.vector_store %arg10[%c0_107, %c0_108], %134 {strides = array<i32>} : memref<8x128xf32, #tpu.memory_space<vmem>>, vector<8x128xf32>,
    return
  }
}

</mosaic_0001>

<llo_original>
// kernel: tpu_custom_call.1
$region0: #{tpu_custom_call.1}
  #allocation0 [shape = 'u32[]', space=smem, size = 0x4, offset = 0x4, fixed_abs, tag = 'smem constant byte address 0x4 - core index']
  #allocation1 [shape = 'u32[144,128]{1,0:T(1,128)}', space=vmem, size = 0x12000, scoped, tag = 'internal scratch']
  %s0 = inlined_call_operand.hbm [shape: f32[128,128], index: 0, kind: input, shape index: {}]
  %s1 = inlined_call_operand.hbm [shape: bf16[128,128], index: 1, kind: input, shape index: {}]
  %s2 = inlined_call_operand.hbm [shape: f32[5,128,128], index: 2, kind: input, shape index: {}]
  %s3 = inlined_call_operand.hbm [shape: bf16[5,128,256], index: 3, kind: input, shape index: {}]
  %s4 = inlined_call_operand.hbm [shape: f32[5,1,256], index: 4, kind: input, shape index: {}]
  %s5 = inlined_call_operand.hbm [shape: bf16[5,256,128], index: 5, kind: input, shape index: {}]
  %s6 = inlined_call_operand.vmem [shape: f32[5,1,128], index: 6, kind: input, shape index: {}]
  %s7 = inlined_call_operand.vmem [shape: bf16[8,128], index: 7, kind: input, shape index: {}]
  %s8 = inlined_call_operand.hbm [shape: bf16[128,128], index: 8, kind: input, shape index: {}]
  %s9 = inlined_call_operand.vmem [shape: f32[1,128], index: 9, kind: input, shape index: {}]
  %s10 = inlined_call_operand.hbm [shape: f32[8,128], index: 10, kind: output, shape index: {0}]
  %s11 = inlined_call_operand.hbm [shape: f32[128,128], index: 11, kind: output, shape index: {1}]
  %12 = xla_tuple %s10, %s11
  %s13 = sld [smem:[#allocation0]]
  $region86: #{tpu_custom_call.1} parent=0
    _
  %s15 = ssub.s32 1, %s13
  %s16 = scalar_select 0, %s15, %s13
  $region1: #{tpu_custom_call.1} parent=0
    #allocation2 [shape = 'u8[65536]{0}', space=vmem, size = 0x10000, scoped, tag = 'input window, operand 0, single buffered']
    #allocation3 [shape = 's32[1]{0}', space=sflag, size = 0x4, scoped, tag = 'scoped memory for tpu_custom_call.1']
    #allocation4 [shape = 's32[1]{0}', space=sflag, size = 0x4, scoped, tag = 'scoped memory for tpu_custom_call.1']
    #allocation5 [shape = 'u8[32768]{0}', space=vmem, size = 0x8000, scoped, tag = 'input window, operand 1, single buffered']
    #allocation6 [shape = 's32[1]{0}', space=sflag, size = 0x4, scoped, tag = 'scoped memory for tpu_custom_call.1']
    #allocation7 [shape = 'u8[327680]{0}', space=vmem, size = 0x50000, scoped, tag = 'input window, operand 2, single buffered']
    #allocation8 [shape = 'u8[327680]{0}', space=vmem, size = 0x50000, scoped, tag = 'input window, operand 3, single buffered']
    #allocation9 [shape = 's32[1]{0}', space=sflag, size = 0x4, scoped, tag = 'scoped memory for tpu_custom_call.1']
    #allocation10 [shape = 'u8[5120]{0}', space=vmem, size = 0x1400, scoped, tag = 'input window, operand 4, single buffered']
    #allocation11 [shape = 'u8[327680]{0}', space=vmem, size = 0x50000, scoped, tag = 'input window, operand 5, single buffered']
    #allocation12 [shape = 's32[1]{0}', space=sflag, size = 0x4, scoped, tag = 'scoped memory for tpu_custom_call.1']
    #allocation13 [shape = 'u8[32768]{0}', space=vmem, size = 0x8000, scoped, tag = 'input window, operand 8, single buffered']
    #allocation14 [shape = 'u8[4096]{0}', space=vmem, size = 0x1000, scoped, tag = 'output window, operand 0, single buffered']
    #allocation15 [shape = 'u8[65536]{0}', space=vmem, size = 0x10000, scoped, tag = 'output window, operand 1, single buffered']
    #allocation16 [shape = 's32[1]{0}', space=sflag, size = 0x4, scoped, tag = 'scoped memory for tpu_custom_call.1']
    %17 = vsyncpa [#allocation3], 0
    %18 = vsyncpa [#allocation6], 0
    %19 = vsyncpa [#allocation9], 0
    %20 = vsyncpa [#allocation12], 0
    %21 = vsyncpa [#allocation4], 0
    %22 = vsyncpa [#allocation16], 0
    // Predicated region
    $region2: #{tpu_custom_call.1} parent=1 // pred_check
      _
    $region3: #{tpu_custom_call.1} parent=1 // pred_check_branch
      %24 = sbr.rel (0) target = $region5
    $region4: #{tpu_custom_call.1} parent=1 // pred_region
      %s26 = ssub.s32 2048, 2048
      %27 = vsyncadd [#allocation3], %s26
      %s28 = sshll.u32 [#allocation2], 4
      %s29 = int_to_ptr.vmem [resolvable:$true] %s28
      %34 = dma.hbm_to_vmem [thread:$0]  %s0, 2048, %s29, [#allocation3], 128, 128, 8
    $region5: #{tpu_custom_call.1} parent=1 // pred_fallthru
      _
    // Predicated region
    $region6: #{tpu_custom_call.1} parent=1 // pred_check
      _
    $region7: #{tpu_custom_call.1} parent=1 // pred_check_branch
      %36 = sbr.rel (0) target = $region9
    $region8: #{tpu_custom_call.1} parent=1 // pred_region
      %s38 = ssub.s32 1024, 1024
      %39 = vsyncadd [#allocation6], %s38
      %s40 = sshll.u32 [#allocation5], 4
      %s41 = int_to_ptr.vmem [resolvable:$true] %s40
      %46 = dma.hbm_to_vmem [thread:$0]  %s1, 1024, %s41, [#allocation6], 64, 64, 4
    $region9: #{tpu_custom_call.1} parent=1 // pred_fallthru
      _
    // Predicated region
    $region10: #{tpu_custom_call.1} parent=1 // pred_check
      _
    $region11: #{tpu_custom_call.1} parent=1 // pred_check_branch
      %48 = sbr.rel (0) target = $region13
    $region12: #{tpu_custom_call.1} parent=1 // pred_region
      %s50 = ssub.s32 10240, 10240
      %51 = vsyncadd [#allocation6], %s50
      %s52 = sshll.u32 [#allocation7], 4
      %s53 = int_to_ptr.vmem [resolvable:$true] %s52
      %58 = dma.hbm_to_vmem [thread:$0]  %s2, 10240, %s53, [#allocation6], 128, 128, 8
    $region13: #{tpu_custom_call.1} parent=1 // pred_fallthru
      _
    // Predicated region
    $region14: #{tpu_custom_call.1} parent=1 // pred_check
      _
    $region15: #{tpu_custom_call.1} parent=1 // pred_check_branch
      %60 = sbr.rel (0) target = $region17
    $region16: #{tpu_custom_call.1} parent=1 // pred_region
      %s62 = ssub.s32 10240, 10240
      %63 = vsyncadd [#allocation9], %s62
      %s64 = sshll.u32 [#allocation8], 4
      %s65 = int_to_ptr.vmem [resolvable:$true] %s64
      %70 = dma.hbm_to_vmem [thread:$0]  %s3, 10240, %s65, [#allocation9], 128, 128, 8
    $region17: #{tpu_custom_call.1} parent=1 // pred_fallthru
      _
    // Predicated region
    $region18: #{tpu_custom_call.1} parent=1 // pred_check
      _
    $region19: #{tpu_custom_call.1} parent=1 // pred_check_branch
      %72 = sbr.rel (0) target = $region21
    $region20: #{tpu_custom_call.1} parent=1 // pred_region
      %s74 = ssub.s32 160, 160
      %75 = vsyncadd [#allocation9], %s74
      %s76 = sshll.u32 [#allocation10], 4
      %s77 = int_to_ptr.vmem [resolvable:$true] %s76
      %82 = dma.hbm_to_vmem [thread:$0]  %s4, 160, %s77, [#allocation9], 32, 32, 2
    $region21: #{tpu_custom_call.1} parent=1 // pred_fallthru
      _
    // Predicated region
    $region22: #{tpu_custom_call.1} parent=1 // pred_check
      _
    $region23: #{tpu_custom_call.1} parent=1 // pred_check_branch
      %84 = sbr.rel (0) target = $region25
    $region24: #{tpu_custom_call.1} parent=1 // pred_region
      %s86 = ssub.s32 10240, 10240
      %87 = vsyncadd [#allocation12], %s86
      %s88 = sshll.u32 [#allocation11], 4
      %s89 = int_to_ptr.vmem [resolvable:$true] %s88
      %94 = dma.hbm_to_vmem [thread:$0]  %s5, 10240, %s89, [#allocation12], 64, 64, 4
    $region25: #{tpu_custom_call.1} parent=1 // pred_fallthru
      _
    // Predicated region
    $region26: #{tpu_custom_call.1} parent=1 // pred_check
      _
    $region27: #{tpu_custom_call.1} parent=1 // pred_check_branch
      %96 = sbr.rel (0) target = $region29
    $region28: #{tpu_custom_call.1} parent=1 // pred_region
      _
    $region29: #{tpu_custom_call.1} parent=1 // pred_fallthru
      _
    // Predicated region
    $region30: #{tpu_custom_call.1} parent=1 // pred_check
      _
    $region31: #{tpu_custom_call.1} parent=1 // pred_check_branch
      %98 = sbr.rel (0) target = $region33
    $region32: #{tpu_custom_call.1} parent=1 // pred_region
      _
    $region33: #{tpu_custom_call.1} parent=1 // pred_fallthru
      _
    // Predicated region
    $region34: #{tpu_custom_call.1} parent=1 // pred_check
      _
    $region35: #{tpu_custom_call.1} parent=1 // pred_check_branch
      %100 = sbr.rel (0) target = $region37
    $region36: #{tpu_custom_call.1} parent=1 // pred_region
      %s102 = ssub.s32 1024, 1024
      %103 = vsyncadd [#allocation12], %s102
      %s104 = sshll.u32 [#allocation13], 4
      %s105 = int_to_ptr.vmem [resolvable:$true] %s104
      %110 = dma.hbm_to_vmem [thread:$0]  %s8, 1024, %s105, [#allocation12], 64, 64, 4
    $region37: #{tpu_custom_call.1} parent=1 // pred_fallthru
      _
    // Predicated region
    $region38: #{tpu_custom_call.1} parent=1 // pred_check
      _
    $region39: #{tpu_custom_call.1} parent=1 // pred_check_branch
      %112 = sbr.rel (0) target = $region41
    $region40: #{tpu_custom_call.1} parent=1 // pred_region
      _
    $region41: #{tpu_custom_call.1} parent=1 // pred_fallthru
      _
    // Predicated region
    $region42: #{tpu_custom_call.1} parent=1 // pred_check
      _
    $region43: #{tpu_custom_call.1} parent=1 // pred_check_branch
      %114 = sbr.rel (0) target = $region45
    $region44: #{tpu_custom_call.1} parent=1 // pred_region
      %115 = dma.done [#allocation3], 2048
    $region45: #{tpu_custom_call.1} parent=1 // pred_fallthru
      _
    // Predicated region
    $region46: #{tpu_custom_call.1} parent=1 // pred_check
      _
    $region47: #{tpu_custom_call.1} parent=1 // pred_check_branch
      %117 = sbr.rel (0) target = $region49
    $region48: #{tpu_custom_call.1} parent=1 // pred_region
      %118 = dma.done [#allocation6], 1024
    $region49: #{tpu_custom_call.1} parent=1 // pred_fallthru
      _
    // Predicated region
    $region50: #{tpu_custom_call.1} parent=1 // pred_check
      _
    $region51: #{tpu_custom_call.1} parent=1 // pred_check_branch
      %120 = sbr.rel (0) target = $region53
    $region52: #{tpu_custom_call.1} parent=1 // pred_region
      %121 = dma.done [#allocation6], 10240
    $region53: #{tpu_custom_call.1} parent=1 // pred_fallthru
      _
    // Predicated region
    $region54: #{tpu_custom_call.1} parent=1 // pred_check
      _
    $region55: #{tpu_custom_call.1} parent=1 // pred_check_branch
      %123 = sbr.rel (0) target = $region57
    $region56: #{tpu_custom_call.1} parent=1 // pred_region
      %124 = dma.done [#allocation9], 10240
    $region57: #{tpu_custom_call.1} parent=1 // pred_fallthru
      _
    // Predicated region
    $region58: #{tpu_custom_call.1} parent=1 // pred_check
      _
    $region59: #{tpu_custom_call.1} parent=1 // pred_check_branch
      %126 = sbr.rel (0) target = $region61
    $region60: #{tpu_custom_call.1} parent=1 // pred_region
      %127 = dma.done [#allocation9], 160
    $region61: #{tpu_custom_call.1} parent=1 // pred_fallthru
      _
    // Predicated region
    $region62: #{tpu_custom_call.1} parent=1 // pred_check
      _
    $region63: #{tpu_custom_call.1} parent=1 // pred_check_branch
      %129 = sbr.rel (0) target = $region65
    $region64: #{tpu_custom_call.1} parent=1 // pred_region
      %130 = dma.done [#allocation12], 10240
    $region65: #{tpu_custom_call.1} parent=1 // pred_fallthru
      _
    // Predicated region
    $region66: #{tpu_custom_call.1} parent=1 // pred_check
      _
    $region67: #{tpu_custom_call.1} parent=1 // pred_check_branch
      %132 = sbr.rel (0) target = $region69
    $region68: #{tpu_custom_call.1} parent=1 // pred_region
      %133 = dma.done [#allocation12], 1024
    $region69: #{tpu_custom_call.1} parent=1 // pred_fallthru
      _
    %v135 = vld [vmem:[#allocation5] sm:$0xf]
    %v136 = vld [vmem:[#allocation5 + $0x4] sm:$0xf]
    %v137 = vld [vmem:[#allocation5 + $0x8] sm:$0xf]
    %v138 = vld [vmem:[#allocation5 + $0xc] sm:$0xf]
    %v139 = vld [vmem:[#allocation5 + $0x10] sm:$0xf]
    %v140 = vld [vmem:[#allocation5 + $0x14] sm:$0xf]
    %v141 = vld [vmem:[#allocation5 + $0x18] sm:$0xf]
    %v142 = vld [vmem:[#allocation5 + $0x1c] sm:$0xf]
    %v143 = vld [vmem:[#allocation5 + $0x20] sm:$0xf]
    %v144 = vld [vmem:[#allocation5 + $0x24] sm:$0xf]
    %v145 = vld [vmem:[#allocation5 + $0x28] sm:$0xf]
    %v146 = vld [vmem:[#allocation5 + $0x2c] sm:$0xf]
    %v147 = vld [vmem:[#allocation5 + $0x30] sm:$0xf]
    %v148 = vld [vmem:[#allocation5 + $0x34] sm:$0xf]
    %v149 = vld [vmem:[#allocation5 + $0x38] sm:$0xf]
    %v150 = vld [vmem:[#allocation5 + $0x3c] sm:$0xf]
    %v151 = vld [vmem:[#allocation2] sm:$0xff]
    %v152 = vld [vmem:[#allocation2 + $0x8] sm:$0xff]
    %v153 = vld [vmem:[#allocation2 + $0x10] sm:$0xff]
    %v154 = vld [vmem:[#allocation2 + $0x18] sm:$0xff]
    %v155 = vld [vmem:[#allocation2 + $0x20] sm:$0xff]
    %v156 = vld [vmem:[#allocation2 + $0x28] sm:$0xff]
    %v157 = vld [vmem:[#allocation2 + $0x30] sm:$0xff]
    %v158 = vld [vmem:[#allocation2 + $0x38] sm:$0xff]
    %v159 = vld [vmem:[#allocation2 + $0x40] sm:$0xff]
    %v160 = vld [vmem:[#allocation2 + $0x48] sm:$0xff]
    %v161 = vld [vmem:[#allocation2 + $0x50] sm:$0xff]
    %v162 = vld [vmem:[#allocation2 + $0x58] sm:$0xff]
    %v163 = vld [vmem:[#allocation2 + $0x60] sm:$0xff]
    %v164 = vld [vmem:[#allocation2 + $0x68] sm:$0xff]
    %v165 = vld [vmem:[#allocation2 + $0x70] sm:$0xff]
    %v166 = vld [vmem:[#allocation2 + $0x78] sm:$0xff]
    %v167 = vpack.c.bf16 %v152, %v151
    %v168 = vpack.c.bf16 %v154, %v153
    %v169 = vpack.c.bf16 %v156, %v155
    %v170 = vpack.c.bf16 %v158, %v157
    %v171 = vpack.c.bf16 %v160, %v159
    %v172 = vpack.c.bf16 %v162, %v161
    %v173 = vpack.c.bf16 %v164, %v163
    %v174 = vpack.c.bf16 %v166, %v165
    %v175 = vld [vmem:[#allocation7] sm:$0xff]
    %v176 = vld [vmem:[#allocation7 + $0x8] sm:$0xff]
    %v177 = vld [vmem:[#allocation7 + $0x10] sm:$0xff]
    %v178 = vld [vmem:[#allocation7 + $0x18] sm:$0xff]
    %v179 = vld [vmem:[#allocation7 + $0x20] sm:$0xff]
    %v180 = vld [vmem:[#allocation7 + $0x28] sm:$0xff]
    %v181 = vld [vmem:[#allocation7 + $0x30] sm:$0xff]
    %v182 = vld [vmem:[#allocation7 + $0x38] sm:$0xff]
    %v183 = vld [vmem:[#allocation7 + $0x40] sm:$0xff]
    %v184 = vld [vmem:[#allocation7 + $0x48] sm:$0xff]
    %v185 = vld [vmem:[#allocation7 + $0x50] sm:$0xff]
    %v186 = vld [vmem:[#allocation7 + $0x58] sm:$0xff]
    %v187 = vld [vmem:[#allocation7 + $0x60] sm:$0xff]
    %v188 = vld [vmem:[#allocation7 + $0x68] sm:$0xff]
    %v189 = vld [vmem:[#allocation7 + $0x70] sm:$0xff]
    %v190 = vld [vmem:[#allocation7 + $0x78] sm:$0xff]
    %v207 = vunpack.c.l.b16 %v135
    %v208 = vunpack.c.l.b16 %v136
    %v209 = vunpack.c.l.b16 %v137
    %v210 = vunpack.c.l.b16 %v138
    %v211 = vunpack.c.l.b16 %v139
    %v212 = vunpack.c.l.b16 %v140
    %v213 = vunpack.c.l.b16 %v141
    %v214 = vunpack.c.l.b16 %v142
    %v215 = vunpack.c.l.b16 %v143
    %v216 = vunpack.c.l.b16 %v144
    %v217 = vunpack.c.l.b16 %v145
    %v218 = vunpack.c.l.b16 %v146
    %v219 = vunpack.c.l.b16 %v147
    %v220 = vunpack.c.l.b16 %v148
    %v221 = vunpack.c.l.b16 %v149
    %v222 = vunpack.c.l.b16 %v150
    %v223 = vpack.c.b16 %v208, %v207
    %v224 = vpack.c.b16 %v210, %v209
    %v225 = vpack.c.b16 %v212, %v211
    %v226 = vpack.c.b16 %v214, %v213
    %v227 = vpack.c.b16 %v216, %v215
    %v228 = vpack.c.b16 %v218, %v217
    %v229 = vpack.c.b16 %v220, %v219
    %v230 = vpack.c.b16 %v222, %v221
    %239 = vmatprep.subr.bf16.mxu0 0
    %240 = vmatpush1.bf16.msra.mxu0 %v174
    %241 = vmatprep.subr.bf16.mxu0 0
    %242 = vmatpush1.bf16.msra.mxu0 %v173
    %243 = vmatprep.subr.bf16.mxu0 0
    %244 = vmatpush1.bf16.msra.mxu0 %v172
    %245 = vmatprep.subr.bf16.mxu0 0
    %246 = vmatpush1.bf16.msra.mxu0 %v171
    %247 = vmatprep.subr.bf16.mxu0 0
    %248 = vmatpush1.bf16.msra.mxu0 %v170
    %249 = vmatprep.subr.bf16.mxu0 0
    %250 = vmatpush1.bf16.msra.mxu0 %v169
    %251 = vmatprep.subr.bf16.mxu0 0
    %252 = vmatpush1.bf16.msra.mxu0 %v168
    %253 = vmatprep.subr.bf16.mxu0 0
    %254 = vmatpush1.bf16.msra.mxu0 %v167
    %255 = vmatprep.subr.bf16.mxu0 0
    %256 = vmatpush2.bf16.msra.mxu0 0
    %257 = vmatprep.subr.bf16.mxu0 0
    %258 = vmatpush2.bf16.msra.mxu0 0
    %259 = vmatprep.subr.bf16.mxu0 0
    %260 = vmatpush2.bf16.msra.mxu0 0
    %261 = vmatprep.subr.bf16.mxu0 0
    %262 = vmatpush2.bf16.msra.mxu0 0
    %263 = vmatprep.subr.bf16.mxu0 0
    %264 = vmatpush2.bf16.msra.mxu0 0
    %265 = vmatprep.subr.bf16.mxu0 0
    %266 = vmatpush2.bf16.msra.mxu0 0
    %267 = vmatprep.subr.bf16.mxu0 0
    %268 = vmatpush2.bf16.msra.mxu0 0
    %269 = vmatprep.subr.bf16.mxu0 0
    %270 = vmatpush2.bf16.msra.mxu0 0
    %271 = vmatprep.mubr.bf16.mxu0 0
    %272 = vmatmul.mubr.bf16.gmra.mxu0 %v223
    %v273 = vpop.f32.mrf.mxu0
    %v274 = vadd.f32 %v175, %v273
    %v275 = vpop.f32.mrf.mxu0
    %v276 = vpop.f32.mrf.mxu0
    %v277 = vadd.f32 %v176, %v276
    %v278 = vpop.f32.mrf.mxu0
    %279 = vmatprep.mubr.bf16.mxu0 0
    %280 = vmatmul.mubr.bf16.gmra.mxu0 %v224
    %v281 = vpop.f32.mrf.mxu0
    %v282 = vadd.f32 %v177, %v281
    %v283 = vpop.f32.mrf.mxu0
    %v284 = vpop.f32.mrf.mxu0
    %v285 = vadd.f32 %v178, %v284
    %v286 = vpop.f32.mrf.mxu0
    %287 = vmatprep.mubr.bf16.mxu0 0
    %288 = vmatmul.mubr.bf16.gmra.mxu0 %v225
    %v289 = vpop.f32.mrf.mxu0
    %v290 = vadd.f32 %v179, %v289
    %v291 = vpop.f32.mrf.mxu0
    %v292 = vpop.f32.mrf.mxu0
    %v293 = vadd.f32 %v180, %v292
    %v294 = vpop.f32.mrf.mxu0
    %295 = vmatprep.mubr.bf16.mxu0 0
    %296 = vmatmul.mubr.bf16.gmra.mxu0 %v226
    %v297 = vpop.f32.mrf.mxu0
    %v298 = vadd.f32 %v181, %v297
    %v299 = vpop.f32.mrf.mxu0
    %v300 = vpop.f32.mrf.mxu0
    %v301 = vadd.f32 %v182, %v300
    %v302 = vpop.f32.mrf.mxu0
    %303 = vmatprep.mubr.bf16.mxu0 0
    %304 = vmatmul.mubr.bf16.gmra.mxu0 %v227
    %v305 = vpop.f32.mrf.mxu0
    %v306 = vadd.f32 %v183, %v305
    %v307 = vpop.f32.mrf.mxu0
    %v308 = vpop.f32.mrf.mxu0
    %v309 = vadd.f32 %v184, %v308
    %v310 = vpop.f32.mrf.mxu0
    %311 = vmatprep.mubr.bf16.mxu0 0
    %312 = vmatmul.mubr.bf16.gmra.mxu0 %v228
    %v313 = vpop.f32.mrf.mxu0
    %v314 = vadd.f32 %v185, %v313
    %v315 = vpop.f32.mrf.mxu0
    %v316 = vpop.f32.mrf.mxu0
    %v317 = vadd.f32 %v186, %v316
    %v318 = vpop.f32.mrf.mxu0
    %319 = vmatprep.mubr.bf16.mxu0 0
    %320 = vmatmul.mubr.bf16.gmra.mxu0 %v229
    %v321 = vpop.f32.mrf.mxu0
    %v322 = vadd.f32 %v187, %v321
    %v323 = vpop.f32.mrf.mxu0
    %v324 = vpop.f32.mrf.mxu0
    %v325 = vadd.f32 %v188, %v324
    %v326 = vpop.f32.mrf.mxu0
    %327 = vmatprep.mubr.bf16.mxu0 0
    %328 = vmatmul.mubr.bf16.gmra.mxu0 %v230
    %v329 = vpop.f32.mrf.mxu0
    %v330 = vadd.f32 %v189, %v329
    %v331 = vpop.f32.mrf.mxu0
    %v332 = vpop.f32.mrf.mxu0
    %v333 = vadd.f32 %v190, %v332
    %v334 = vpop.f32.mrf.mxu0
    %335 = vdwg.mxu0
    %v336 = vpack.c.bf16 %v277, %v274
    %v337 = vpack.c.bf16 %v285, %v282
    %v338 = vpack.c.bf16 %v293, %v290
    %v339 = vpack.c.bf16 %v301, %v298
    %v340 = vpack.c.bf16 %v309, %v306
    %v341 = vpack.c.bf16 %v317, %v314
    %v342 = vpack.c.bf16 %v325, %v322
    %v343 = vpack.c.bf16 %v333, %v330
    %v344 = vld [vmem:[#allocation8] sm:$0xff]
    %v345 = vld [vmem:[#allocation8 + $0x8] sm:$0xff]
    %v346 = vld [vmem:[#allocation8 + $0x10] sm:$0xff]
    %v347 = vld [vmem:[#allocation8 + $0x18] sm:$0xff]
    %v348 = vld [vmem:[#allocation8 + $0x20] sm:$0xff]
    %v349 = vld [vmem:[#allocation8 + $0x28] sm:$0xff]
    %v350 = vld [vmem:[#allocation8 + $0x30] sm:$0xff]
    %v351 = vld [vmem:[#allocation8 + $0x38] sm:$0xff]
    %v352 = vld [vmem:[#allocation8 + $0x40] sm:$0xff]
    %v353 = vld [vmem:[#allocation8 + $0x48] sm:$0xff]
    %v354 = vld [vmem:[#allocation8 + $0x50] sm:$0xff]
    %v355 = vld [vmem:[#allocation8 + $0x58] sm:$0xff]
    %v356 = vld [vmem:[#allocation8 + $0x60] sm:$0xff]
    %v357 = vld [vmem:[#allocation8 + $0x68] sm:$0xff]
    %v358 = vld [vmem:[#allocation8 + $0x70] sm:$0xff]
    %v359 = vld [vmem:[#allocation8 + $0x78] sm:$0xff]
    %v360 = vld [vmem:[#allocation10] sm:$0x3]
    %v362 = vlaneseq
    %v363 = vshrl.u32 %v362, 7
    %v364 = vsub.s32 0, %v363
    %v365 = vrot.slane %v360, %v364
    %v366 = vlaneseq
    %v367 = vshrl.u32 %v366, 7
    %v368 = vsub.s32 1, %v367
    %v369 = vrot.slane %v360, %v368
    %v388 = vunpack.c.l.b16 %v344
    %v389 = vunpack.c.h.b16 %v344
    %v390 = vunpack.c.l.b16 %v345
    %v391 = vunpack.c.h.b16 %v345
    %v392 = vunpack.c.l.b16 %v346
    %v393 = vunpack.c.h.b16 %v346
    %v394 = vunpack.c.l.b16 %v347
    %v395 = vunpack.c.h.b16 %v347
    %v396 = vunpack.c.l.b16 %v348
    %v397 = vunpack.c.h.b16 %v348
    %v398 = vunpack.c.l.b16 %v349
    %v399 = vunpack.c.h.b16 %v349
    %v400 = vunpack.c.l.b16 %v350
    %v401 = vunpack.c.h.b16 %v350
    %v402 = vunpack.c.l.b16 %v351
    %v403 = vunpack.c.h.b16 %v351
    %v404 = vunpack.c.l.b16 %v352
    %v405 = vunpack.c.h.b16 %v352
    %v406 = vunpack.c.l.b16 %v353
    %v407 = vunpack.c.h.b16 %v353
    %v408 = vunpack.c.l.b16 %v354
    %v409 = vunpack.c.h.b16 %v354
    %v410 = vunpack.c.l.b16 %v355
    %v411 = vunpack.c.h.b16 %v355
    %v412 = vunpack.c.l.b16 %v356
    %v413 = vunpack.c.h.b16 %v356
    %v414 = vunpack.c.l.b16 %v357
    %v415 = vunpack.c.h.b16 %v357
    %v416 = vunpack.c.l.b16 %v358
    %v417 = vunpack.c.h.b16 %v358
    %v418 = vunpack.c.l.b16 %v359
    %v419 = vunpack.c.h.b16 %v359
    %v420 = vpack.c.b16 %v390, %v388
    %v421 = vpack.c.b16 %v391, %v389
    %v422 = vpack.c.b16 %v394, %v392
    %v423 = vpack.c.b16 %v395, %v393
    %v424 = vpack.c.b16 %v398, %v396
    %v425 = vpack.c.b16 %v399, %v397
    %v426 = vpack.c.b16 %v402, %v400
    %v427 = vpack.c.b16 %v403, %v401
    %v428 = vpack.c.b16 %v406, %v404
    %v429 = vpack.c.b16 %v407, %v405
    %v430 = vpack.c.b16 %v410, %v408
    %v431 = vpack.c.b16 %v411, %v409
    %v432 = vpack.c.b16 %v414, %v412
    %v433 = vpack.c.b16 %v415, %v413
    %v434 = vpack.c.b16 %v418, %v416
    %v435 = vpack.c.b16 %v419, %v417
    %452 = vmatprep.subr.bf16.mxu0 %v435
    %453 = vmatpush1.bf16.msra.mxu0 %v434
    %454 = vmatprep.subr.bf16.mxu0 %v433
    %455 = vmatpush1.bf16.msra.mxu0 %v432
    %456 = vmatprep.subr.bf16.mxu0 %v431
    %457 = vmatpush1.bf16.msra.mxu0 %v430
    %458 = vmatprep.subr.bf16.mxu0 %v429
    %459 = vmatpush1.bf16.msra.mxu0 %v428
    %460 = vmatprep.subr.bf16.mxu0 %v427
    %461 = vmatpush1.bf16.msra.mxu0 %v426
    %462 = vmatprep.subr.bf16.mxu0 %v425
    %463 = vmatpush1.bf16.msra.mxu0 %v424
    %464 = vmatprep.subr.bf16.mxu0 %v423
    %465 = vmatpush1.bf16.msra.mxu0 %v422
    %466 = vmatprep.subr.bf16.mxu0 %v421
    %467 = vmatpush1.bf16.msra.mxu0 %v420
    %468 = vmatprep.subr.bf16.mxu0 0
    %469 = vmatpush2.bf16.msra.mxu0 0
    %470 = vmatprep.subr.bf16.mxu0 0
    %471 = vmatpush2.bf16.msra.mxu0 0
    %472 = vmatprep.subr.bf16.mxu0 0
    %473 = vmatpush2.bf16.msra.mxu0 0
    %474 = vmatprep.subr.bf16.mxu0 0
    %475 = vmatpush2.bf16.msra.mxu0 0
    %476 = vmatprep.subr.bf16.mxu0 0
    %477 = vmatpush2.bf16.msra.mxu0 0
    %478 = vmatprep.subr.bf16.mxu0 0
    %479 = vmatpush2.bf16.msra.mxu0 0
    %480 = vmatprep.subr.bf16.mxu0 0
    %481 = vmatpush2.bf16.msra.mxu0 0
    %482 = vmatprep.subr.bf16.mxu0 0
    %483 = vmatpush2.bf16.msra.mxu0 0
    %484 = vmatprep.mubr.bf16.mxu0 0
    %485 = vmatmul.mubr.bf16.gmra.mxu0 %v336
    %v486 = vpop.f32.mrf.mxu0
    %v487 = vadd.f32 %v365, %v486
    %v488 = vpop.f32.mrf.mxu0
    %v489 = vadd.f32 %v369, %v488
    %v490 = vpop.f32.mrf.mxu0
    %v491 = vadd.f32 %v365, %v490
    %v492 = vpop.f32.mrf.mxu0
    %v493 = vadd.f32 %v369, %v492
    %494 = vmatprep.mubr.bf16.mxu0 0
    %495 = vmatmul.mubr.bf16.gmra.mxu0 %v337
    %v496 = vpop.f32.mrf.mxu0
    %v497 = vadd.f32 %v365, %v496
    %v498 = vpop.f32.mrf.mxu0
    %v499 = vadd.f32 %v369, %v498
    %v500 = vpop.f32.mrf.mxu0
    %v501 = vadd.f32 %v365, %v500
    %v502 = vpop.f32.mrf.mxu0
    %v503 = vadd.f32 %v369, %v502
    %504 = vmatprep.mubr.bf16.mxu0 0
    %505 = vmatmul.mubr.bf16.gmra.mxu0 %v338
    %v506 = vpop.f32.mrf.mxu0
    %v507 = vadd.f32 %v365, %v506
    %v508 = vpop.f32.mrf.mxu0
    %v509 = vadd.f32 %v369, %v508
    %v510 = vpop.f32.mrf.mxu0
    %v511 = vadd.f32 %v365, %v510
    %v512 = vpop.f32.mrf.mxu0
    %v513 = vadd.f32 %v369, %v512
    %514 = vmatprep.mubr.bf16.mxu0 0
    %515 = vmatmul.mubr.bf16.gmra.mxu0 %v339
    %v516 = vpop.f32.mrf.mxu0
    %v517 = vadd.f32 %v365, %v516
    %v518 = vpop.f32.mrf.mxu0
    %v519 = vadd.f32 %v369, %v518
    %v520 = vpop.f32.mrf.mxu0
    %v521 = vadd.f32 %v365, %v520
    %v522 = vpop.f32.mrf.mxu0
    %v523 = vadd.f32 %v369, %v522
    %524 = vmatprep.mubr.bf16.mxu0 0
    %525 = vmatmul.mubr.bf16.gmra.mxu0 %v340
    %v526 = vpop.f32.mrf.mxu0
    %v527 = vadd.f32 %v365, %v526
    %v528 = vpop.f32.mrf.mxu0
    %v529 = vadd.f32 %v369, %v528
    %v530 = vpop.f32.mrf.mxu0
    %v531 = vadd.f32 %v365, %v530
    %v532 = vpop.f32.mrf.mxu0
    %v533 = vadd.f32 %v369, %v532
    %534 = vmatprep.mubr.bf16.mxu0 0
    %535 = vmatmul.mubr.bf16.gmra.mxu0 %v341
    %v536 = vpop.f32.mrf.mxu0
    %v537 = vadd.f32 %v365, %v536
    %v538 = vpop.f32.mrf.mxu0
    %v539 = vadd.f32 %v369, %v538
    %v540 = vpop.f32.mrf.mxu0
    %v541 = vadd.f32 %v365, %v540
    %v542 = vpop.f32.mrf.mxu0
    %v543 = vadd.f32 %v369, %v542
    %544 = vmatprep.mubr.bf16.mxu0 0
    %545 = vmatmul.mubr.bf16.gmra.mxu0 %v342
    %v546 = vpop.f32.mrf.mxu0
    %v547 = vadd.f32 %v365, %v546
    %v548 = vpop.f32.mrf.mxu0
    %v549 = vadd.f32 %v369, %v548
    %v550 = vpop.f32.mrf.mxu0
    %v551 = vadd.f32 %v365, %v550
    %v552 = vpop.f32.mrf.mxu0
    %v553 = vadd.f32 %v369, %v552
    %554 = vmatprep.mubr.bf16.mxu0 0
    %555 = vmatmul.mubr.bf16.gmra.mxu0 %v343
    %v556 = vpop.f32.mrf.mxu0
    %v557 = vadd.f32 %v365, %v556
    %v558 = vpop.f32.mrf.mxu0
    %v559 = vadd.f32 %v369, %v558
    %v560 = vpop.f32.mrf.mxu0
    %v561 = vadd.f32 %v365, %v560
    %v562 = vpop.f32.mrf.mxu0
    %v563 = vadd.f32 %v369, %v562
    %564 = vdwg.mxu0
    %v565 = vmax.f32 %v487, 0.0
    %v566 = vmax.f32 %v489, 0.0
    %v567 = vmax.f32 %v491, 0.0
    %v568 = vmax.f32 %v493, 0.0
    %v569 = vmax.f32 %v497, 0.0
    %v570 = vmax.f32 %v499, 0.0
    %v571 = vmax.f32 %v501, 0.0
    %v572 = vmax.f32 %v503, 0.0
    %v573 = vmax.f32 %v507, 0.0
    %v574 = vmax.f32 %v509, 0.0
    %v575 = vmax.f32 %v511, 0.0
    %v576 = vmax.f32 %v513, 0.0
    %v577 = vmax.f32 %v517, 0.0
    %v578 = vmax.f32 %v519, 0.0
    %v579 = vmax.f32 %v521, 0.0
    %v580 = vmax.f32 %v523, 0.0
    %v581 = vmax.f32 %v527, 0.0
    %v582 = vmax.f32 %v529, 0.0
    %v583 = vmax.f32 %v531, 0.0
    %v584 = vmax.f32 %v533, 0.0
    %v585 = vmax.f32 %v537, 0.0
    %v586 = vmax.f32 %v539, 0.0
    %v587 = vmax.f32 %v541, 0.0
    %v588 = vmax.f32 %v543, 0.0
    %v589 = vmax.f32 %v547, 0.0
    %v590 = vmax.f32 %v549, 0.0
    %v591 = vmax.f32 %v551, 0.0
    %v592 = vmax.f32 %v553, 0.0
    %v593 = vmax.f32 %v557, 0.0
    %v594 = vmax.f32 %v559, 0.0
    %v595 = vmax.f32 %v561, 0.0
    %v596 = vmax.f32 %v563, 0.0
    %v597 = vpack.c.bf16 %v567, %v565
    %v598 = vpack.c.bf16 %v568, %v566
    %v599 = vpack.c.bf16 %v571, %v569
    %v600 = vpack.c.bf16 %v572, %v570
    %v601 = vpack.c.bf16 %v575, %v573
    %v602 = vpack.c.bf16 %v576, %v574
    %v603 = vpack.c.bf16 %v579, %v577
    %v604 = vpack.c.bf16 %v580, %v578
    %v605 = vpack.c.bf16 %v583, %v581
    %v606 = vpack.c.bf16 %v584, %v582
    %v607 = vpack.c.bf16 %v587, %v585
    %v608 = vpack.c.bf16 %v588, %v586
    %v609 = vpack.c.bf16 %v591, %v589
    %v610 = vpack.c.bf16 %v592, %v590
    %v611 = vpack.c.bf16 %v595, %v593
    %v612 = vpack.c.bf16 %v596, %v594
    %v613 = vld [vmem:[#allocation11] sm:$0xf]
    %v614 = vld [vmem:[#allocation11 + $0x4] sm:$0xf]
    %v615 = vld [vmem:[#allocation11 + $0x8] sm:$0xf]
    %v616 = vld [vmem:[#allocation11 + $0xc] sm:$0xf]
    %v617 = vld [vmem:[#allocation11 + $0x10] sm:$0xf]
    %v618 = vld [vmem:[#allocation11 + $0x14] sm:$0xf]
    %v619 = vld [vmem:[#allocation11 + $0x18] sm:$0xf]
    %v620 = vld [vmem:[#allocation11 + $0x1c] sm:$0xf]
    %v621 = vld [vmem:[#allocation11 + $0x20] sm:$0xf]
    %v622 = vld [vmem:[#allocation11 + $0x24] sm:$0xf]
    %v623 = vld [vmem:[#allocation11 + $0x28] sm:$0xf]
    %v624 = vld [vmem:[#allocation11 + $0x2c] sm:$0xf]
    %v625 = vld [vmem:[#allocation11 + $0x30] sm:$0xf]
    %v626 = vld [vmem:[#allocation11 + $0x34] sm:$0xf]
    %v627 = vld [vmem:[#allocation11 + $0x38] sm:$0xf]
    %v628 = vld [vmem:[#allocation11 + $0x3c] sm:$0xf]
    %v629 = vld [vmem:[#allocation11 + $0x40] sm:$0xf]
    %v630 = vld [vmem:[#allocation11 + $0x44] sm:$0xf]
    %v631 = vld [vmem:[#allocation11 + $0x48] sm:$0xf]
    %v632 = vld [vmem:[#allocation11 + $0x4c] sm:$0xf]
    %v633 = vld [vmem:[#allocation11 + $0x50] sm:$0xf]
    %v634 = vld [vmem:[#allocation11 + $0x54] sm:$0xf]
    %v635 = vld [vmem:[#allocation11 + $0x58] sm:$0xf]
    %v636 = vld [vmem:[#allocation11 + $0x5c] sm:$0xf]
    %v637 = vld [vmem:[#allocation11 + $0x60] sm:$0xf]
    %v638 = vld [vmem:[#allocation11 + $0x64] sm:$0xf]
    %v639 = vld [vmem:[#allocation11 + $0x68] sm:$0xf]
    %v640 = vld [vmem:[#allocation11 + $0x6c] sm:$0xf]
    %v641 = vld [vmem:[#allocation11 + $0x70] sm:$0xf]
    %v642 = vld [vmem:[#allocation11 + $0x74] sm:$0xf]
    %v643 = vld [vmem:[#allocation11 + $0x78] sm:$0xf]
    %v644 = vld [vmem:[#allocation11 + $0x7c] sm:$0xf]
    %v645 = vld [vmem:[%s6] sm:$0x1]
    %v647 = vlaneseq
    %v648 = vshrl.u32 %v647, 7
    %v649 = vsub.s32 0, %v648
    %v650 = vrot.slane %v645, %v649
    %v684 = vunpack.c.l.b16 %v613
    %v685 = vunpack.c.l.b16 %v614
    %v686 = vunpack.c.l.b16 %v615
    %v687 = vunpack.c.l.b16 %v616
    %v688 = vunpack.c.l.b16 %v617
    %v689 = vunpack.c.l.b16 %v618
    %v690 = vunpack.c.l.b16 %v619
    %v691 = vunpack.c.l.b16 %v620
    %v692 = vunpack.c.l.b16 %v621
    %v693 = vunpack.c.l.b16 %v622
    %v694 = vunpack.c.l.b16 %v623
    %v695 = vunpack.c.l.b16 %v624
    %v696 = vunpack.c.l.b16 %v625
    %v697 = vunpack.c.l.b16 %v626
    %v698 = vunpack.c.l.b16 %v627
    %v699 = vunpack.c.l.b16 %v628
    %v700 = vunpack.c.l.b16 %v629
    %v701 = vunpack.c.l.b16 %v630
    %v702 = vunpack.c.l.b16 %v631
    %v703 = vunpack.c.l.b16 %v632
    %v704 = vunpack.c.l.b16 %v633
    %v705 = vunpack.c.l.b16 %v634
    %v706 = vunpack.c.l.b16 %v635
    %v707 = vunpack.c.l.b16 %v636
    %v708 = vunpack.c.l.b16 %v637
    %v709 = vunpack.c.l.b16 %v638
    %v710 = vunpack.c.l.b16 %v639
    %v711 = vunpack.c.l.b16 %v640
    %v712 = vunpack.c.l.b16 %v641
    %v713 = vunpack.c.l.b16 %v642
    %v714 = vunpack.c.l.b16 %v643
    %v715 = vunpack.c.l.b16 %v644
    %v716 = vpack.c.b16 %v685, %v684
    %v717 = vpack.c.b16 %v687, %v686
    %v718 = vpack.c.b16 %v689, %v688
    %v719 = vpack.c.b16 %v691, %v690
    %v720 = vpack.c.b16 %v693, %v692
    %v721 = vpack.c.b16 %v695, %v694
    %v722 = vpack.c.b16 %v697, %v696
    %v723 = vpack.c.b16 %v699, %v698
    %v724 = vpack.c.b16 %v701, %v700
    %v725 = vpack.c.b16 %v703, %v702
    %v726 = vpack.c.b16 %v705, %v704
    %v727 = vpack.c.b16 %v707, %v706
    %v728 = vpack.c.b16 %v709, %v708
    %v729 = vpack.c.b16 %v711, %v710
    %v730 = vpack.c.b16 %v713, %v712
    %v731 = vpack.c.b16 %v715, %v714
    %748 = vmatprep.subr.bf16.mxu0 0
    %749 = vmatpush1.bf16.msra.mxu0 %v723
    %750 = vmatprep.subr.bf16.mxu0 0
    %751 = vmatpush1.bf16.msra.mxu0 %v722
    %752 = vmatprep.subr.bf16.mxu0 0
    %753 = vmatpush1.bf16.msra.mxu0 %v721
    %754 = vmatprep.subr.bf16.mxu0 0
    %755 = vmatpush1.bf16.msra.mxu0 %v720
    %756 = vmatprep.subr.bf16.mxu0 0
    %757 = vmatpush1.bf16.msra.mxu0 %v719
    %758 = vmatprep.subr.bf16.mxu0 0
    %759 = vmatpush1.bf16.msra.mxu0 %v718
    %760 = vmatprep.subr.bf16.mxu0 0
    %761 = vmatpush1.bf16.msra.mxu0 %v717
    %762 = vmatprep.subr.bf16.mxu0 0
    %763 = vmatpush1.bf16.msra.mxu0 %v716
    %764 = vmatprep.subr.bf16.mxu0 0
    %765 = vmatpush2.bf16.msra.mxu0 %v731
    %766 = vmatprep.subr.bf16.mxu0 0
    %767 = vmatpush2.bf16.msra.mxu0 %v730
    %768 = vmatprep.subr.bf16.mxu0 0
    %769 = vmatpush2.bf16.msra.mxu0 %v729
    %770 = vmatprep.subr.bf16.mxu0 0
    %771 = vmatpush2.bf16.msra.mxu0 %v728
    %772 = vmatprep.subr.bf16.mxu0 0
    %773 = vmatpush2.bf16.msra.mxu0 %v727
    %774 = vmatprep.subr.bf16.mxu0 0
    %775 = vmatpush2.bf16.msra.mxu0 %v726
    %776 = vmatprep.subr.bf16.mxu0 0
    %777 = vmatpush2.bf16.msra.mxu0 %v725
    %778 = vmatprep.subr.bf16.mxu0 0
    %779 = vmatpush2.bf16.msra.mxu0 %v724
    %780 = vmatprep.mubr.bf16.mxu0 %v598
    %781 = vmatmul.mubr.bf16.gmra.mxu0 %v597
    %v782 = vpop.f32.mrf.mxu0
    %v783 = vadd.f32 %v650, %v782
    %v784 = vpop.f32.mrf.mxu0
    %v785 = vpop.f32.mrf.mxu0
    %v786 = vadd.f32 %v650, %v785
    %v787 = vpop.f32.mrf.mxu0
    %788 = vmatprep.mubr.bf16.mxu0 %v600
    %789 = vmatmul.mubr.bf16.gmra.mxu0 %v599
    %v790 = vpop.f32.mrf.mxu0
    %v791 = vadd.f32 %v650, %v790
    %v792 = vpop.f32.mrf.mxu0
    %v793 = vpop.f32.mrf.mxu0
    %v794 = vadd.f32 %v650, %v793
    %v795 = vpop.f32.mrf.mxu0
    %796 = vmatprep.mubr.bf16.mxu0 %v602
    %797 = vmatmul.mubr.bf16.gmra.mxu0 %v601
    %v798 = vpop.f32.mrf.mxu0
    %v799 = vadd.f32 %v650, %v798
    %v800 = vpop.f32.mrf.mxu0
    %v801 = vpop.f32.mrf.mxu0
    %v802 = vadd.f32 %v650, %v801
    %v803 = vpop.f32.mrf.mxu0
    %804 = vmatprep.mubr.bf16.mxu0 %v604
    %805 = vmatmul.mubr.bf16.gmra.mxu0 %v603
    %v806 = vpop.f32.mrf.mxu0
    %v807 = vadd.f32 %v650, %v806
    %v808 = vpop.f32.mrf.mxu0
    %v809 = vpop.f32.mrf.mxu0
    %v810 = vadd.f32 %v650, %v809
    %v811 = vpop.f32.mrf.mxu0
    %812 = vmatprep.mubr.bf16.mxu0 %v606
    %813 = vmatmul.mubr.bf16.gmra.mxu0 %v605
    %v814 = vpop.f32.mrf.mxu0
    %v815 = vadd.f32 %v650, %v814
    %v816 = vpop.f32.mrf.mxu0
    %v817 = vpop.f32.mrf.mxu0
    %v818 = vadd.f32 %v650, %v817
    %v819 = vpop.f32.mrf.mxu0
    %820 = vmatprep.mubr.bf16.mxu0 %v608
    %821 = vmatmul.mubr.bf16.gmra.mxu0 %v607
    %v822 = vpop.f32.mrf.mxu0
    %v823 = vadd.f32 %v650, %v822
    %v824 = vpop.f32.mrf.mxu0
    %v825 = vpop.f32.mrf.mxu0
    %v826 = vadd.f32 %v650, %v825
    %v827 = vpop.f32.mrf.mxu0
    %828 = vmatprep.mubr.bf16.mxu0 %v610
    %829 = vmatmul.mubr.bf16.gmra.mxu0 %v609
    %v830 = vpop.f32.mrf.mxu0
    %v831 = vadd.f32 %v650, %v830
    %v832 = vpop.f32.mrf.mxu0
    %v833 = vpop.f32.mrf.mxu0
    %v834 = vadd.f32 %v650, %v833
    %v835 = vpop.f32.mrf.mxu0
    %836 = vmatprep.mubr.bf16.mxu0 %v612
    %837 = vmatmul.mubr.bf16.gmra.mxu0 %v611
    %v838 = vpop.f32.mrf.mxu0
    %v839 = vadd.f32 %v650, %v838
    %v840 = vpop.f32.mrf.mxu0
    %v841 = vpop.f32.mrf.mxu0
    %v842 = vadd.f32 %v650, %v841
    %v843 = vpop.f32.mrf.mxu0
    %844 = vdwg.mxu0
    %v845 = vmax.f32 %v783, 0.0
    %v846 = vmax.f32 %v786, 0.0
    %v847 = vmax.f32 %v791, 0.0
    %v848 = vmax.f32 %v794, 0.0
    %v849 = vmax.f32 %v799, 0.0
    %v850 = vmax.f32 %v802, 0.0
    %v851 = vmax.f32 %v807, 0.0
    %v852 = vmax.f32 %v810, 0.0
    %v853 = vmax.f32 %v815, 0.0
    %v854 = vmax.f32 %v818, 0.0
    %v855 = vmax.f32 %v823, 0.0
    %v856 = vmax.f32 %v826, 0.0
    %v857 = vmax.f32 %v831, 0.0
    %v858 = vmax.f32 %v834, 0.0
    %v859 = vmax.f32 %v839, 0.0
    %v860 = vmax.f32 %v842, 0.0
    %v861 = vpack.c.bf16 %v846, %v845
    %v862 = vpack.c.bf16 %v848, %v847
    %v863 = vpack.c.bf16 %v850, %v849
    %v864 = vpack.c.bf16 %v852, %v851
    %v865 = vpack.c.bf16 %v854, %v853
    %v866 = vpack.c.bf16 %v856, %v855
    %v867 = vpack.c.bf16 %v858, %v857
    %v868 = vpack.c.bf16 %v860, %v859
    %s869 = scalar_lea.vmem [#allocation7], 128
    %v870 = vld [vmem:[%s869] sm:$0xff]
    %v871 = vld [vmem:[%s869 + $0x8] sm:$0xff]
    %v872 = vld [vmem:[%s869 + $0x10] sm:$0xff]
    %v873 = vld [vmem:[%s869 + $0x18] sm:$0xff]
    %v874 = vld [vmem:[%s869 + $0x20] sm:$0xff]
    %v875 = vld [vmem:[%s869 + $0x28] sm:$0xff]
    %v876 = vld [vmem:[%s869 + $0x30] sm:$0xff]
    %v877 = vld [vmem:[%s869 + $0x38] sm:$0xff]
    %v878 = vld [vmem:[%s869 + $0x40] sm:$0xff]
    %v879 = vld [vmem:[%s869 + $0x48] sm:$0xff]
    %v880 = vld [vmem:[%s869 + $0x50] sm:$0xff]
    %v881 = vld [vmem:[%s869 + $0x58] sm:$0xff]
    %v882 = vld [vmem:[%s869 + $0x60] sm:$0xff]
    %v883 = vld [vmem:[%s869 + $0x68] sm:$0xff]
    %v884 = vld [vmem:[%s869 + $0x70] sm:$0xff]
    %v885 = vld [vmem:[%s869 + $0x78] sm:$0xff]
    %886 = vmatprep.subr.bf16.mxu0 0
    %887 = vmatpush1.bf16.msra.mxu0 %v868
    %888 = vmatprep.subr.bf16.mxu0 0
    %889 = vmatpush1.bf16.msra.mxu0 %v867
    %890 = vmatprep.subr.bf16.mxu0 0
    %891 = vmatpush1.bf16.msra.mxu0 %v866
    %892 = vmatprep.subr.bf16.mxu0 0
    %893 = vmatpush1.bf16.msra.mxu0 %v865
    %894 = vmatprep.subr.bf16.mxu0 0
    %895 = vmatpush1.bf16.msra.mxu0 %v864
    %896 = vmatprep.subr.bf16.mxu0 0
    %897 = vmatpush1.bf16.msra.mxu0 %v863
    %898 = vmatprep.subr.bf16.mxu0 0
    %899 = vmatpush1.bf16.msra.mxu0 %v862
    %900 = vmatprep.subr.bf16.mxu0 0
    %901 = vmatpush1.bf16.msra.mxu0 %v861
    %902 = vmatprep.subr.bf16.mxu0 0
    %903 = vmatpush2.bf16.msra.mxu0 0
    %904 = vmatprep.subr.bf16.mxu0 0
    %905 = vmatpush2.bf16.msra.mxu0 0
    %906 = vmatprep.subr.bf16.mxu0 0
    %907 = vmatpush2.bf16.msra.mxu0 0
    %908 = vmatprep.subr.bf16.mxu0 0
    %909 = vmatpush2.bf16.msra.mxu0 0
    %910 = vmatprep.subr.bf16.mxu0 0
    %911 = vmatpush2.bf16.msra.mxu0 0
    %912 = vmatprep.subr.bf16.mxu0 0
    %913 = vmatpush2.bf16.msra.mxu0 0
    %914 = vmatprep.subr.bf16.mxu0 0
    %915 = vmatpush2.bf16.msra.mxu0 0
    %916 = vmatprep.subr.bf16.mxu0 0
    %917 = vmatpush2.bf16.msra.mxu0 0
    %918 = vmatprep.mubr.bf16.mxu0 0
    %919 = vmatmul.mubr.bf16.gmra.mxu0 %v223
    %v920 = vpop.f32.mrf.mxu0
    %v921 = vadd.f32 %v870, %v920
    %v922 = vpop.f32.mrf.mxu0
    %v923 = vpop.f32.mrf.mxu0
    %v924 = vadd.f32 %v871, %v923
    %v925 = vpop.f32.mrf.mxu0
    %926 = vmatprep.mubr.bf16.mxu0 0
    %927 = vmatmul.mubr.bf16.gmra.mxu0 %v224
    %v928 = vpop.f32.mrf.mxu0
    %v929 = vadd.f32 %v872, %v928
    %v930 = vpop.f32.mrf.mxu0
    %v931 = vpop.f32.mrf.mxu0
    %v932 = vadd.f32 %v873, %v931
    %v933 = vpop.f32.mrf.mxu0
    %934 = vmatprep.mubr.bf16.mxu0 0
    %935 = vmatmul.mubr.bf16.gmra.mxu0 %v225
    %v936 = vpop.f32.mrf.mxu0
    %v937 = vadd.f32 %v874, %v936
    %v938 = vpop.f32.mrf.mxu0
    %v939 = vpop.f32.mrf.mxu0
    %v940 = vadd.f32 %v875, %v939
    %v941 = vpop.f32.mrf.mxu0
    %942 = vmatprep.mubr.bf16.mxu0 0
    %943 = vmatmul.mubr.bf16.gmra.mxu0 %v226
    %v944 = vpop.f32.mrf.mxu0
    %v945 = vadd.f32 %v876, %v944
    %v946 = vpop.f32.mrf.mxu0
    %v947 = vpop.f32.mrf.mxu0
    %v948 = vadd.f32 %v877, %v947
    %v949 = vpop.f32.mrf.mxu0
    %950 = vmatprep.mubr.bf16.mxu0 0
    %951 = vmatmul.mubr.bf16.gmra.mxu0 %v227
    %v952 = vpop.f32.mrf.mxu0
    %v953 = vadd.f32 %v878, %v952
    %v954 = vpop.f32.mrf.mxu0
    %v955 = vpop.f32.mrf.mxu0
    %v956 = vadd.f32 %v879, %v955
    %v957 = vpop.f32.mrf.mxu0
    %958 = vmatprep.mubr.bf16.mxu0 0
    %959 = vmatmul.mubr.bf16.gmra.mxu0 %v228
    %v960 = vpop.f32.mrf.mxu0
    %v961 = vadd.f32 %v880, %v960
    %v962 = vpop.f32.mrf.mxu0
    %v963 = vpop.f32.mrf.mxu0
    %v964 = vadd.f32 %v881, %v963
    %v965 = vpop.f32.mrf.mxu0
    %966 = vmatprep.mubr.bf16.mxu0 0
    %967 = vmatmul.mubr.bf16.gmra.mxu0 %v229
    %v968 = vpop.f32.mrf.mxu0
    %v969 = vadd.f32 %v882, %v968
    %v970 = vpop.f32.mrf.mxu0
    %v971 = vpop.f32.mrf.mxu0
    %v972 = vadd.f32 %v883, %v971
    %v973 = vpop.f32.mrf.mxu0
    %974 = vmatprep.mubr.bf16.mxu0 0
    %975 = vmatmul.mubr.bf16.gmra.mxu0 %v230
    %v976 = vpop.f32.mrf.mxu0
    %v977 = vadd.f32 %v884, %v976
    %v978 = vpop.f32.mrf.mxu0
    %v979 = vpop.f32.mrf.mxu0
    %v980 = vadd.f32 %v885, %v979
    %v981 = vpop.f32.mrf.mxu0
    %982 = vdwg.mxu0
    %v983 = vpack.c.bf16 %v924, %v921
    %v984 = vpack.c.bf16 %v932, %v929
    %v985 = vpack.c.bf16 %v940, %v937
    %v986 = vpack.c.bf16 %v948, %v945
    %v987 = vpack.c.bf16 %v956, %v953
    %v988 = vpack.c.bf16 %v964, %v961
    %v989 = vpack.c.bf16 %v972, %v969
    %v990 = vpack.c.bf16 %v980, %v977
    %s991 = scalar_lea.vmem [#allocation8], 128
    %v992 = vld [vmem:[%s991] sm:$0xff]
    %v993 = vld [vmem:[%s991 + $0x8] sm:$0xff]
    %v994 = vld [vmem:[%s991 + $0x10] sm:$0xff]
    %v995 = vld [vmem:[%s991 + $0x18] sm:$0xff]
    %v996 = vld [vmem:[%s991 + $0x20] sm:$0xff]
    %v997 = vld [vmem:[%s991 + $0x28] sm:$0xff]
    %v998 = vld [vmem:[%s991 + $0x30] sm:$0xff]
    %v999 = vld [vmem:[%s991 + $0x38] sm:$0xff]
    %v1000 = vld [vmem:[%s991 + $0x40] sm:$0xff]
    %v1001 = vld [vmem:[%s991 + $0x48] sm:$0xff]
    %v1002 = vld [vmem:[%s991 + $0x50] sm:$0xff]
    %v1003 = vld [vmem:[%s991 + $0x58] sm:$0xff]
    %v1004 = vld [vmem:[%s991 + $0x60] sm:$0xff]
    %v1005 = vld [vmem:[%s991 + $0x68] sm:$0xff]
    %v1006 = vld [vmem:[%s991 + $0x70] sm:$0xff]
    %v1007 = vld [vmem:[%s991 + $0x78] sm:$0xff]
    %s1008 = scalar_lea.vmem [#allocation10], 2
    %v1009 = vld [vmem:[%s1008] sm:$0x3]
    %v1011 = vlaneseq
    %v1012 = vshrl.u32 %v1011, 7
    %v1013 = vsub.s32 0, %v1012
    %v1014 = vrot.slane %v1009, %v1013
    %v1015 = vlaneseq
    %v1016 = vshrl.u32 %v1015, 7
    %v1017 = vsub.s32 1, %v1016
    %v1018 = vrot.slane %v1009, %v1017
    %v1037 = vunpack.c.l.b16 %v992
    %v1038 = vunpack.c.h.b16 %v992
    %v1039 = vunpack.c.l.b16 %v993
    %v1040 = vunpack.c.h.b16 %v993
    %v1041 = vunpack.c.l.b16 %v994
    %v1042 = vunpack.c.h.b16 %v994
    %v1043 = vunpack.c.l.b16 %v995
    %v1044 = vunpack.c.h.b16 %v995
    %v1045 = vunpack.c.l.b16 %v996
    %v1046 = vunpack.c.h.b16 %v996
    %v1047 = vunpack.c.l.b16 %v997
    %v1048 = vunpack.c.h.b16 %v997
    %v1049 = vunpack.c.l.b16 %v998
    %v1050 = vunpack.c.h.b16 %v998
    %v1051 = vunpack.c.l.b16 %v999
    %v1052 = vunpack.c.h.b16 %v999
    %v1053 = vunpack.c.l.b16 %v1000
    %v1054 = vunpack.c.h.b16 %v1000
    %v1055 = vunpack.c.l.b16 %v1001
    %v1056 = vunpack.c.h.b16 %v1001
    %v1057 = vunpack.c.l.b16 %v1002
    %v1058 = vunpack.c.h.b16 %v1002
    %v1059 = vunpack.c.l.b16 %v1003
    %v1060 = vunpack.c.h.b16 %v1003
    %v1061 = vunpack.c.l.b16 %v1004
    %v1062 = vunpack.c.h.b16 %v1004
    %v1063 = vunpack.c.l.b16 %v1005
    %v1064 = vunpack.c.h.b16 %v1005
    %v1065 = vunpack.c.l.b16 %v1006
    %v1066 = vunpack.c.h.b16 %v1006
    %v1067 = vunpack.c.l.b16 %v1007
    %v1068 = vunpack.c.h.b16 %v1007
    %v1069 = vpack.c.b16 %v1039, %v1037
    %v1070 = vpack.c.b16 %v1040, %v1038
    %v1071 = vpack.c.b16 %v1043, %v1041
    %v1072 = vpack.c.b16 %v1044, %v1042
    %v1073 = vpack.c.b16 %v1047, %v1045
    %v1074 = vpack.c.b16 %v1048, %v1046
    %v1075 = vpack.c.b16 %v1051, %v1049
    %v1076 = vpack.c.b16 %v1052, %v1050
    %v1077 = vpack.c.b16 %v1055, %v1053
    %v1078 = vpack.c.b16 %v1056, %v1054
    %v1079 = vpack.c.b16 %v1059, %v1057
    %v1080 = vpack.c.b16 %v1060, %v1058
    %v1081 = vpack.c.b16 %v1063, %v1061
    %v1082 = vpack.c.b16 %v1064, %v1062
    %v1083 = vpack.c.b16 %v1067, %v1065
    %v1084 = vpack.c.b16 %v1068, %v1066
    %1101 = vmatprep.subr.bf16.mxu0 %v1084
    %1102 = vmatpush1.bf16.msra.mxu0 %v1083
    %1103 = vmatprep.subr.bf16.mxu0 %v1082
    %1104 = vmatpush1.bf16.msra.mxu0 %v1081
    %1105 = vmatprep.subr.bf16.mxu0 %v1080
    %1106 = vmatpush1.bf16.msra.mxu0 %v1079
    %1107 = vmatprep.subr.bf16.mxu0 %v1078
    %1108 = vmatpush1.bf16.msra.mxu0 %v1077
    %1109 = vmatprep.subr.bf16.mxu0 %v1076
    %1110 = vmatpush1.bf16.msra.mxu0 %v1075
    %1111 = vmatprep.subr.bf16.mxu0 %v1074
    %1112 = vmatpush1.bf16.msra.mxu0 %v1073
    %1113 = vmatprep.subr.bf16.mxu0 %v1072
    %1114 = vmatpush1.bf16.msra.mxu0 %v1071
    %1115 = vmatprep.subr.bf16.mxu0 %v1070
    %1116 = vmatpush1.bf16.msra.mxu0 %v1069
    %1117 = vmatprep.subr.bf16.mxu0 0
    %1118 = vmatpush2.bf16.msra.mxu0 0
    %1119 = vmatprep.subr.bf16.mxu0 0
    %1120 = vmatpush2.bf16.msra.mxu0 0
    %1121 = vmatprep.subr.bf16.mxu0 0
    %1122 = vmatpush2.bf16.msra.mxu0 0
    %1123 = vmatprep.subr.bf16.mxu0 0
    %1124 = vmatpush2.bf16.msra.mxu0 0
    %1125 = vmatprep.subr.bf16.mxu0 0
    %1126 = vmatpush2.bf16.msra.mxu0 0
    %1127 = vmatprep.subr.bf16.mxu0 0
    %1128 = vmatpush2.bf16.msra.mxu0 0
    %1129 = vmatprep.subr.bf16.mxu0 0
    %1130 = vmatpush2.bf16.msra.mxu0 0
    %1131 = vmatprep.subr.bf16.mxu0 0
    %1132 = vmatpush2.bf16.msra.mxu0 0
    %1133 = vmatprep.mubr.bf16.mxu0 0
    %1134 = vmatmul.mubr.bf16.gmra.mxu0 %v983
    %v1135 = vpop.f32.mrf.mxu0
    %v1136 = vadd.f32 %v1014, %v1135
    %v1137 = vpop.f32.mrf.mxu0
    %v1138 = vadd.f32 %v1018, %v1137
    %v1139 = vpop.f32.mrf.mxu0
    %v1140 = vadd.f32 %v1014, %v1139
    %v1141 = vpop.f32.mrf.mxu0
    %v1142 = vadd.f32 %v1018, %v1141
    %1143 = vmatprep.mubr.bf16.mxu0 0
    %1144 = vmatmul.mubr.bf16.gmra.mxu0 %v984
    %v1145 = vpop.f32.mrf.mxu0
    %v1146 = vadd.f32 %v1014, %v1145
    %v1147 = vpop.f32.mrf.mxu0
    %v1148 = vadd.f32 %v1018, %v1147
    %v1149 = vpop.f32.mrf.mxu0
    %v1150 = vadd.f32 %v1014, %v1149
    %v1151 = vpop.f32.mrf.mxu0
    %v1152 = vadd.f32 %v1018, %v1151
    %1153 = vmatprep.mubr.bf16.mxu0 0
    %1154 = vmatmul.mubr.bf16.gmra.mxu0 %v985
    %v1155 = vpop.f32.mrf.mxu0
    %v1156 = vadd.f32 %v1014, %v1155
    %v1157 = vpop.f32.mrf.mxu0
    %v1158 = vadd.f32 %v1018, %v1157
    %v1159 = vpop.f32.mrf.mxu0
    %v1160 = vadd.f32 %v1014, %v1159
    %v1161 = vpop.f32.mrf.mxu0
    %v1162 = vadd.f32 %v1018, %v1161
    %1163 = vmatprep.mubr.bf16.mxu0 0
    %1164 = vmatmul.mubr.bf16.gmra.mxu0 %v986
    %v1165 = vpop.f32.mrf.mxu0
    %v1166 = vadd.f32 %v1014, %v1165
    %v1167 = vpop.f32.mrf.mxu0
    %v1168 = vadd.f32 %v1018, %v1167
    %v1169 = vpop.f32.mrf.mxu0
    %v1170 = vadd.f32 %v1014, %v1169
    %v1171 = vpop.f32.mrf.mxu0
    %v1172 = vadd.f32 %v1018, %v1171
    %1173 = vmatprep.mubr.bf16.mxu0 0
    %1174 = vmatmul.mubr.bf16.gmra.mxu0 %v987
    %v1175 = vpop.f32.mrf.mxu0
    %v1176 = vadd.f32 %v1014, %v1175
    %v1177 = vpop.f32.mrf.mxu0
    %v1178 = vadd.f32 %v1018, %v1177
    %v1179 = vpop.f32.mrf.mxu0
    %v1180 = vadd.f32 %v1014, %v1179
    %v1181 = vpop.f32.mrf.mxu0
    %v1182 = vadd.f32 %v1018, %v1181
    %1183 = vmatprep.mubr.bf16.mxu0 0
    %1184 = vmatmul.mubr.bf16.gmra.mxu0 %v988
    %v1185 = vpop.f32.mrf.mxu0
    %v1186 = vadd.f32 %v1014, %v1185
    %v1187 = vpop.f32.mrf.mxu0
    %v1188 = vadd.f32 %v1018, %v1187
    %v1189 = vpop.f32.mrf.mxu0
    %v1190 = vadd.f32 %v1014, %v1189
    %v1191 = vpop.f32.mrf.mxu0
    %v1192 = vadd.f32 %v1018, %v1191
    %1193 = vmatprep.mubr.bf16.mxu0 0
    %1194 = vmatmul.mubr.bf16.gmra.mxu0 %v989
    %v1195 = vpop.f32.mrf.mxu0
    %v1196 = vadd.f32 %v1014, %v1195
    %v1197 = vpop.f32.mrf.mxu0
    %v1198 = vadd.f32 %v1018, %v1197
    %v1199 = vpop.f32.mrf.mxu0
    %v1200 = vadd.f32 %v1014, %v1199
    %v1201 = vpop.f32.mrf.mxu0
    %v1202 = vadd.f32 %v1018, %v1201
    %1203 = vmatprep.mubr.bf16.mxu0 0
    %1204 = vmatmul.mubr.bf16.gmra.mxu0 %v990
    %v1205 = vpop.f32.mrf.mxu0
    %v1206 = vadd.f32 %v1014, %v1205
    %v1207 = vpop.f32.mrf.mxu0
    %v1208 = vadd.f32 %v1018, %v1207
    %v1209 = vpop.f32.mrf.mxu0
    %v1210 = vadd.f32 %v1014, %v1209
    %v1211 = vpop.f32.mrf.mxu0
    %v1212 = vadd.f32 %v1018, %v1211
    %1213 = vdwg.mxu0
    %v1214 = vmax.f32 %v1136, 0.0
    %v1215 = vmax.f32 %v1138, 0.0
    %v1216 = vmax.f32 %v1140, 0.0
    %v1217 = vmax.f32 %v1142, 0.0
    %v1218 = vmax.f32 %v1146, 0.0
    %v1219 = vmax.f32 %v1148, 0.0
    %v1220 = vmax.f32 %v1150, 0.0
    %v1221 = vmax.f32 %v1152, 0.0
    %v1222 = vmax.f32 %v1156, 0.0
    %v1223 = vmax.f32 %v1158, 0.0
    %v1224 = vmax.f32 %v1160, 0.0
    %v1225 = vmax.f32 %v1162, 0.0
    %v1226 = vmax.f32 %v1166, 0.0
    %v1227 = vmax.f32 %v1168, 0.0
    %v1228 = vmax.f32 %v1170, 0.0
    %v1229 = vmax.f32 %v1172, 0.0
    %v1230 = vmax.f32 %v1176, 0.0
    %v1231 = vmax.f32 %v1178, 0.0
    %v1232 = vmax.f32 %v1180, 0.0
    %v1233 = vmax.f32 %v1182, 0.0
    %v1234 = vmax.f32 %v1186, 0.0
    %v1235 = vmax.f32 %v1188, 0.0
    %v1236 = vmax.f32 %v1190, 0.0
    %v1237 = vmax.f32 %v1192, 0.0
    %v1238 = vmax.f32 %v1196, 0.0
    %v1239 = vmax.f32 %v1198, 0.0
    %v1240 = vmax.f32 %v1200, 0.0
    %v1241 = vmax.f32 %v1202, 0.0
    %v1242 = vmax.f32 %v1206, 0.0
    %v1243 = vmax.f32 %v1208, 0.0
    %v1244 = vmax.f32 %v1210, 0.0
    %v1245 = vmax.f32 %v1212, 0.0
    %v1246 = vpack.c.bf16 %v1216, %v1214
    %v1247 = vpack.c.bf16 %v1217, %v1215
    %v1248 = vpack.c.bf16 %v1220, %v1218
    %v1249 = vpack.c.bf16 %v1221, %v1219
    %v1250 = vpack.c.bf16 %v1224, %v1222
    %v1251 = vpack.c.bf16 %v1225, %v1223
    %v1252 = vpack.c.bf16 %v1228, %v1226
    %v1253 = vpack.c.bf16 %v1229, %v1227
    %v1254 = vpack.c.bf16 %v1232, %v1230
    %v1255 = vpack.c.bf16 %v1233, %v1231
    %v1256 = vpack.c.bf16 %v1236, %v1234
    %v1257 = vpack.c.bf16 %v1237, %v1235
    %v1258 = vpack.c.bf16 %v1240, %v1238
    %v1259 = vpack.c.bf16 %v1241, %v1239
    %v1260 = vpack.c.bf16 %v1244, %v1242
    %v1261 = vpack.c.bf16 %v1245, %v1243
    %s1262 = scalar_lea.vmem [#allocation11], 128
    %v1263 = vld [vmem:[%s1262] sm:$0xf]
    %v1264 = vld [vmem:[%s1262 + $0x4] sm:$0xf]
    %v1265 = vld [vmem:[%s1262 + $0x8] sm:$0xf]
    %v1266 = vld [vmem:[%s1262 + $0xc] sm:$0xf]
    %v1267 = vld [vmem:[%s1262 + $0x10] sm:$0xf]
    %v1268 = vld [vmem:[%s1262 + $0x14] sm:$0xf]
    %v1269 = vld [vmem:[%s1262 + $0x18] sm:$0xf]
    %v1270 = vld [vmem:[%s1262 + $0x1c] sm:$0xf]
    %v1271 = vld [vmem:[%s1262 + $0x20] sm:$0xf]
    %v1272 = vld [vmem:[%s1262 + $0x24] sm:$0xf]
    %v1273 = vld [vmem:[%s1262 + $0x28] sm:$0xf]
    %v1274 = vld [vmem:[%s1262 + $0x2c] sm:$0xf]
    %v1275 = vld [vmem:[%s1262 + $0x30] sm:$0xf]
    %v1276 = vld [vmem:[%s1262 + $0x34] sm:$0xf]
    %v1277 = vld [vmem:[%s1262 + $0x38] sm:$0xf]
    %v1278 = vld [vmem:[%s1262 + $0x3c] sm:$0xf]
    %v1279 = vld [vmem:[%s1262 + $0x40] sm:$0xf]
    %v1280 = vld [vmem:[%s1262 + $0x44] sm:$0xf]
    %v1281 = vld [vmem:[%s1262 + $0x48] sm:$0xf]
    %v1282 = vld [vmem:[%s1262 + $0x4c] sm:$0xf]
    %v1283 = vld [vmem:[%s1262 + $0x50] sm:$0xf]
    %v1284 = vld [vmem:[%s1262 + $0x54] sm:$0xf]
    %v1285 = vld [vmem:[%s1262 + $0x58] sm:$0xf]
    %v1286 = vld [vmem:[%s1262 + $0x5c] sm:$0xf]
    %v1287 = vld [vmem:[%s1262 + $0x60] sm:$0xf]
    %v1288 = vld [vmem:[%s1262 + $0x64] sm:$0xf]
    %v1289 = vld [vmem:[%s1262 + $0x68] sm:$0xf]
    %v1290 = vld [vmem:[%s1262 + $0x6c] sm:$0xf]
    %v1291 = vld [vmem:[%s1262 + $0x70] sm:$0xf]
    %v1292 = vld [vmem:[%s1262 + $0x74] sm:$0xf]
    %v1293 = vld [vmem:[%s1262 + $0x78] sm:$0xf]
    %v1294 = vld [vmem:[%s1262 + $0x7c] sm:$0xf]
    %s1295 = scalar_lea.vmem %s6, 1
    %v1296 = vld [vmem:[%s1295] sm:$0x1]
    %v1298 = vlaneseq
    %v1299 = vshrl.u32 %v1298, 7
    %v1300 = vsub.s32 0, %v1299
    %v1301 = vrot.slane %v1296, %v1300
    %v1335 = vunpack.c.l.b16 %v1263
    %v1336 = vunpack.c.l.b16 %v1264
    %v1337 = vunpack.c.l.b16 %v1265
    %v1338 = vunpack.c.l.b16 %v1266
    %v1339 = vunpack.c.l.b16 %v1267
    %v1340 = vunpack.c.l.b16 %v1268
    %v1341 = vunpack.c.l.b16 %v1269
    %v1342 = vunpack.c.l.b16 %v1270
    %v1343 = vunpack.c.l.b16 %v1271
    %v1344 = vunpack.c.l.b16 %v1272
    %v1345 = vunpack.c.l.b16 %v1273
    %v1346 = vunpack.c.l.b16 %v1274
    %v1347 = vunpack.c.l.b16 %v1275
    %v1348 = vunpack.c.l.b16 %v1276
    %v1349 = vunpack.c.l.b16 %v1277
    %v1350 = vunpack.c.l.b16 %v1278
    %v1351 = vunpack.c.l.b16 %v1279
    %v1352 = vunpack.c.l.b16 %v1280
    %v1353 = vunpack.c.l.b16 %v1281
    %v1354 = vunpack.c.l.b16 %v1282
    %v1355 = vunpack.c.l.b16 %v1283
    %v1356 = vunpack.c.l.b16 %v1284
    %v1357 = vunpack.c.l.b16 %v1285
    %v1358 = vunpack.c.l.b16 %v1286
    %v1359 = vunpack.c.l.b16 %v1287
    %v1360 = vunpack.c.l.b16 %v1288
    %v1361 = vunpack.c.l.b16 %v1289
    %v1362 = vunpack.c.l.b16 %v1290
    %v1363 = vunpack.c.l.b16 %v1291
    %v1364 = vunpack.c.l.b16 %v1292
    %v1365 = vunpack.c.l.b16 %v1293
    %v1366 = vunpack.c.l.b16 %v1294
    %v1367 = vpack.c.b16 %v1336, %v1335
    %v1368 = vpack.c.b16 %v1338, %v1337
    %v1369 = vpack.c.b16 %v1340, %v1339
    %v1370 = vpack.c.b16 %v1342, %v1341
    %v1371 = vpack.c.b16 %v1344, %v1343
    %v1372 = vpack.c.b16 %v1346, %v1345
    %v1373 = vpack.c.b16 %v1348, %v1347
    %v1374 = vpack.c.b16 %v1350, %v1349
    %v1375 = vpack.c.b16 %v1352, %v1351
    %v1376 = vpack.c.b16 %v1354, %v1353
    %v1377 = vpack.c.b16 %v1356, %v1355
    %v1378 = vpack.c.b16 %v1358, %v1357
    %v1379 = vpack.c.b16 %v1360, %v1359
    %v1380 = vpack.c.b16 %v1362, %v1361
    %v1381 = vpack.c.b16 %v1364, %v1363
    %v1382 = vpack.c.b16 %v1366, %v1365
    %1399 = vmatprep.subr.bf16.mxu0 0
    %1400 = vmatpush1.bf16.msra.mxu0 %v1374
    %1401 = vmatprep.subr.bf16.mxu0 0
    %1402 = vmatpush1.bf16.msra.mxu0 %v1373
    %1403 = vmatprep.subr.bf16.mxu0 0
    %1404 = vmatpush1.bf16.msra.mxu0 %v1372
    %1405 = vmatprep.subr.bf16.mxu0 0
    %1406 = vmatpush1.bf16.msra.mxu0 %v1371
    %1407 = vmatprep.subr.bf16.mxu0 0
    %1408 = vmatpush1.bf16.msra.mxu0 %v1370
    %1409 = vmatprep.subr.bf16.mxu0 0
    %1410 = vmatpush1.bf16.msra.mxu0 %v1369
    %1411 = vmatprep.subr.bf16.mxu0 0
    %1412 = vmatpush1.bf16.msra.mxu0 %v1368
    %1413 = vmatprep.subr.bf16.mxu0 0
    %1414 = vmatpush1.bf16.msra.mxu0 %v1367
    %1415 = vmatprep.subr.bf16.mxu0 0
    %1416 = vmatpush2.bf16.msra.mxu0 %v1382
    %1417 = vmatprep.subr.bf16.mxu0 0
    %1418 = vmatpush2.bf16.msra.mxu0 %v1381
    %1419 = vmatprep.subr.bf16.mxu0 0
    %1420 = vmatpush2.bf16.msra.mxu0 %v1380
    %1421 = vmatprep.subr.bf16.mxu0 0
    %1422 = vmatpush2.bf16.msra.mxu0 %v1379
    %1423 = vmatprep.subr.bf16.mxu0 0
    %1424 = vmatpush2.bf16.msra.mxu0 %v1378
    %1425 = vmatprep.subr.bf16.mxu0 0
    %1426 = vmatpush2.bf16.msra.mxu0 %v1377
    %1427 = vmatprep.subr.bf16.mxu0 0
    %1428 = vmatpush2.bf16.msra.mxu0 %v1376
    %1429 = vmatprep.subr.bf16.mxu0 0
    %1430 = vmatpush2.bf16.msra.mxu0 %v1375
    %1431 = vmatprep.mubr.bf16.mxu0 %v1247
    %1432 = vmatmul.mubr.bf16.gmra.mxu0 %v1246
    %v1433 = vpop.f32.mrf.mxu0
    %v1434 = vadd.f32 %v1301, %v1433
    %v1435 = vpop.f32.mrf.mxu0
    %v1436 = vpop.f32.mrf.mxu0
    %v1437 = vadd.f32 %v1301, %v1436
    %v1438 = vpop.f32.mrf.mxu0
    %1439 = vmatprep.mubr.bf16.mxu0 %v1249
    %1440 = vmatmul.mubr.bf16.gmra.mxu0 %v1248
    %v1441 = vpop.f32.mrf.mxu0
    %v1442 = vadd.f32 %v1301, %v1441
    %v1443 = vpop.f32.mrf.mxu0
    %v1444 = vpop.f32.mrf.mxu0
    %v1445 = vadd.f32 %v1301, %v1444
    %v1446 = vpop.f32.mrf.mxu0
    %1447 = vmatprep.mubr.bf16.mxu0 %v1251
    %1448 = vmatmul.mubr.bf16.gmra.mxu0 %v1250
    %v1449 = vpop.f32.mrf.mxu0
    %v1450 = vadd.f32 %v1301, %v1449
    %v1451 = vpop.f32.mrf.mxu0
    %v1452 = vpop.f32.mrf.mxu0
    %v1453 = vadd.f32 %v1301, %v1452
    %v1454 = vpop.f32.mrf.mxu0
    %1455 = vmatprep.mubr.bf16.mxu0 %v1253
    %1456 = vmatmul.mubr.bf16.gmra.mxu0 %v1252
    %v1457 = vpop.f32.mrf.mxu0
    %v1458 = vadd.f32 %v1301, %v1457
    %v1459 = vpop.f32.mrf.mxu0
    %v1460 = vpop.f32.mrf.mxu0
    %v1461 = vadd.f32 %v1301, %v1460
    %v1462 = vpop.f32.mrf.mxu0
    %1463 = vmatprep.mubr.bf16.mxu0 %v1255
    %1464 = vmatmul.mubr.bf16.gmra.mxu0 %v1254
    %v1465 = vpop.f32.mrf.mxu0
    %v1466 = vadd.f32 %v1301, %v1465
    %v1467 = vpop.f32.mrf.mxu0
    %v1468 = vpop.f32.mrf.mxu0
    %v1469 = vadd.f32 %v1301, %v1468
    %v1470 = vpop.f32.mrf.mxu0
    %1471 = vmatprep.mubr.bf16.mxu0 %v1257
    %1472 = vmatmul.mubr.bf16.gmra.mxu0 %v1256
    %v1473 = vpop.f32.mrf.mxu0
    %v1474 = vadd.f32 %v1301, %v1473
    %v1475 = vpop.f32.mrf.mxu0
    %v1476 = vpop.f32.mrf.mxu0
    %v1477 = vadd.f32 %v1301, %v1476
    %v1478 = vpop.f32.mrf.mxu0
    %1479 = vmatprep.mubr.bf16.mxu0 %v1259
    %1480 = vmatmul.mubr.bf16.gmra.mxu0 %v1258
    %v1481 = vpop.f32.mrf.mxu0
    %v1482 = vadd.f32 %v1301, %v1481
    %v1483 = vpop.f32.mrf.mxu0
    %v1484 = vpop.f32.mrf.mxu0
    %v1485 = vadd.f32 %v1301, %v1484
    %v1486 = vpop.f32.mrf.mxu0
    %1487 = vmatprep.mubr.bf16.mxu0 %v1261
    %1488 = vmatmul.mubr.bf16.gmra.mxu0 %v1260
    %v1489 = vpop.f32.mrf.mxu0
    %v1490 = vadd.f32 %v1301, %v1489
    %v1491 = vpop.f32.mrf.mxu0
    %v1492 = vpop.f32.mrf.mxu0
    %v1493 = vadd.f32 %v1301, %v1492
    %v1494 = vpop.f32.mrf.mxu0
    %1495 = vdwg.mxu0
    %v1496 = vmax.f32 %v1434, 0.0
    %v1497 = vmax.f32 %v1437, 0.0
    %v1498 = vmax.f32 %v1442, 0.0
    %v1499 = vmax.f32 %v1445, 0.0
    %v1500 = vmax.f32 %v1450, 0.0
    %v1501 = vmax.f32 %v1453, 0.0
    %v1502 = vmax.f32 %v1458, 0.0
    %v1503 = vmax.f32 %v1461, 0.0
    %v1504 = vmax.f32 %v1466, 0.0
    %v1505 = vmax.f32 %v1469, 0.0
    %v1506 = vmax.f32 %v1474, 0.0
    %v1507 = vmax.f32 %v1477, 0.0
    %v1508 = vmax.f32 %v1482, 0.0
    %v1509 = vmax.f32 %v1485, 0.0
    %v1510 = vmax.f32 %v1490, 0.0
    %v1511 = vmax.f32 %v1493, 0.0
    %v1512 = vpack.c.bf16 %v1497, %v1496
    %v1513 = vpack.c.bf16 %v1499, %v1498
    %v1514 = vpack.c.bf16 %v1501, %v1500
    %v1515 = vpack.c.bf16 %v1503, %v1502
    %v1516 = vpack.c.bf16 %v1505, %v1504
    %v1517 = vpack.c.bf16 %v1507, %v1506
    %v1518 = vpack.c.bf16 %v1509, %v1508
    %v1519 = vpack.c.bf16 %v1511, %v1510
    %s1520 = scalar_lea.vmem [#allocation7], 256
    %v1521 = vld [vmem:[%s1520] sm:$0xff]
    %v1522 = vld [vmem:[%s1520 + $0x8] sm:$0xff]
    %v1523 = vld [vmem:[%s1520 + $0x10] sm:$0xff]
    %v1524 = vld [vmem:[%s1520 + $0x18] sm:$0xff]
    %v1525 = vld [vmem:[%s1520 + $0x20] sm:$0xff]
    %v1526 = vld [vmem:[%s1520 + $0x28] sm:$0xff]
    %v1527 = vld [vmem:[%s1520 + $0x30] sm:$0xff]
    %v1528 = vld [vmem:[%s1520 + $0x38] sm:$0xff]
    %v1529 = vld [vmem:[%s1520 + $0x40] sm:$0xff]
    %v1530 = vld [vmem:[%s1520 + $0x48] sm:$0xff]
    %v1531 = vld [vmem:[%s1520 + $0x50] sm:$0xff]
    %v1532 = vld [vmem:[%s1520 + $0x58] sm:$0xff]
    %v1533 = vld [vmem:[%s1520 + $0x60] sm:$0xff]
    %v1534 = vld [vmem:[%s1520 + $0x68] sm:$0xff]
    %v1535 = vld [vmem:[%s1520 + $0x70] sm:$0xff]
    %v1536 = vld [vmem:[%s1520 + $0x78] sm:$0xff]
    %1537 = vmatprep.subr.bf16.mxu0 0
    %1538 = vmatpush1.bf16.msra.mxu0 %v1519
    %1539 = vmatprep.subr.bf16.mxu0 0
    %1540 = vmatpush1.bf16.msra.mxu0 %v1518
    %1541 = vmatprep.subr.bf16.mxu0 0
    %1542 = vmatpush1.bf16.msra.mxu0 %v1517
    %1543 = vmatprep.subr.bf16.mxu0 0
    %1544 = vmatpush1.bf16.msra.mxu0 %v1516
    %1545 = vmatprep.subr.bf16.mxu0 0
    %1546 = vmatpush1.bf16.msra.mxu0 %v1515
    %1547 = vmatprep.subr.bf16.mxu0 0
    %1548 = vmatpush1.bf16.msra.mxu0 %v1514
    %1549 = vmatprep.subr.bf16.mxu0 0
    %1550 = vmatpush1.bf16.msra.mxu0 %v1513
    %1551 = vmatprep.subr.bf16.mxu0 0
    %1552 = vmatpush1.bf16.msra.mxu0 %v1512
    %1553 = vmatprep.subr.bf16.mxu0 0
    %1554 = vmatpush2.bf16.msra.mxu0 0
    %1555 = vmatprep.subr.bf16.mxu0 0
    %1556 = vmatpush2.bf16.msra.mxu0 0
    %1557 = vmatprep.subr.bf16.mxu0 0
    %1558 = vmatpush2.bf16.msra.mxu0 0
    %1559 = vmatprep.subr.bf16.mxu0 0
    %1560 = vmatpush2.bf16.msra.mxu0 0
    %1561 = vmatprep.subr.bf16.mxu0 0
    %1562 = vmatpush2.bf16.msra.mxu0 0
    %1563 = vmatprep.subr.bf16.mxu0 0
    %1564 = vmatpush2.bf16.msra.mxu0 0
    %1565 = vmatprep.subr.bf16.mxu0 0
    %1566 = vmatpush2.bf16.msra.mxu0 0
    %1567 = vmatprep.subr.bf16.mxu0 0
    %1568 = vmatpush2.bf16.msra.mxu0 0
    %1569 = vmatprep.mubr.bf16.mxu0 0
    %1570 = vmatmul.mubr.bf16.gmra.mxu0 %v223
    %v1571 = vpop.f32.mrf.mxu0
    %v1572 = vadd.f32 %v1521, %v1571
    %v1573 = vpop.f32.mrf.mxu0
    %v1574 = vpop.f32.mrf.mxu0
    %v1575 = vadd.f32 %v1522, %v1574
    %v1576 = vpop.f32.mrf.mxu0
    %1577 = vmatprep.mubr.bf16.mxu0 0
    %1578 = vmatmul.mubr.bf16.gmra.mxu0 %v224
    %v1579 = vpop.f32.mrf.mxu0
    %v1580 = vadd.f32 %v1523, %v1579
    %v1581 = vpop.f32.mrf.mxu0
    %v1582 = vpop.f32.mrf.mxu0
    %v1583 = vadd.f32 %v1524, %v1582
    %v1584 = vpop.f32.mrf.mxu0
    %1585 = vmatprep.mubr.bf16.mxu0 0
    %1586 = vmatmul.mubr.bf16.gmra.mxu0 %v225
    %v1587 = vpop.f32.mrf.mxu0
    %v1588 = vadd.f32 %v1525, %v1587
    %v1589 = vpop.f32.mrf.mxu0
    %v1590 = vpop.f32.mrf.mxu0
    %v1591 = vadd.f32 %v1526, %v1590
    %v1592 = vpop.f32.mrf.mxu0
    %1593 = vmatprep.mubr.bf16.mxu0 0
    %1594 = vmatmul.mubr.bf16.gmra.mxu0 %v226
    %v1595 = vpop.f32.mrf.mxu0
    %v1596 = vadd.f32 %v1527, %v1595
    %v1597 = vpop.f32.mrf.mxu0
    %v1598 = vpop.f32.mrf.mxu0
    %v1599 = vadd.f32 %v1528, %v1598
    %v1600 = vpop.f32.mrf.mxu0
    %1601 = vmatprep.mubr.bf16.mxu0 0
    %1602 = vmatmul.mubr.bf16.gmra.mxu0 %v227
    %v1603 = vpop.f32.mrf.mxu0
    %v1604 = vadd.f32 %v1529, %v1603
    %v1605 = vpop.f32.mrf.mxu0
    %v1606 = vpop.f32.mrf.mxu0
    %v1607 = vadd.f32 %v1530, %v1606
    %v1608 = vpop.f32.mrf.mxu0
    %1609 = vmatprep.mubr.bf16.mxu0 0
    %1610 = vmatmul.mubr.bf16.gmra.mxu0 %v228
    %v1611 = vpop.f32.mrf.mxu0
    %v1612 = vadd.f32 %v1531, %v1611
    %v1613 = vpop.f32.mrf.mxu0
    %v1614 = vpop.f32.mrf.mxu0
    %v1615 = vadd.f32 %v1532, %v1614
    %v1616 = vpop.f32.mrf.mxu0
    %1617 = vmatprep.mubr.bf16.mxu0 0
    %1618 = vmatmul.mubr.bf16.gmra.mxu0 %v229
    %v1619 = vpop.f32.mrf.mxu0
    %v1620 = vadd.f32 %v1533, %v1619
    %v1621 = vpop.f32.mrf.mxu0
    %v1622 = vpop.f32.mrf.mxu0
    %v1623 = vadd.f32 %v1534, %v1622
    %v1624 = vpop.f32.mrf.mxu0
    %1625 = vmatprep.mubr.bf16.mxu0 0
    %1626 = vmatmul.mubr.bf16.gmra.mxu0 %v230
    %v1627 = vpop.f32.mrf.mxu0
    %v1628 = vadd.f32 %v1535, %v1627
    %v1629 = vpop.f32.mrf.mxu0
    %v1630 = vpop.f32.mrf.mxu0
    %v1631 = vadd.f32 %v1536, %v1630
    %v1632 = vpop.f32.mrf.mxu0
    %1633 = vdwg.mxu0
    %v1634 = vpack.c.bf16 %v1575, %v1572
    %v1635 = vpack.c.bf16 %v1583, %v1580
    %v1636 = vpack.c.bf16 %v1591, %v1588
    %v1637 = vpack.c.bf16 %v1599, %v1596
    %v1638 = vpack.c.bf16 %v1607, %v1604
    %v1639 = vpack.c.bf16 %v1615, %v1612
    %v1640 = vpack.c.bf16 %v1623, %v1620
    %v1641 = vpack.c.bf16 %v1631, %v1628
    %s1642 = scalar_lea.vmem [#allocation8], 256
    %v1643 = vld [vmem:[%s1642] sm:$0xff]
    %v1644 = vld [vmem:[%s1642 + $0x8] sm:$0xff]
    %v1645 = vld [vmem:[%s1642 + $0x10] sm:$0xff]
    %v1646 = vld [vmem:[%s1642 + $0x18] sm:$0xff]
    %v1647 = vld [vmem:[%s1642 + $0x20] sm:$0xff]
    %v1648 = vld [vmem:[%s1642 + $0x28] sm:$0xff]
    %v1649 = vld [vmem:[%s1642 + $0x30] sm:$0xff]
    %v1650 = vld [vmem:[%s1642 + $0x38] sm:$0xff]
    %v1651 = vld [vmem:[%s1642 + $0x40] sm:$0xff]
    %v1652 = vld [vmem:[%s1642 + $0x48] sm:$0xff]
    %v1653 = vld [vmem:[%s1642 + $0x50] sm:$0xff]
    %v1654 = vld [vmem:[%s1642 + $0x58] sm:$0xff]
    %v1655 = vld [vmem:[%s1642 + $0x60] sm:$0xff]
    %v1656 = vld [vmem:[%s1642 + $0x68] sm:$0xff]
    %v1657 = vld [vmem:[%s1642 + $0x70] sm:$0xff]
    %v1658 = vld [vmem:[%s1642 + $0x78] sm:$0xff]
    %s1659 = scalar_lea.vmem [#allocation10], 4
    %v1660 = vld [vmem:[%s1659] sm:$0x3]
    %v1662 = vlaneseq
    %v1663 = vshrl.u32 %v1662, 7
    %v1664 = vsub.s32 0, %v1663
    %v1665 = vrot.slane %v1660, %v1664
    %v1666 = vlaneseq
    %v1667 = vshrl.u32 %v1666, 7
    %v1668 = vsub.s32 1, %v1667
    %v1669 = vrot.slane %v1660, %v1668
    %v1688 = vunpack.c.l.b16 %v1643
    %v1689 = vunpack.c.h.b16 %v1643
    %v1690 = vunpack.c.l.b16 %v1644
    %v1691 = vunpack.c.h.b16 %v1644
    %v1692 = vunpack.c.l.b16 %v1645
    %v1693 = vunpack.c.h.b16 %v1645
    %v1694 = vunpack.c.l.b16 %v1646
    %v1695 = vunpack.c.h.b16 %v1646
    %v1696 = vunpack.c.l.b16 %v1647
    %v1697 = vunpack.c.h.b16 %v1647
    %v1698 = vunpack.c.l.b16 %v1648
    %v1699 = vunpack.c.h.b16 %v1648
    %v1700 = vunpack.c.l.b16 %v1649
    %v1701 = vunpack.c.h.b16 %v1649
    %v1702 = vunpack.c.l.b16 %v1650
    %v1703 = vunpack.c.h.b16 %v1650
    %v1704 = vunpack.c.l.b16 %v1651
    %v1705 = vunpack.c.h.b16 %v1651
    %v1706 = vunpack.c.l.b16 %v1652
    %v1707 = vunpack.c.h.b16 %v1652
    %v1708 = vunpack.c.l.b16 %v1653
    %v1709 = vunpack.c.h.b16 %v1653
    %v1710 = vunpack.c.l.b16 %v1654
    %v1711 = vunpack.c.h.b16 %v1654
    %v1712 = vunpack.c.l.b16 %v1655
    %v1713 = vunpack.c.h.b16 %v1655
    %v1714 = vunpack.c.l.b16 %v1656
    %v1715 = vunpack.c.h.b16 %v1656
    %v1716 = vunpack.c.l.b16 %v1657
    %v1717 = vunpack.c.h.b16 %v1657
    %v1718 = vunpack.c.l.b16 %v1658
    %v1719 = vunpack.c.h.b16 %v1658
    %v1720 = vpack.c.b16 %v1690, %v1688
    %v1721 = vpack.c.b16 %v1691, %v1689
    %v1722 = vpack.c.b16 %v1694, %v1692
    %v1723 = vpack.c.b16 %v1695, %v1693
    %v1724 = vpack.c.b16 %v1698, %v1696
    %v1725 = vpack.c.b16 %v1699, %v1697
    %v1726 = vpack.c.b16 %v1702, %v1700
    %v1727 = vpack.c.b16 %v1703, %v1701
    %v1728 = vpack.c.b16 %v1706, %v1704
    %v1729 = vpack.c.b16 %v1707, %v1705
    %v1730 = vpack.c.b16 %v1710, %v1708
    %v1731 = vpack.c.b16 %v1711, %v1709
    %v1732 = vpack.c.b16 %v1714, %v1712
    %v1733 = vpack.c.b16 %v1715, %v1713
    %v1734 = vpack.c.b16 %v1718, %v1716
    %v1735 = vpack.c.b16 %v1719, %v1717
    %1752 = vmatprep.subr.bf16.mxu0 %v1735
    %1753 = vmatpush1.bf16.msra.mxu0 %v1734
    %1754 = vmatprep.subr.bf16.mxu0 %v1733
    %1755 = vmatpush1.bf16.msra.mxu0 %v1732
    %1756 = vmatprep.subr.bf16.mxu0 %v1731
    %1757 = vmatpush1.bf16.msra.mxu0 %v1730
    %1758 = vmatprep.subr.bf16.mxu0 %v1729
    %1759 = vmatpush1.bf16.msra.mxu0 %v1728
    %1760 = vmatprep.subr.bf16.mxu0 %v1727
    %1761 = vmatpush1.bf16.msra.mxu0 %v1726
    %1762 = vmatprep.subr.bf16.mxu0 %v1725
    %1763 = vmatpush1.bf16.msra.mxu0 %v1724
    %1764 = vmatprep.subr.bf16.mxu0 %v1723
    %1765 = vmatpush1.bf16.msra.mxu0 %v1722
    %1766 = vmatprep.subr.bf16.mxu0 %v1721
    %1767 = vmatpush1.bf16.msra.mxu0 %v1720
    %1768 = vmatprep.subr.bf16.mxu0 0
    %1769 = vmatpush2.bf16.msra.mxu0 0
    %1770 = vmatprep.subr.bf16.mxu0 0
    %1771 = vmatpush2.bf16.msra.mxu0 0
    %1772 = vmatprep.subr.bf16.mxu0 0
    %1773 = vmatpush2.bf16.msra.mxu0 0
    %1774 = vmatprep.subr.bf16.mxu0 0
    %1775 = vmatpush2.bf16.msra.mxu0 0
    %1776 = vmatprep.subr.bf16.mxu0 0
    %1777 = vmatpush2.bf16.msra.mxu0 0
    %1778 = vmatprep.subr.bf16.mxu0 0
    %1779 = vmatpush2.bf16.msra.mxu0 0
    %1780 = vmatprep.subr.bf16.mxu0 0
    %1781 = vmatpush2.bf16.msra.mxu0 0
    %1782 = vmatprep.subr.bf16.mxu0 0
    %1783 = vmatpush2.bf16.msra.mxu0 0
    %1784 = vmatprep.mubr.bf16.mxu0 0
    %1785 = vmatmul.mubr.bf16.gmra.mxu0 %v1634
    %v1786 = vpop.f32.mrf.mxu0
    %v1787 = vadd.f32 %v1665, %v1786
    %v1788 = vpop.f32.mrf.mxu0
    %v1789 = vadd.f32 %v1669, %v1788
    %v1790 = vpop.f32.mrf.mxu0
    %v1791 = vadd.f32 %v1665, %v1790
    %v1792 = vpop.f32.mrf.mxu0
    %v1793 = vadd.f32 %v1669, %v1792
    %1794 = vmatprep.mubr.bf16.mxu0 0
    %1795 = vmatmul.mubr.bf16.gmra.mxu0 %v1635
    %v1796 = vpop.f32.mrf.mxu0
    %v1797 = vadd.f32 %v1665, %v1796
    %v1798 = vpop.f32.mrf.mxu0
    %v1799 = vadd.f32 %v1669, %v1798
    %v1800 = vpop.f32.mrf.mxu0
    %v1801 = vadd.f32 %v1665, %v1800
    %v1802 = vpop.f32.mrf.mxu0
    %v1803 = vadd.f32 %v1669, %v1802
    %1804 = vmatprep.mubr.bf16.mxu0 0
    %1805 = vmatmul.mubr.bf16.gmra.mxu0 %v1636
    %v1806 = vpop.f32.mrf.mxu0
    %v1807 = vadd.f32 %v1665, %v1806
    %v1808 = vpop.f32.mrf.mxu0
    %v1809 = vadd.f32 %v1669, %v1808
    %v1810 = vpop.f32.mrf.mxu0
    %v1811 = vadd.f32 %v1665, %v1810
    %v1812 = vpop.f32.mrf.mxu0
    %v1813 = vadd.f32 %v1669, %v1812
    %1814 = vmatprep.mubr.bf16.mxu0 0
    %1815 = vmatmul.mubr.bf16.gmra.mxu0 %v1637
    %v1816 = vpop.f32.mrf.mxu0
    %v1817 = vadd.f32 %v1665, %v1816
    %v1818 = vpop.f32.mrf.mxu0
    %v1819 = vadd.f32 %v1669, %v1818
    %v1820 = vpop.f32.mrf.mxu0
    %v1821 = vadd.f32 %v1665, %v1820
    %v1822 = vpop.f32.mrf.mxu0
    %v1823 = vadd.f32 %v1669, %v1822
    %1824 = vmatprep.mubr.bf16.mxu0 0
    %1825 = vmatmul.mubr.bf16.gmra.mxu0 %v1638
    %v1826 = vpop.f32.mrf.mxu0
    %v1827 = vadd.f32 %v1665, %v1826
    %v1828 = vpop.f32.mrf.mxu0
    %v1829 = vadd.f32 %v1669, %v1828
    %v1830 = vpop.f32.mrf.mxu0
    %v1831 = vadd.f32 %v1665, %v1830
    %v1832 = vpop.f32.mrf.mxu0
    %v1833 = vadd.f32 %v1669, %v1832
    %1834 = vmatprep.mubr.bf16.mxu0 0
    %1835 = vmatmul.mubr.bf16.gmra.mxu0 %v1639
    %v1836 = vpop.f32.mrf.mxu0
    %v1837 = vadd.f32 %v1665, %v1836
    %v1838 = vpop.f32.mrf.mxu0
    %v1839 = vadd.f32 %v1669, %v1838
    %v1840 = vpop.f32.mrf.mxu0
    %v1841 = vadd.f32 %v1665, %v1840
    %v1842 = vpop.f32.mrf.mxu0
    %v1843 = vadd.f32 %v1669, %v1842
    %1844 = vmatprep.mubr.bf16.mxu0 0
    %1845 = vmatmul.mubr.bf16.gmra.mxu0 %v1640
    %v1846 = vpop.f32.mrf.mxu0
    %v1847 = vadd.f32 %v1665, %v1846
    %v1848 = vpop.f32.mrf.mxu0
    %v1849 = vadd.f32 %v1669, %v1848
    %v1850 = vpop.f32.mrf.mxu0
    %v1851 = vadd.f32 %v1665, %v1850
    %v1852 = vpop.f32.mrf.mxu0
    %v1853 = vadd.f32 %v1669, %v1852
    %1854 = vmatprep.mubr.bf16.mxu0 0
    %1855 = vmatmul.mubr.bf16.gmra.mxu0 %v1641
    %v1856 = vpop.f32.mrf.mxu0
    %v1857 = vadd.f32 %v1665, %v1856
    %v1858 = vpop.f32.mrf.mxu0
    %v1859 = vadd.f32 %v1669, %v1858
    %v1860 = vpop.f32.mrf.mxu0
    %v1861 = vadd.f32 %v1665, %v1860
    %v1862 = vpop.f32.mrf.mxu0
    %v1863 = vadd.f32 %v1669, %v1862
    %1864 = vdwg.mxu0
    %v1865 = vmax.f32 %v1787, 0.0
    %v1866 = vmax.f32 %v1789, 0.0
    %v1867 = vmax.f32 %v1791, 0.0
    %v1868 = vmax.f32 %v1793, 0.0
    %v1869 = vmax.f32 %v1797, 0.0
    %v1870 = vmax.f32 %v1799, 0.0
    %v1871 = vmax.f32 %v1801, 0.0
    %v1872 = vmax.f32 %v1803, 0.0
    %v1873 = vmax.f32 %v1807, 0.0
    %v1874 = vmax.f32 %v1809, 0.0
    %v1875 = vmax.f32 %v1811, 0.0
    %v1876 = vmax.f32 %v1813, 0.0
    %v1877 = vmax.f32 %v1817, 0.0
    %v1878 = vmax.f32 %v1819, 0.0
    %v1879 = vmax.f32 %v1821, 0.0
    %v1880 = vmax.f32 %v1823, 0.0
    %v1881 = vmax.f32 %v1827, 0.0
    %v1882 = vmax.f32 %v1829, 0.0
    %v1883 = vmax.f32 %v1831, 0.0
    %v1884 = vmax.f32 %v1833, 0.0
    %v1885 = vmax.f32 %v1837, 0.0
    %v1886 = vmax.f32 %v1839, 0.0
    %v1887 = vmax.f32 %v1841, 0.0
    %v1888 = vmax.f32 %v1843, 0.0
    %v1889 = vmax.f32 %v1847, 0.0
    %v1890 = vmax.f32 %v1849, 0.0
    %v1891 = vmax.f32 %v1851, 0.0
    %v1892 = vmax.f32 %v1853, 0.0
    %v1893 = vmax.f32 %v1857, 0.0
    %v1894 = vmax.f32 %v1859, 0.0
    %v1895 = vmax.f32 %v1861, 0.0
    %v1896 = vmax.f32 %v1863, 0.0
    %v1897 = vpack.c.bf16 %v1867, %v1865
    %v1898 = vpack.c.bf16 %v1868, %v1866
    %v1899 = vpack.c.bf16 %v1871, %v1869
    %v1900 = vpack.c.bf16 %v1872, %v1870
    %v1901 = vpack.c.bf16 %v1875, %v1873
    %v1902 = vpack.c.bf16 %v1876, %v1874
    %v1903 = vpack.c.bf16 %v1879, %v1877
    %v1904 = vpack.c.bf16 %v1880, %v1878
    %v1905 = vpack.c.bf16 %v1883, %v1881
    %v1906 = vpack.c.bf16 %v1884, %v1882
    %v1907 = vpack.c.bf16 %v1887, %v1885
    %v1908 = vpack.c.bf16 %v1888, %v1886
    %v1909 = vpack.c.bf16 %v1891, %v1889
    %v1910 = vpack.c.bf16 %v1892, %v1890
    %v1911 = vpack.c.bf16 %v1895, %v1893
    %v1912 = vpack.c.bf16 %v1896, %v1894
    %s1913 = scalar_lea.vmem [#allocation11], 256
    %v1914 = vld [vmem:[%s1913] sm:$0xf]
    %v1915 = vld [vmem:[%s1913 + $0x4] sm:$0xf]
    %v1916 = vld [vmem:[%s1913 + $0x8] sm:$0xf]
    %v1917 = vld [vmem:[%s1913 + $0xc] sm:$0xf]
    %v1918 = vld [vmem:[%s1913 + $0x10] sm:$0xf]
    %v1919 = vld [vmem:[%s1913 + $0x14] sm:$0xf]
    %v1920 = vld [vmem:[%s1913 + $0x18] sm:$0xf]
    %v1921 = vld [vmem:[%s1913 + $0x1c] sm:$0xf]
    %v1922 = vld [vmem:[%s1913 + $0x20] sm:$0xf]
    %v1923 = vld [vmem:[%s1913 + $0x24] sm:$0xf]
    %v1924 = vld [vmem:[%s1913 + $0x28] sm:$0xf]
    %v1925 = vld [vmem:[%s1913 + $0x2c] sm:$0xf]
    %v1926 = vld [vmem:[%s1913 + $0x30] sm:$0xf]
    %v1927 = vld [vmem:[%s1913 + $0x34] sm:$0xf]
    %v1928 = vld [vmem:[%s1913 + $0x38] sm:$0xf]
    %v1929 = vld [vmem:[%s1913 + $0x3c] sm:$0xf]
    %v1930 = vld [vmem:[%s1913 + $0x40] sm:$0xf]
    %v1931 = vld [vmem:[%s1913 + $0x44] sm:$0xf]
    %v1932 = vld [vmem:[%s1913 + $0x48] sm:$0xf]
    %v1933 = vld [vmem:[%s1913 + $0x4c] sm:$0xf]
    %v1934 = vld [vmem:[%s1913 + $0x50] sm:$0xf]
    %v1935 = vld [vmem:[%s1913 + $0x54] sm:$0xf]
    %v1936 = vld [vmem:[%s1913 + $0x58] sm:$0xf]
    %v1937 = vld [vmem:[%s1913 + $0x5c] sm:$0xf]
    %v1938 = vld [vmem:[%s1913 + $0x60] sm:$0xf]
    %v1939 = vld [vmem:[%s1913 + $0x64] sm:$0xf]
    %v1940 = vld [vmem:[%s1913 + $0x68] sm:$0xf]
    %v1941 = vld [vmem:[%s1913 + $0x6c] sm:$0xf]
    %v1942 = vld [vmem:[%s1913 + $0x70] sm:$0xf]
    %v1943 = vld [vmem:[%s1913 + $0x74] sm:$0xf]
    %v1944 = vld [vmem:[%s1913 + $0x78] sm:$0xf]
    %v1945 = vld [vmem:[%s1913 + $0x7c] sm:$0xf]
    %s1946 = scalar_lea.vmem %s6, 2
    %v1947 = vld [vmem:[%s1946] sm:$0x1]
    %v1949 = vlaneseq
    %v1950 = vshrl.u32 %v1949, 7
    %v1951 = vsub.s32 0, %v1950
    %v1952 = vrot.slane %v1947, %v1951
    %v1986 = vunpack.c.l.b16 %v1914
    %v1987 = vunpack.c.l.b16 %v1915
    %v1988 = vunpack.c.l.b16 %v1916
    %v1989 = vunpack.c.l.b16 %v1917
    %v1990 = vunpack.c.l.b16 %v1918
    %v1991 = vunpack.c.l.b16 %v1919
    %v1992 = vunpack.c.l.b16 %v1920
    %v1993 = vunpack.c.l.b16 %v1921
    %v1994 = vunpack.c.l.b16 %v1922
    %v1995 = vunpack.c.l.b16 %v1923
    %v1996 = vunpack.c.l.b16 %v1924
    %v1997 = vunpack.c.l.b16 %v1925
    %v1998 = vunpack.c.l.b16 %v1926
    %v1999 = vunpack.c.l.b16 %v1927
    %v2000 = vunpack.c.l.b16 %v1928
    %v2001 = vunpack.c.l.b16 %v1929
    %v2002 = vunpack.c.l.b16 %v1930
    %v2003 = vunpack.c.l.b16 %v1931
    %v2004 = vunpack.c.l.b16 %v1932
    %v2005 = vunpack.c.l.b16 %v1933
    %v2006 = vunpack.c.l.b16 %v1934
    %v2007 = vunpack.c.l.b16 %v1935
    %v2008 = vunpack.c.l.b16 %v1936
    %v2009 = vunpack.c.l.b16 %v1937
    %v2010 = vunpack.c.l.b16 %v1938
    %v2011 = vunpack.c.l.b16 %v1939
    %v2012 = vunpack.c.l.b16 %v1940
    %v2013 = vunpack.c.l.b16 %v1941
    %v2014 = vunpack.c.l.b16 %v1942
    %v2015 = vunpack.c.l.b16 %v1943
    %v2016 = vunpack.c.l.b16 %v1944
    %v2017 = vunpack.c.l.b16 %v1945
    %v2018 = vpack.c.b16 %v1987, %v1986
    %v2019 = vpack.c.b16 %v1989, %v1988
    %v2020 = vpack.c.b16 %v1991, %v1990
    %v2021 = vpack.c.b16 %v1993, %v1992
    %v2022 = vpack.c.b16 %v1995, %v1994
    %v2023 = vpack.c.b16 %v1997, %v1996
    %v2024 = vpack.c.b16 %v1999, %v1998
    %v2025 = vpack.c.b16 %v2001, %v2000
    %v2026 = vpack.c.b16 %v2003, %v2002
    %v2027 = vpack.c.b16 %v2005, %v2004
    %v2028 = vpack.c.b16 %v2007, %v2006
    %v2029 = vpack.c.b16 %v2009, %v2008
    %v2030 = vpack.c.b16 %v2011, %v2010
    %v2031 = vpack.c.b16 %v2013, %v2012
    %v2032 = vpack.c.b16 %v2015, %v2014
    %v2033 = vpack.c.b16 %v2017, %v2016
    %2050 = vmatprep.subr.bf16.mxu0 0
    %2051 = vmatpush1.bf16.msra.mxu0 %v2025
    %2052 = vmatprep.subr.bf16.mxu0 0
    %2053 = vmatpush1.bf16.msra.mxu0 %v2024
    %2054 = vmatprep.subr.bf16.mxu0 0
    %2055 = vmatpush1.bf16.msra.mxu0 %v2023
    %2056 = vmatprep.subr.bf16.mxu0 0
    %2057 = vmatpush1.bf16.msra.mxu0 %v2022
    %2058 = vmatprep.subr.bf16.mxu0 0
    %2059 = vmatpush1.bf16.msra.mxu0 %v2021
    %2060 = vmatprep.subr.bf16.mxu0 0
    %2061 = vmatpush1.bf16.msra.mxu0 %v2020
    %2062 = vmatprep.subr.bf16.mxu0 0
    %2063 = vmatpush1.bf16.msra.mxu0 %v2019
    %2064 = vmatprep.subr.bf16.mxu0 0
    %2065 = vmatpush1.bf16.msra.mxu0 %v2018
    %2066 = vmatprep.subr.bf16.mxu0 0
    %2067 = vmatpush2.bf16.msra.mxu0 %v2033
    %2068 = vmatprep.subr.bf16.mxu0 0
    %2069 = vmatpush2.bf16.msra.mxu0 %v2032
    %2070 = vmatprep.subr.bf16.mxu0 0
    %2071 = vmatpush2.bf16.msra.mxu0 %v2031
    %2072 = vmatprep.subr.bf16.mxu0 0
    %2073 = vmatpush2.bf16.msra.mxu0 %v2030
    %2074 = vmatprep.subr.bf16.mxu0 0
    %2075 = vmatpush2.bf16.msra.mxu0 %v2029
    %2076 = vmatprep.subr.bf16.mxu0 0
    %2077 = vmatpush2.bf16.msra.mxu0 %v2028
    %2078 = vmatprep.subr.bf16.mxu0 0
    %2079 = vmatpush2.bf16.msra.mxu0 %v2027
    %2080 = vmatprep.subr.bf16.mxu0 0
    %2081 = vmatpush2.bf16.msra.mxu0 %v2026
    %2082 = vmatprep.mubr.bf16.mxu0 %v1898
    %2083 = vmatmul.mubr.bf16.gmra.mxu0 %v1897
    %v2084 = vpop.f32.mrf.mxu0
    %v2085 = vadd.f32 %v1952, %v2084
    %v2086 = vpop.f32.mrf.mxu0
    %v2087 = vpop.f32.mrf.mxu0
    %v2088 = vadd.f32 %v1952, %v2087
    %v2089 = vpop.f32.mrf.mxu0
    %2090 = vmatprep.mubr.bf16.mxu0 %v1900
    %2091 = vmatmul.mubr.bf16.gmra.mxu0 %v1899
    %v2092 = vpop.f32.mrf.mxu0
    %v2093 = vadd.f32 %v1952, %v2092
    %v2094 = vpop.f32.mrf.mxu0
    %v2095 = vpop.f32.mrf.mxu0
    %v2096 = vadd.f32 %v1952, %v2095
    %v2097 = vpop.f32.mrf.mxu0
    %2098 = vmatprep.mubr.bf16.mxu0 %v1902
    %2099 = vmatmul.mubr.bf16.gmra.mxu0 %v1901
    %v2100 = vpop.f32.mrf.mxu0
    %v2101 = vadd.f32 %v1952, %v2100
    %v2102 = vpop.f32.mrf.mxu0
    %v2103 = vpop.f32.mrf.mxu0
    %v2104 = vadd.f32 %v1952, %v2103
    %v2105 = vpop.f32.mrf.mxu0
    %2106 = vmatprep.mubr.bf16.mxu0 %v1904
    %2107 = vmatmul.mubr.bf16.gmra.mxu0 %v1903
    %v2108 = vpop.f32.mrf.mxu0
    %v2109 = vadd.f32 %v1952, %v2108
    %v2110 = vpop.f32.mrf.mxu0
    %v2111 = vpop.f32.mrf.mxu0
    %v2112 = vadd.f32 %v1952, %v2111
    %v2113 = vpop.f32.mrf.mxu0
    %2114 = vmatprep.mubr.bf16.mxu0 %v1906
    %2115 = vmatmul.mubr.bf16.gmra.mxu0 %v1905
    %v2116 = vpop.f32.mrf.mxu0
    %v2117 = vadd.f32 %v1952, %v2116
    %v2118 = vpop.f32.mrf.mxu0
    %v2119 = vpop.f32.mrf.mxu0
    %v2120 = vadd.f32 %v1952, %v2119
    %v2121 = vpop.f32.mrf.mxu0
    %2122 = vmatprep.mubr.bf16.mxu0 %v1908
    %2123 = vmatmul.mubr.bf16.gmra.mxu0 %v1907
    %v2124 = vpop.f32.mrf.mxu0
    %v2125 = vadd.f32 %v1952, %v2124
    %v2126 = vpop.f32.mrf.mxu0
    %v2127 = vpop.f32.mrf.mxu0
    %v2128 = vadd.f32 %v1952, %v2127
    %v2129 = vpop.f32.mrf.mxu0
    %2130 = vmatprep.mubr.bf16.mxu0 %v1910
    %2131 = vmatmul.mubr.bf16.gmra.mxu0 %v1909
    %v2132 = vpop.f32.mrf.mxu0
    %v2133 = vadd.f32 %v1952, %v2132
    %v2134 = vpop.f32.mrf.mxu0
    %v2135 = vpop.f32.mrf.mxu0
    %v2136 = vadd.f32 %v1952, %v2135
    %v2137 = vpop.f32.mrf.mxu0
    %2138 = vmatprep.mubr.bf16.mxu0 %v1912
    %2139 = vmatmul.mubr.bf16.gmra.mxu0 %v1911
    %v2140 = vpop.f32.mrf.mxu0
    %v2141 = vadd.f32 %v1952, %v2140
    %v2142 = vpop.f32.mrf.mxu0
    %v2143 = vpop.f32.mrf.mxu0
    %v2144 = vadd.f32 %v1952, %v2143
    %v2145 = vpop.f32.mrf.mxu0
    %2146 = vdwg.mxu0
    %v2147 = vmax.f32 %v2085, 0.0
    %v2148 = vmax.f32 %v2088, 0.0
    %v2149 = vmax.f32 %v2093, 0.0
    %v2150 = vmax.f32 %v2096, 0.0
    %v2151 = vmax.f32 %v2101, 0.0
    %v2152 = vmax.f32 %v2104, 0.0
    %v2153 = vmax.f32 %v2109, 0.0
    %v2154 = vmax.f32 %v2112, 0.0
    %v2155 = vmax.f32 %v2117, 0.0
    %v2156 = vmax.f32 %v2120, 0.0
    %v2157 = vmax.f32 %v2125, 0.0
    %v2158 = vmax.f32 %v2128, 0.0
    %v2159 = vmax.f32 %v2133, 0.0
    %v2160 = vmax.f32 %v2136, 0.0
    %v2161 = vmax.f32 %v2141, 0.0
    %v2162 = vmax.f32 %v2144, 0.0
    %v2163 = vpack.c.bf16 %v2148, %v2147
    %v2164 = vpack.c.bf16 %v2150, %v2149
    %v2165 = vpack.c.bf16 %v2152, %v2151
    %v2166 = vpack.c.bf16 %v2154, %v2153
    %v2167 = vpack.c.bf16 %v2156, %v2155
    %v2168 = vpack.c.bf16 %v2158, %v2157
    %v2169 = vpack.c.bf16 %v2160, %v2159
    %v2170 = vpack.c.bf16 %v2162, %v2161
    %s2171 = scalar_lea.vmem [#allocation7], 384
    %v2172 = vld [vmem:[%s2171] sm:$0xff]
    %v2173 = vld [vmem:[%s2171 + $0x8] sm:$0xff]
    %v2174 = vld [vmem:[%s2171 + $0x10] sm:$0xff]
    %v2175 = vld [vmem:[%s2171 + $0x18] sm:$0xff]
    %v2176 = vld [vmem:[%s2171 + $0x20] sm:$0xff]
    %v2177 = vld [vmem:[%s2171 + $0x28] sm:$0xff]
    %v2178 = vld [vmem:[%s2171 + $0x30] sm:$0xff]
    %v2179 = vld [vmem:[%s2171 + $0x38] sm:$0xff]
    %v2180 = vld [vmem:[%s2171 + $0x40] sm:$0xff]
    %v2181 = vld [vmem:[%s2171 + $0x48] sm:$0xff]
    %v2182 = vld [vmem:[%s2171 + $0x50] sm:$0xff]
    %v2183 = vld [vmem:[%s2171 + $0x58] sm:$0xff]
    %v2184 = vld [vmem:[%s2171 + $0x60] sm:$0xff]
    %v2185 = vld [vmem:[%s2171 + $0x68] sm:$0xff]
    %v2186 = vld [vmem:[%s2171 + $0x70] sm:$0xff]
    %v2187 = vld [vmem:[%s2171 + $0x78] sm:$0xff]
    %2188 = vmatprep.subr.bf16.mxu0 0
    %2189 = vmatpush1.bf16.msra.mxu0 %v2170
    %2190 = vmatprep.subr.bf16.mxu0 0
    %2191 = vmatpush1.bf16.msra.mxu0 %v2169
    %2192 = vmatprep.subr.bf16.mxu0 0
    %2193 = vmatpush1.bf16.msra.mxu0 %v2168
    %2194 = vmatprep.subr.bf16.mxu0 0
    %2195 = vmatpush1.bf16.msra.mxu0 %v2167
    %2196 = vmatprep.subr.bf16.mxu0 0
    %2197 = vmatpush1.bf16.msra.mxu0 %v2166
    %2198 = vmatprep.subr.bf16.mxu0 0
    %2199 = vmatpush1.bf16.msra.mxu0 %v2165
    %2200 = vmatprep.subr.bf16.mxu0 0
    %2201 = vmatpush1.bf16.msra.mxu0 %v2164
    %2202 = vmatprep.subr.bf16.mxu0 0
    %2203 = vmatpush1.bf16.msra.mxu0 %v2163
    %2204 = vmatprep.subr.bf16.mxu0 0
    %2205 = vmatpush2.bf16.msra.mxu0 0
    %2206 = vmatprep.subr.bf16.mxu0 0
    %2207 = vmatpush2.bf16.msra.mxu0 0
    %2208 = vmatprep.subr.bf16.mxu0 0
    %2209 = vmatpush2.bf16.msra.mxu0 0
    %2210 = vmatprep.subr.bf16.mxu0 0
    %2211 = vmatpush2.bf16.msra.mxu0 0
    %2212 = vmatprep.subr.bf16.mxu0 0
    %2213 = vmatpush2.bf16.msra.mxu0 0
    %2214 = vmatprep.subr.bf16.mxu0 0
    %2215 = vmatpush2.bf16.msra.mxu0 0
    %2216 = vmatprep.subr.bf16.mxu0 0
    %2217 = vmatpush2.bf16.msra.mxu0 0
    %2218 = vmatprep.subr.bf16.mxu0 0
    %2219 = vmatpush2.bf16.msra.mxu0 0
    %2220 = vmatprep.mubr.bf16.mxu0 0
    %2221 = vmatmul.mubr.bf16.gmra.mxu0 %v223
    %v2222 = vpop.f32.mrf.mxu0
    %v2223 = vadd.f32 %v2172, %v2222
    %v2224 = vpop.f32.mrf.mxu0
    %v2225 = vpop.f32.mrf.mxu0
    %v2226 = vadd.f32 %v2173, %v2225
    %v2227 = vpop.f32.mrf.mxu0
    %2228 = vmatprep.mubr.bf16.mxu0 0
    %2229 = vmatmul.mubr.bf16.gmra.mxu0 %v224
    %v2230 = vpop.f32.mrf.mxu0
    %v2231 = vadd.f32 %v2174, %v2230
    %v2232 = vpop.f32.mrf.mxu0
    %v2233 = vpop.f32.mrf.mxu0
    %v2234 = vadd.f32 %v2175, %v2233
    %v2235 = vpop.f32.mrf.mxu0
    %2236 = vmatprep.mubr.bf16.mxu0 0
    %2237 = vmatmul.mubr.bf16.gmra.mxu0 %v225
    %v2238 = vpop.f32.mrf.mxu0
    %v2239 = vadd.f32 %v2176, %v2238
    %v2240 = vpop.f32.mrf.mxu0
    %v2241 = vpop.f32.mrf.mxu0
    %v2242 = vadd.f32 %v2177, %v2241
    %v2243 = vpop.f32.mrf.mxu0
    %2244 = vmatprep.mubr.bf16.mxu0 0
    %2245 = vmatmul.mubr.bf16.gmra.mxu0 %v226
    %v2246 = vpop.f32.mrf.mxu0
    %v2247 = vadd.f32 %v2178, %v2246
    %v2248 = vpop.f32.mrf.mxu0
    %v2249 = vpop.f32.mrf.mxu0
    %v2250 = vadd.f32 %v2179, %v2249
    %v2251 = vpop.f32.mrf.mxu0
    %2252 = vmatprep.mubr.bf16.mxu0 0
    %2253 = vmatmul.mubr.bf16.gmra.mxu0 %v227
    %v2254 = vpop.f32.mrf.mxu0
    %v2255 = vadd.f32 %v2180, %v2254
    %v2256 = vpop.f32.mrf.mxu0
    %v2257 = vpop.f32.mrf.mxu0
    %v2258 = vadd.f32 %v2181, %v2257
    %v2259 = vpop.f32.mrf.mxu0
    %2260 = vmatprep.mubr.bf16.mxu0 0
    %2261 = vmatmul.mubr.bf16.gmra.mxu0 %v228
    %v2262 = vpop.f32.mrf.mxu0
    %v2263 = vadd.f32 %v2182, %v2262
    %v2264 = vpop.f32.mrf.mxu0
    %v2265 = vpop.f32.mrf.mxu0
    %v2266 = vadd.f32 %v2183, %v2265
    %v2267 = vpop.f32.mrf.mxu0
    %2268 = vmatprep.mubr.bf16.mxu0 0
    %2269 = vmatmul.mubr.bf16.gmra.mxu0 %v229
    %v2270 = vpop.f32.mrf.mxu0
    %v2271 = vadd.f32 %v2184, %v2270
    %v2272 = vpop.f32.mrf.mxu0
    %v2273 = vpop.f32.mrf.mxu0
    %v2274 = vadd.f32 %v2185, %v2273
    %v2275 = vpop.f32.mrf.mxu0
    %2276 = vmatprep.mubr.bf16.mxu0 0
    %2277 = vmatmul.mubr.bf16.gmra.mxu0 %v230
    %v2278 = vpop.f32.mrf.mxu0
    %v2279 = vadd.f32 %v2186, %v2278
    %v2280 = vpop.f32.mrf.mxu0
    %v2281 = vpop.f32.mrf.mxu0
    %v2282 = vadd.f32 %v2187, %v2281
    %v2283 = vpop.f32.mrf.mxu0
    %2284 = vdwg.mxu0
    %v2285 = vpack.c.bf16 %v2226, %v2223
    %v2286 = vpack.c.bf16 %v2234, %v2231
    %v2287 = vpack.c.bf16 %v2242, %v2239
    %v2288 = vpack.c.bf16 %v2250, %v2247
    %v2289 = vpack.c.bf16 %v2258, %v2255
    %v2290 = vpack.c.bf16 %v2266, %v2263
    %v2291 = vpack.c.bf16 %v2274, %v2271
    %v2292 = vpack.c.bf16 %v2282, %v2279
    %s2293 = scalar_lea.vmem [#allocation8], 384
    %v2294 = vld [vmem:[%s2293] sm:$0xff]
    %v2295 = vld [vmem:[%s2293 + $0x8] sm:$0xff]
    %v2296 = vld [vmem:[%s2293 + $0x10] sm:$0xff]
    %v2297 = vld [vmem:[%s2293 + $0x18] sm:$0xff]
    %v2298 = vld [vmem:[%s2293 + $0x20] sm:$0xff]
    %v2299 = vld [vmem:[%s2293 + $0x28] sm:$0xff]
    %v2300 = vld [vmem:[%s2293 + $0x30] sm:$0xff]
    %v2301 = vld [vmem:[%s2293 + $0x38] sm:$0xff]
    %v2302 = vld [vmem:[%s2293 + $0x40] sm:$0xff]
    %v2303 = vld [vmem:[%s2293 + $0x48] sm:$0xff]
    %v2304 = vld [vmem:[%s2293 + $0x50] sm:$0xff]
    %v2305 = vld [vmem:[%s2293 + $0x58] sm:$0xff]
    %v2306 = vld [vmem:[%s2293 + $0x60] sm:$0xff]
    %v2307 = vld [vmem:[%s2293 + $0x68] sm:$0xff]
    %v2308 = vld [vmem:[%s2293 + $0x70] sm:$0xff]
    %v2309 = vld [vmem:[%s2293 + $0x78] sm:$0xff]
    %s2310 = scalar_lea.vmem [#allocation10], 6
    %v2311 = vld [vmem:[%s2310] sm:$0x3]
    %v2313 = vlaneseq
    %v2314 = vshrl.u32 %v2313, 7
    %v2315 = vsub.s32 0, %v2314
    %v2316 = vrot.slane %v2311, %v2315
    %v2317 = vlaneseq
    %v2318 = vshrl.u32 %v2317, 7
    %v2319 = vsub.s32 1, %v2318
    %v2320 = vrot.slane %v2311, %v2319
    %v2339 = vunpack.c.l.b16 %v2294
    %v2340 = vunpack.c.h.b16 %v2294
    %v2341 = vunpack.c.l.b16 %v2295
    %v2342 = vunpack.c.h.b16 %v2295
    %v2343 = vunpack.c.l.b16 %v2296
    %v2344 = vunpack.c.h.b16 %v2296
    %v2345 = vunpack.c.l.b16 %v2297
    %v2346 = vunpack.c.h.b16 %v2297
    %v2347 = vunpack.c.l.b16 %v2298
    %v2348 = vunpack.c.h.b16 %v2298
    %v2349 = vunpack.c.l.b16 %v2299
    %v2350 = vunpack.c.h.b16 %v2299
    %v2351 = vunpack.c.l.b16 %v2300
    %v2352 = vunpack.c.h.b16 %v2300
    %v2353 = vunpack.c.l.b16 %v2301
    %v2354 = vunpack.c.h.b16 %v2301
    %v2355 = vunpack.c.l.b16 %v2302
    %v2356 = vunpack.c.h.b16 %v2302
    %v2357 = vunpack.c.l.b16 %v2303
    %v2358 = vunpack.c.h.b16 %v2303
    %v2359 = vunpack.c.l.b16 %v2304
    %v2360 = vunpack.c.h.b16 %v2304
    %v2361 = vunpack.c.l.b16 %v2305
    %v2362 = vunpack.c.h.b16 %v2305
    %v2363 = vunpack.c.l.b16 %v2306
    %v2364 = vunpack.c.h.b16 %v2306
    %v2365 = vunpack.c.l.b16 %v2307
    %v2366 = vunpack.c.h.b16 %v2307
    %v2367 = vunpack.c.l.b16 %v2308
    %v2368 = vunpack.c.h.b16 %v2308
    %v2369 = vunpack.c.l.b16 %v2309
    %v2370 = vunpack.c.h.b16 %v2309
    %v2371 = vpack.c.b16 %v2341, %v2339
    %v2372 = vpack.c.b16 %v2342, %v2340
    %v2373 = vpack.c.b16 %v2345, %v2343
    %v2374 = vpack.c.b16 %v2346, %v2344
    %v2375 = vpack.c.b16 %v2349, %v2347
    %v2376 = vpack.c.b16 %v2350, %v2348
    %v2377 = vpack.c.b16 %v2353, %v2351
    %v2378 = vpack.c.b16 %v2354, %v2352
    %v2379 = vpack.c.b16 %v2357, %v2355
    %v2380 = vpack.c.b16 %v2358, %v2356
    %v2381 = vpack.c.b16 %v2361, %v2359
    %v2382 = vpack.c.b16 %v2362, %v2360
    %v2383 = vpack.c.b16 %v2365, %v2363
    %v2384 = vpack.c.b16 %v2366, %v2364
    %v2385 = vpack.c.b16 %v2369, %v2367
    %v2386 = vpack.c.b16 %v2370, %v2368
    %2403 = vmatprep.subr.bf16.mxu0 %v2386
    %2404 = vmatpush1.bf16.msra.mxu0 %v2385
    %2405 = vmatprep.subr.bf16.mxu0 %v2384
    %2406 = vmatpush1.bf16.msra.mxu0 %v2383
    %2407 = vmatprep.subr.bf16.mxu0 %v2382
    %2408 = vmatpush1.bf16.msra.mxu0 %v2381
    %2409 = vmatprep.subr.bf16.mxu0 %v2380
    %2410 = vmatpush1.bf16.msra.mxu0 %v2379
    %2411 = vmatprep.subr.bf16.mxu0 %v2378
    %2412 = vmatpush1.bf16.msra.mxu0 %v2377
    %2413 = vmatprep.subr.bf16.mxu0 %v2376
    %2414 = vmatpush1.bf16.msra.mxu0 %v2375
    %2415 = vmatprep.subr.bf16.mxu0 %v2374
    %2416 = vmatpush1.bf16.msra.mxu0 %v2373
    %2417 = vmatprep.subr.bf16.mxu0 %v2372
    %2418 = vmatpush1.bf16.msra.mxu0 %v2371
    %2419 = vmatprep.subr.bf16.mxu0 0
    %2420 = vmatpush2.bf16.msra.mxu0 0
    %2421 = vmatprep.subr.bf16.mxu0 0
    %2422 = vmatpush2.bf16.msra.mxu0 0
    %2423 = vmatprep.subr.bf16.mxu0 0
    %2424 = vmatpush2.bf16.msra.mxu0 0
    %2425 = vmatprep.subr.bf16.mxu0 0
    %2426 = vmatpush2.bf16.msra.mxu0 0
    %2427 = vmatprep.subr.bf16.mxu0 0
    %2428 = vmatpush2.bf16.msra.mxu0 0
    %2429 = vmatprep.subr.bf16.mxu0 0
    %2430 = vmatpush2.bf16.msra.mxu0 0
    %2431 = vmatprep.subr.bf16.mxu0 0
    %2432 = vmatpush2.bf16.msra.mxu0 0
    %2433 = vmatprep.subr.bf16.mxu0 0
    %2434 = vmatpush2.bf16.msra.mxu0 0
    %2435 = vmatprep.mubr.bf16.mxu0 0
    %2436 = vmatmul.mubr.bf16.gmra.mxu0 %v2285
    %v2437 = vpop.f32.mrf.mxu0
    %v2438 = vadd.f32 %v2316, %v2437
    %v2439 = vpop.f32.mrf.mxu0
    %v2440 = vadd.f32 %v2320, %v2439
    %v2441 = vpop.f32.mrf.mxu0
    %v2442 = vadd.f32 %v2316, %v2441
    %v2443 = vpop.f32.mrf.mxu0
    %v2444 = vadd.f32 %v2320, %v2443
    %2445 = vmatprep.mubr.bf16.mxu0 0
    %2446 = vmatmul.mubr.bf16.gmra.mxu0 %v2286
    %v2447 = vpop.f32.mrf.mxu0
    %v2448 = vadd.f32 %v2316, %v2447
    %v2449 = vpop.f32.mrf.mxu0
    %v2450 = vadd.f32 %v2320, %v2449
    %v2451 = vpop.f32.mrf.mxu0
    %v2452 = vadd.f32 %v2316, %v2451
    %v2453 = vpop.f32.mrf.mxu0
    %v2454 = vadd.f32 %v2320, %v2453
    %2455 = vmatprep.mubr.bf16.mxu0 0
    %2456 = vmatmul.mubr.bf16.gmra.mxu0 %v2287
    %v2457 = vpop.f32.mrf.mxu0
    %v2458 = vadd.f32 %v2316, %v2457
    %v2459 = vpop.f32.mrf.mxu0
    %v2460 = vadd.f32 %v2320, %v2459
    %v2461 = vpop.f32.mrf.mxu0
    %v2462 = vadd.f32 %v2316, %v2461
    %v2463 = vpop.f32.mrf.mxu0
    %v2464 = vadd.f32 %v2320, %v2463
    %2465 = vmatprep.mubr.bf16.mxu0 0
    %2466 = vmatmul.mubr.bf16.gmra.mxu0 %v2288
    %v2467 = vpop.f32.mrf.mxu0
    %v2468 = vadd.f32 %v2316, %v2467
    %v2469 = vpop.f32.mrf.mxu0
    %v2470 = vadd.f32 %v2320, %v2469
    %v2471 = vpop.f32.mrf.mxu0
    %v2472 = vadd.f32 %v2316, %v2471
    %v2473 = vpop.f32.mrf.mxu0
    %v2474 = vadd.f32 %v2320, %v2473
    %2475 = vmatprep.mubr.bf16.mxu0 0
    %2476 = vmatmul.mubr.bf16.gmra.mxu0 %v2289
    %v2477 = vpop.f32.mrf.mxu0
    %v2478 = vadd.f32 %v2316, %v2477
    %v2479 = vpop.f32.mrf.mxu0
    %v2480 = vadd.f32 %v2320, %v2479
    %v2481 = vpop.f32.mrf.mxu0
    %v2482 = vadd.f32 %v2316, %v2481
    %v2483 = vpop.f32.mrf.mxu0
    %v2484 = vadd.f32 %v2320, %v2483
    %2485 = vmatprep.mubr.bf16.mxu0 0
    %2486 = vmatmul.mubr.bf16.gmra.mxu0 %v2290
    %v2487 = vpop.f32.mrf.mxu0
    %v2488 = vadd.f32 %v2316, %v2487
    %v2489 = vpop.f32.mrf.mxu0
    %v2490 = vadd.f32 %v2320, %v2489
    %v2491 = vpop.f32.mrf.mxu0
    %v2492 = vadd.f32 %v2316, %v2491
    %v2493 = vpop.f32.mrf.mxu0
    %v2494 = vadd.f32 %v2320, %v2493
    %2495 = vmatprep.mubr.bf16.mxu0 0
    %2496 = vmatmul.mubr.bf16.gmra.mxu0 %v2291
    %v2497 = vpop.f32.mrf.mxu0
    %v2498 = vadd.f32 %v2316, %v2497
    %v2499 = vpop.f32.mrf.mxu0
    %v2500 = vadd.f32 %v2320, %v2499
    %v2501 = vpop.f32.mrf.mxu0
    %v2502 = vadd.f32 %v2316, %v2501
    %v2503 = vpop.f32.mrf.mxu0
    %v2504 = vadd.f32 %v2320, %v2503
    %2505 = vmatprep.mubr.bf16.mxu0 0
    %2506 = vmatmul.mubr.bf16.gmra.mxu0 %v2292
    %v2507 = vpop.f32.mrf.mxu0
    %v2508 = vadd.f32 %v2316, %v2507
    %v2509 = vpop.f32.mrf.mxu0
    %v2510 = vadd.f32 %v2320, %v2509
    %v2511 = vpop.f32.mrf.mxu0
    %v2512 = vadd.f32 %v2316, %v2511
    %v2513 = vpop.f32.mrf.mxu0
    %v2514 = vadd.f32 %v2320, %v2513
    %2515 = vdwg.mxu0
    %v2516 = vmax.f32 %v2438, 0.0
    %v2517 = vmax.f32 %v2440, 0.0
    %v2518 = vmax.f32 %v2442, 0.0
    %v2519 = vmax.f32 %v2444, 0.0
    %v2520 = vmax.f32 %v2448, 0.0
    %v2521 = vmax.f32 %v2450, 0.0
    %v2522 = vmax.f32 %v2452, 0.0
    %v2523 = vmax.f32 %v2454, 0.0
    %v2524 = vmax.f32 %v2458, 0.0
    %v2525 = vmax.f32 %v2460, 0.0
    %v2526 = vmax.f32 %v2462, 0.0
    %v2527 = vmax.f32 %v2464, 0.0
    %v2528 = vmax.f32 %v2468, 0.0
    %v2529 = vmax.f32 %v2470, 0.0
    %v2530 = vmax.f32 %v2472, 0.0
    %v2531 = vmax.f32 %v2474, 0.0
    %v2532 = vmax.f32 %v2478, 0.0
    %v2533 = vmax.f32 %v2480, 0.0
    %v2534 = vmax.f32 %v2482, 0.0
    %v2535 = vmax.f32 %v2484, 0.0
    %v2536 = vmax.f32 %v2488, 0.0
    %v2537 = vmax.f32 %v2490, 0.0
    %v2538 = vmax.f32 %v2492, 0.0
    %v2539 = vmax.f32 %v2494, 0.0
    %v2540 = vmax.f32 %v2498, 0.0
    %v2541 = vmax.f32 %v2500, 0.0
    %v2542 = vmax.f32 %v2502, 0.0
    %v2543 = vmax.f32 %v2504, 0.0
    %v2544 = vmax.f32 %v2508, 0.0
    %v2545 = vmax.f32 %v2510, 0.0
    %v2546 = vmax.f32 %v2512, 0.0
    %v2547 = vmax.f32 %v2514, 0.0
    %v2548 = vpack.c.bf16 %v2518, %v2516
    %v2549 = vpack.c.bf16 %v2519, %v2517
    %v2550 = vpack.c.bf16 %v2522, %v2520
    %v2551 = vpack.c.bf16 %v2523, %v2521
    %v2552 = vpack.c.bf16 %v2526, %v2524
    %v2553 = vpack.c.bf16 %v2527, %v2525
    %v2554 = vpack.c.bf16 %v2530, %v2528
    %v2555 = vpack.c.bf16 %v2531, %v2529
    %v2556 = vpack.c.bf16 %v2534, %v2532
    %v2557 = vpack.c.bf16 %v2535, %v2533
    %v2558 = vpack.c.bf16 %v2538, %v2536
    %v2559 = vpack.c.bf16 %v2539, %v2537
    %v2560 = vpack.c.bf16 %v2542, %v2540
    %v2561 = vpack.c.bf16 %v2543, %v2541
    %v2562 = vpack.c.bf16 %v2546, %v2544
    %v2563 = vpack.c.bf16 %v2547, %v2545
    %s2564 = scalar_lea.vmem [#allocation11], 384
    %v2565 = vld [vmem:[%s2564] sm:$0xf]
    %v2566 = vld [vmem:[%s2564 + $0x4] sm:$0xf]
    %v2567 = vld [vmem:[%s2564 + $0x8] sm:$0xf]
    %v2568 = vld [vmem:[%s2564 + $0xc] sm:$0xf]
    %v2569 = vld [vmem:[%s2564 + $0x10] sm:$0xf]
    %v2570 = vld [vmem:[%s2564 + $0x14] sm:$0xf]
    %v2571 = vld [vmem:[%s2564 + $0x18] sm:$0xf]
    %v2572 = vld [vmem:[%s2564 + $0x1c] sm:$0xf]
    %v2573 = vld [vmem:[%s2564 + $0x20] sm:$0xf]
    %v2574 = vld [vmem:[%s2564 + $0x24] sm:$0xf]
    %v2575 = vld [vmem:[%s2564 + $0x28] sm:$0xf]
    %v2576 = vld [vmem:[%s2564 + $0x2c] sm:$0xf]
    %v2577 = vld [vmem:[%s2564 + $0x30] sm:$0xf]
    %v2578 = vld [vmem:[%s2564 + $0x34] sm:$0xf]
    %v2579 = vld [vmem:[%s2564 + $0x38] sm:$0xf]
    %v2580 = vld [vmem:[%s2564 + $0x3c] sm:$0xf]
    %v2581 = vld [vmem:[%s2564 + $0x40] sm:$0xf]
    %v2582 = vld [vmem:[%s2564 + $0x44] sm:$0xf]
    %v2583 = vld [vmem:[%s2564 + $0x48] sm:$0xf]
    %v2584 = vld [vmem:[%s2564 + $0x4c] sm:$0xf]
    %v2585 = vld [vmem:[%s2564 + $0x50] sm:$0xf]
    %v2586 = vld [vmem:[%s2564 + $0x54] sm:$0xf]
    %v2587 = vld [vmem:[%s2564 + $0x58] sm:$0xf]
    %v2588 = vld [vmem:[%s2564 + $0x5c] sm:$0xf]
    %v2589 = vld [vmem:[%s2564 + $0x60] sm:$0xf]
    %v2590 = vld [vmem:[%s2564 + $0x64] sm:$0xf]
    %v2591 = vld [vmem:[%s2564 + $0x68] sm:$0xf]
    %v2592 = vld [vmem:[%s2564 + $0x6c] sm:$0xf]
    %v2593 = vld [vmem:[%s2564 + $0x70] sm:$0xf]
    %v2594 = vld [vmem:[%s2564 + $0x74] sm:$0xf]
    %v2595 = vld [vmem:[%s2564 + $0x78] sm:$0xf]
    %v2596 = vld [vmem:[%s2564 + $0x7c] sm:$0xf]
    %s2597 = scalar_lea.vmem %s6, 3
    %v2598 = vld [vmem:[%s2597] sm:$0x1]
    %v2600 = vlaneseq
    %v2601 = vshrl.u32 %v2600, 7
    %v2602 = vsub.s32 0, %v2601
    %v2603 = vrot.slane %v2598, %v2602
    %v2637 = vunpack.c.l.b16 %v2565
    %v2638 = vunpack.c.l.b16 %v2566
    %v2639 = vunpack.c.l.b16 %v2567
    %v2640 = vunpack.c.l.b16 %v2568
    %v2641 = vunpack.c.l.b16 %v2569
    %v2642 = vunpack.c.l.b16 %v2570
    %v2643 = vunpack.c.l.b16 %v2571
    %v2644 = vunpack.c.l.b16 %v2572
    %v2645 = vunpack.c.l.b16 %v2573
    %v2646 = vunpack.c.l.b16 %v2574
    %v2647 = vunpack.c.l.b16 %v2575
    %v2648 = vunpack.c.l.b16 %v2576
    %v2649 = vunpack.c.l.b16 %v2577
    %v2650 = vunpack.c.l.b16 %v2578
    %v2651 = vunpack.c.l.b16 %v2579
    %v2652 = vunpack.c.l.b16 %v2580
    %v2653 = vunpack.c.l.b16 %v2581
    %v2654 = vunpack.c.l.b16 %v2582
    %v2655 = vunpack.c.l.b16 %v2583
    %v2656 = vunpack.c.l.b16 %v2584
    %v2657 = vunpack.c.l.b16 %v2585
    %v2658 = vunpack.c.l.b16 %v2586
    %v2659 = vunpack.c.l.b16 %v2587
    %v2660 = vunpack.c.l.b16 %v2588
    %v2661 = vunpack.c.l.b16 %v2589
    %v2662 = vunpack.c.l.b16 %v2590
    %v2663 = vunpack.c.l.b16 %v2591
    %v2664 = vunpack.c.l.b16 %v2592
    %v2665 = vunpack.c.l.b16 %v2593
    %v2666 = vunpack.c.l.b16 %v2594
    %v2667 = vunpack.c.l.b16 %v2595
    %v2668 = vunpack.c.l.b16 %v2596
    %v2669 = vpack.c.b16 %v2638, %v2637
    %v2670 = vpack.c.b16 %v2640, %v2639
    %v2671 = vpack.c.b16 %v2642, %v2641
    %v2672 = vpack.c.b16 %v2644, %v2643
    %v2673 = vpack.c.b16 %v2646, %v2645
    %v2674 = vpack.c.b16 %v2648, %v2647
    %v2675 = vpack.c.b16 %v2650, %v2649
    %v2676 = vpack.c.b16 %v2652, %v2651
    %v2677 = vpack.c.b16 %v2654, %v2653
    %v2678 = vpack.c.b16 %v2656, %v2655
    %v2679 = vpack.c.b16 %v2658, %v2657
    %v2680 = vpack.c.b16 %v2660, %v2659
    %v2681 = vpack.c.b16 %v2662, %v2661
    %v2682 = vpack.c.b16 %v2664, %v2663
    %v2683 = vpack.c.b16 %v2666, %v2665
    %v2684 = vpack.c.b16 %v2668, %v2667
    %2701 = vmatprep.subr.bf16.mxu0 0
    %2702 = vmatpush1.bf16.msra.mxu0 %v2676
    %2703 = vmatprep.subr.bf16.mxu0 0
    %2704 = vmatpush1.bf16.msra.mxu0 %v2675
    %2705 = vmatprep.subr.bf16.mxu0 0
    %2706 = vmatpush1.bf16.msra.mxu0 %v2674
    %2707 = vmatprep.subr.bf16.mxu0 0
    %2708 = vmatpush1.bf16.msra.mxu0 %v2673
    %2709 = vmatprep.subr.bf16.mxu0 0
    %2710 = vmatpush1.bf16.msra.mxu0 %v2672
    %2711 = vmatprep.subr.bf16.mxu0 0
    %2712 = vmatpush1.bf16.msra.mxu0 %v2671
    %2713 = vmatprep.subr.bf16.mxu0 0
    %2714 = vmatpush1.bf16.msra.mxu0 %v2670
    %2715 = vmatprep.subr.bf16.mxu0 0
    %2716 = vmatpush1.bf16.msra.mxu0 %v2669
    %2717 = vmatprep.subr.bf16.mxu0 0
    %2718 = vmatpush2.bf16.msra.mxu0 %v2684
    %2719 = vmatprep.subr.bf16.mxu0 0
    %2720 = vmatpush2.bf16.msra.mxu0 %v2683
    %2721 = vmatprep.subr.bf16.mxu0 0
    %2722 = vmatpush2.bf16.msra.mxu0 %v2682
    %2723 = vmatprep.subr.bf16.mxu0 0
    %2724 = vmatpush2.bf16.msra.mxu0 %v2681
    %2725 = vmatprep.subr.bf16.mxu0 0
    %2726 = vmatpush2.bf16.msra.mxu0 %v2680
    %2727 = vmatprep.subr.bf16.mxu0 0
    %2728 = vmatpush2.bf16.msra.mxu0 %v2679
    %2729 = vmatprep.subr.bf16.mxu0 0
    %2730 = vmatpush2.bf16.msra.mxu0 %v2678
    %2731 = vmatprep.subr.bf16.mxu0 0
    %2732 = vmatpush2.bf16.msra.mxu0 %v2677
    %2733 = vmatprep.mubr.bf16.mxu0 %v2549
    %2734 = vmatmul.mubr.bf16.gmra.mxu0 %v2548
    %v2735 = vpop.f32.mrf.mxu0
    %v2736 = vadd.f32 %v2603, %v2735
    %v2737 = vpop.f32.mrf.mxu0
    %v2738 = vpop.f32.mrf.mxu0
    %v2739 = vadd.f32 %v2603, %v2738
    %v2740 = vpop.f32.mrf.mxu0
    %2741 = vmatprep.mubr.bf16.mxu0 %v2551
    %2742 = vmatmul.mubr.bf16.gmra.mxu0 %v2550
    %v2743 = vpop.f32.mrf.mxu0
    %v2744 = vadd.f32 %v2603, %v2743
    %v2745 = vpop.f32.mrf.mxu0
    %v2746 = vpop.f32.mrf.mxu0
    %v2747 = vadd.f32 %v2603, %v2746
    %v2748 = vpop.f32.mrf.mxu0
    %2749 = vmatprep.mubr.bf16.mxu0 %v2553
    %2750 = vmatmul.mubr.bf16.gmra.mxu0 %v2552
    %v2751 = vpop.f32.mrf.mxu0
    %v2752 = vadd.f32 %v2603, %v2751
    %v2753 = vpop.f32.mrf.mxu0
    %v2754 = vpop.f32.mrf.mxu0
    %v2755 = vadd.f32 %v2603, %v2754
    %v2756 = vpop.f32.mrf.mxu0
    %2757 = vmatprep.mubr.bf16.mxu0 %v2555
    %2758 = vmatmul.mubr.bf16.gmra.mxu0 %v2554
    %v2759 = vpop.f32.mrf.mxu0
    %v2760 = vadd.f32 %v2603, %v2759
    %v2761 = vpop.f32.mrf.mxu0
    %v2762 = vpop.f32.mrf.mxu0
    %v2763 = vadd.f32 %v2603, %v2762
    %v2764 = vpop.f32.mrf.mxu0
    %2765 = vmatprep.mubr.bf16.mxu0 %v2557
    %2766 = vmatmul.mubr.bf16.gmra.mxu0 %v2556
    %v2767 = vpop.f32.mrf.mxu0
    %v2768 = vadd.f32 %v2603, %v2767
    %v2769 = vpop.f32.mrf.mxu0
    %v2770 = vpop.f32.mrf.mxu0
    %v2771 = vadd.f32 %v2603, %v2770
    %v2772 = vpop.f32.mrf.mxu0
    %2773 = vmatprep.mubr.bf16.mxu0 %v2559
    %2774 = vmatmul.mubr.bf16.gmra.mxu0 %v2558
    %v2775 = vpop.f32.mrf.mxu0
    %v2776 = vadd.f32 %v2603, %v2775
    %v2777 = vpop.f32.mrf.mxu0
    %v2778 = vpop.f32.mrf.mxu0
    %v2779 = vadd.f32 %v2603, %v2778
    %v2780 = vpop.f32.mrf.mxu0
    %2781 = vmatprep.mubr.bf16.mxu0 %v2561
    %2782 = vmatmul.mubr.bf16.gmra.mxu0 %v2560
    %v2783 = vpop.f32.mrf.mxu0
    %v2784 = vadd.f32 %v2603, %v2783
    %v2785 = vpop.f32.mrf.mxu0
    %v2786 = vpop.f32.mrf.mxu0
    %v2787 = vadd.f32 %v2603, %v2786
    %v2788 = vpop.f32.mrf.mxu0
    %2789 = vmatprep.mubr.bf16.mxu0 %v2563
    %2790 = vmatmul.mubr.bf16.gmra.mxu0 %v2562
    %v2791 = vpop.f32.mrf.mxu0
    %v2792 = vadd.f32 %v2603, %v2791
    %v2793 = vpop.f32.mrf.mxu0
    %v2794 = vpop.f32.mrf.mxu0
    %v2795 = vadd.f32 %v2603, %v2794
    %v2796 = vpop.f32.mrf.mxu0
    %2797 = vdwg.mxu0
    %v2798 = vmax.f32 %v2736, 0.0
    %v2799 = vmax.f32 %v2739, 0.0
    %v2800 = vmax.f32 %v2744, 0.0
    %v2801 = vmax.f32 %v2747, 0.0
    %v2802 = vmax.f32 %v2752, 0.0
    %v2803 = vmax.f32 %v2755, 0.0
    %v2804 = vmax.f32 %v2760, 0.0
    %v2805 = vmax.f32 %v2763, 0.0
    %v2806 = vmax.f32 %v2768, 0.0
    %v2807 = vmax.f32 %v2771, 0.0
    %v2808 = vmax.f32 %v2776, 0.0
    %v2809 = vmax.f32 %v2779, 0.0
    %v2810 = vmax.f32 %v2784, 0.0
    %v2811 = vmax.f32 %v2787, 0.0
    %v2812 = vmax.f32 %v2792, 0.0
    %v2813 = vmax.f32 %v2795, 0.0
    %v2814 = vpack.c.bf16 %v2799, %v2798
    %v2815 = vpack.c.bf16 %v2801, %v2800
    %v2816 = vpack.c.bf16 %v2803, %v2802
    %v2817 = vpack.c.bf16 %v2805, %v2804
    %v2818 = vpack.c.bf16 %v2807, %v2806
    %v2819 = vpack.c.bf16 %v2809, %v2808
    %v2820 = vpack.c.bf16 %v2811, %v2810
    %v2821 = vpack.c.bf16 %v2813, %v2812
    %s2822 = scalar_lea.vmem [#allocation7], 512
    %v2823 = vld [vmem:[%s2822] sm:$0xff]
    %v2824 = vld [vmem:[%s2822 + $0x8] sm:$0xff]
    %v2825 = vld [vmem:[%s2822 + $0x10] sm:$0xff]
    %v2826 = vld [vmem:[%s2822 + $0x18] sm:$0xff]
    %v2827 = vld [vmem:[%s2822 + $0x20] sm:$0xff]
    %v2828 = vld [vmem:[%s2822 + $0x28] sm:$0xff]
    %v2829 = vld [vmem:[%s2822 + $0x30] sm:$0xff]
    %v2830 = vld [vmem:[%s2822 + $0x38] sm:$0xff]
    %v2831 = vld [vmem:[%s2822 + $0x40] sm:$0xff]
    %v2832 = vld [vmem:[%s2822 + $0x48] sm:$0xff]
    %v2833 = vld [vmem:[%s2822 + $0x50] sm:$0xff]
    %v2834 = vld [vmem:[%s2822 + $0x58] sm:$0xff]
    %v2835 = vld [vmem:[%s2822 + $0x60] sm:$0xff]
    %v2836 = vld [vmem:[%s2822 + $0x68] sm:$0xff]
    %v2837 = vld [vmem:[%s2822 + $0x70] sm:$0xff]
    %v2838 = vld [vmem:[%s2822 + $0x78] sm:$0xff]
    %2839 = vmatprep.subr.bf16.mxu0 0
    %2840 = vmatpush1.bf16.msra.mxu0 %v2821
    %2841 = vmatprep.subr.bf16.mxu0 0
    %2842 = vmatpush1.bf16.msra.mxu0 %v2820
    %2843 = vmatprep.subr.bf16.mxu0 0
    %2844 = vmatpush1.bf16.msra.mxu0 %v2819
    %2845 = vmatprep.subr.bf16.mxu0 0
    %2846 = vmatpush1.bf16.msra.mxu0 %v2818
    %2847 = vmatprep.subr.bf16.mxu0 0
    %2848 = vmatpush1.bf16.msra.mxu0 %v2817
    %2849 = vmatprep.subr.bf16.mxu0 0
    %2850 = vmatpush1.bf16.msra.mxu0 %v2816
    %2851 = vmatprep.subr.bf16.mxu0 0
    %2852 = vmatpush1.bf16.msra.mxu0 %v2815
    %2853 = vmatprep.subr.bf16.mxu0 0
    %2854 = vmatpush1.bf16.msra.mxu0 %v2814
    %2855 = vmatprep.subr.bf16.mxu0 0
    %2856 = vmatpush2.bf16.msra.mxu0 0
    %2857 = vmatprep.subr.bf16.mxu0 0
    %2858 = vmatpush2.bf16.msra.mxu0 0
    %2859 = vmatprep.subr.bf16.mxu0 0
    %2860 = vmatpush2.bf16.msra.mxu0 0
    %2861 = vmatprep.subr.bf16.mxu0 0
    %2862 = vmatpush2.bf16.msra.mxu0 0
    %2863 = vmatprep.subr.bf16.mxu0 0
    %2864 = vmatpush2.bf16.msra.mxu0 0
    %2865 = vmatprep.subr.bf16.mxu0 0
    %2866 = vmatpush2.bf16.msra.mxu0 0
    %2867 = vmatprep.subr.bf16.mxu0 0
    %2868 = vmatpush2.bf16.msra.mxu0 0
    %2869 = vmatprep.subr.bf16.mxu0 0
    %2870 = vmatpush2.bf16.msra.mxu0 0
    %2871 = vmatprep.mubr.bf16.mxu0 0
    %2872 = vmatmul.mubr.bf16.gmra.mxu0 %v223
    %v2873 = vpop.f32.mrf.mxu0
    %v2874 = vadd.f32 %v2823, %v2873
    %v2875 = vpop.f32.mrf.mxu0
    %v2876 = vpop.f32.mrf.mxu0
    %v2877 = vadd.f32 %v2824, %v2876
    %v2878 = vpop.f32.mrf.mxu0
    %2879 = vmatprep.mubr.bf16.mxu0 0
    %2880 = vmatmul.mubr.bf16.gmra.mxu0 %v224
    %v2881 = vpop.f32.mrf.mxu0
    %v2882 = vadd.f32 %v2825, %v2881
    %v2883 = vpop.f32.mrf.mxu0
    %v2884 = vpop.f32.mrf.mxu0
    %v2885 = vadd.f32 %v2826, %v2884
    %v2886 = vpop.f32.mrf.mxu0
    %2887 = vmatprep.mubr.bf16.mxu0 0
    %2888 = vmatmul.mubr.bf16.gmra.mxu0 %v225
    %v2889 = vpop.f32.mrf.mxu0
    %v2890 = vadd.f32 %v2827, %v2889
    %v2891 = vpop.f32.mrf.mxu0
    %v2892 = vpop.f32.mrf.mxu0
    %v2893 = vadd.f32 %v2828, %v2892
    %v2894 = vpop.f32.mrf.mxu0
    %2895 = vmatprep.mubr.bf16.mxu0 0
    %2896 = vmatmul.mubr.bf16.gmra.mxu0 %v226
    %v2897 = vpop.f32.mrf.mxu0
    %v2898 = vadd.f32 %v2829, %v2897
    %v2899 = vpop.f32.mrf.mxu0
    %v2900 = vpop.f32.mrf.mxu0
    %v2901 = vadd.f32 %v2830, %v2900
    %v2902 = vpop.f32.mrf.mxu0
    %2903 = vmatprep.mubr.bf16.mxu0 0
    %2904 = vmatmul.mubr.bf16.gmra.mxu0 %v227
    %v2905 = vpop.f32.mrf.mxu0
    %v2906 = vadd.f32 %v2831, %v2905
    %v2907 = vpop.f32.mrf.mxu0
    %v2908 = vpop.f32.mrf.mxu0
    %v2909 = vadd.f32 %v2832, %v2908
    %v2910 = vpop.f32.mrf.mxu0
    %2911 = vmatprep.mubr.bf16.mxu0 0
    %2912 = vmatmul.mubr.bf16.gmra.mxu0 %v228
    %v2913 = vpop.f32.mrf.mxu0
    %v2914 = vadd.f32 %v2833, %v2913
    %v2915 = vpop.f32.mrf.mxu0
    %v2916 = vpop.f32.mrf.mxu0
    %v2917 = vadd.f32 %v2834, %v2916
    %v2918 = vpop.f32.mrf.mxu0
    %2919 = vmatprep.mubr.bf16.mxu0 0
    %2920 = vmatmul.mubr.bf16.gmra.mxu0 %v229
    %v2921 = vpop.f32.mrf.mxu0
    %v2922 = vadd.f32 %v2835, %v2921
    %v2923 = vpop.f32.mrf.mxu0
    %v2924 = vpop.f32.mrf.mxu0
    %v2925 = vadd.f32 %v2836, %v2924
    %v2926 = vpop.f32.mrf.mxu0
    %2927 = vmatprep.mubr.bf16.mxu0 0
    %2928 = vmatmul.mubr.bf16.gmra.mxu0 %v230
    %v2929 = vpop.f32.mrf.mxu0
    %v2930 = vadd.f32 %v2837, %v2929
    %v2931 = vpop.f32.mrf.mxu0
    %v2932 = vpop.f32.mrf.mxu0
    %v2933 = vadd.f32 %v2838, %v2932
    %v2934 = vpop.f32.mrf.mxu0
    %2935 = vdwg.mxu0
    %v2936 = vpack.c.bf16 %v2877, %v2874
    %v2937 = vpack.c.bf16 %v2885, %v2882
    %v2938 = vpack.c.bf16 %v2893, %v2890
    %v2939 = vpack.c.bf16 %v2901, %v2898
    %v2940 = vpack.c.bf16 %v2909, %v2906
    %v2941 = vpack.c.bf16 %v2917, %v2914
    %v2942 = vpack.c.bf16 %v2925, %v2922
    %v2943 = vpack.c.bf16 %v2933, %v2930
    %s2944 = scalar_lea.vmem [#allocation8], 512
    %v2945 = vld [vmem:[%s2944] sm:$0xff]
    %v2946 = vld [vmem:[%s2944 + $0x8] sm:$0xff]
    %v2947 = vld [vmem:[%s2944 + $0x10] sm:$0xff]
    %v2948 = vld [vmem:[%s2944 + $0x18] sm:$0xff]
    %v2949 = vld [vmem:[%s2944 + $0x20] sm:$0xff]
    %v2950 = vld [vmem:[%s2944 + $0x28] sm:$0xff]
    %v2951 = vld [vmem:[%s2944 + $0x30] sm:$0xff]
    %v2952 = vld [vmem:[%s2944 + $0x38] sm:$0xff]
    %v2953 = vld [vmem:[%s2944 + $0x40] sm:$0xff]
    %v2954 = vld [vmem:[%s2944 + $0x48] sm:$0xff]
    %v2955 = vld [vmem:[%s2944 + $0x50] sm:$0xff]
    %v2956 = vld [vmem:[%s2944 + $0x58] sm:$0xff]
    %v2957 = vld [vmem:[%s2944 + $0x60] sm:$0xff]
    %v2958 = vld [vmem:[%s2944 + $0x68] sm:$0xff]
    %v2959 = vld [vmem:[%s2944 + $0x70] sm:$0xff]
    %v2960 = vld [vmem:[%s2944 + $0x78] sm:$0xff]
    %s2961 = scalar_lea.vmem [#allocation10], 8
    %v2962 = vld [vmem:[%s2961] sm:$0x3]
    %v2964 = vlaneseq
    %v2965 = vshrl.u32 %v2964, 7
    %v2966 = vsub.s32 0, %v2965
    %v2967 = vrot.slane %v2962, %v2966
    %v2968 = vlaneseq
    %v2969 = vshrl.u32 %v2968, 7
    %v2970 = vsub.s32 1, %v2969
    %v2971 = vrot.slane %v2962, %v2970
    %v2990 = vunpack.c.l.b16 %v2945
    %v2991 = vunpack.c.h.b16 %v2945
    %v2992 = vunpack.c.l.b16 %v2946
    %v2993 = vunpack.c.h.b16 %v2946
    %v2994 = vunpack.c.l.b16 %v2947
    %v2995 = vunpack.c.h.b16 %v2947
    %v2996 = vunpack.c.l.b16 %v2948
    %v2997 = vunpack.c.h.b16 %v2948
    %v2998 = vunpack.c.l.b16 %v2949
    %v2999 = vunpack.c.h.b16 %v2949
    %v3000 = vunpack.c.l.b16 %v2950
    %v3001 = vunpack.c.h.b16 %v2950
    %v3002 = vunpack.c.l.b16 %v2951
    %v3003 = vunpack.c.h.b16 %v2951
    %v3004 = vunpack.c.l.b16 %v2952
    %v3005 = vunpack.c.h.b16 %v2952
    %v3006 = vunpack.c.l.b16 %v2953
    %v3007 = vunpack.c.h.b16 %v2953
    %v3008 = vunpack.c.l.b16 %v2954
    %v3009 = vunpack.c.h.b16 %v2954
    %v3010 = vunpack.c.l.b16 %v2955
    %v3011 = vunpack.c.h.b16 %v2955
    %v3012 = vunpack.c.l.b16 %v2956
    %v3013 = vunpack.c.h.b16 %v2956
    %v3014 = vunpack.c.l.b16 %v2957
    %v3015 = vunpack.c.h.b16 %v2957
    %v3016 = vunpack.c.l.b16 %v2958
    %v3017 = vunpack.c.h.b16 %v2958
    %v3018 = vunpack.c.l.b16 %v2959
    %v3019 = vunpack.c.h.b16 %v2959
    %v3020 = vunpack.c.l.b16 %v2960
    %v3021 = vunpack.c.h.b16 %v2960
    %v3022 = vpack.c.b16 %v2992, %v2990
    %v3023 = vpack.c.b16 %v2993, %v2991
    %v3024 = vpack.c.b16 %v2996, %v2994
    %v3025 = vpack.c.b16 %v2997, %v2995
    %v3026 = vpack.c.b16 %v3000, %v2998
    %v3027 = vpack.c.b16 %v3001, %v2999
    %v3028 = vpack.c.b16 %v3004, %v3002
    %v3029 = vpack.c.b16 %v3005, %v3003
    %v3030 = vpack.c.b16 %v3008, %v3006
    %v3031 = vpack.c.b16 %v3009, %v3007
    %v3032 = vpack.c.b16 %v3012, %v3010
    %v3033 = vpack.c.b16 %v3013, %v3011
    %v3034 = vpack.c.b16 %v3016, %v3014
    %v3035 = vpack.c.b16 %v3017, %v3015
    %v3036 = vpack.c.b16 %v3020, %v3018
    %v3037 = vpack.c.b16 %v3021, %v3019
    %3054 = vmatprep.subr.bf16.mxu0 %v3037
    %3055 = vmatpush1.bf16.msra.mxu0 %v3036
    %3056 = vmatprep.subr.bf16.mxu0 %v3035
    %3057 = vmatpush1.bf16.msra.mxu0 %v3034
    %3058 = vmatprep.subr.bf16.mxu0 %v3033
    %3059 = vmatpush1.bf16.msra.mxu0 %v3032
    %3060 = vmatprep.subr.bf16.mxu0 %v3031
    %3061 = vmatpush1.bf16.msra.mxu0 %v3030
    %3062 = vmatprep.subr.bf16.mxu0 %v3029
    %3063 = vmatpush1.bf16.msra.mxu0 %v3028
    %3064 = vmatprep.subr.bf16.mxu0 %v3027
    %3065 = vmatpush1.bf16.msra.mxu0 %v3026
    %3066 = vmatprep.subr.bf16.mxu0 %v3025
    %3067 = vmatpush1.bf16.msra.mxu0 %v3024
    %3068 = vmatprep.subr.bf16.mxu0 %v3023
    %3069 = vmatpush1.bf16.msra.mxu0 %v3022
    %3070 = vmatprep.subr.bf16.mxu0 0
    %3071 = vmatpush2.bf16.msra.mxu0 0
    %3072 = vmatprep.subr.bf16.mxu0 0
    %3073 = vmatpush2.bf16.msra.mxu0 0
    %3074 = vmatprep.subr.bf16.mxu0 0
    %3075 = vmatpush2.bf16.msra.mxu0 0
    %3076 = vmatprep.subr.bf16.mxu0 0
    %3077 = vmatpush2.bf16.msra.mxu0 0
    %3078 = vmatprep.subr.bf16.mxu0 0
    %3079 = vmatpush2.bf16.msra.mxu0 0
    %3080 = vmatprep.subr.bf16.mxu0 0
    %3081 = vmatpush2.bf16.msra.mxu0 0
    %3082 = vmatprep.subr.bf16.mxu0 0
    %3083 = vmatpush2.bf16.msra.mxu0 0
    %3084 = vmatprep.subr.bf16.mxu0 0
    %3085 = vmatpush2.bf16.msra.mxu0 0
    %3086 = vmatprep.mubr.bf16.mxu0 0
    %3087 = vmatmul.mubr.bf16.gmra.mxu0 %v2936
    %v3088 = vpop.f32.mrf.mxu0
    %v3089 = vadd.f32 %v2967, %v3088
    %v3090 = vpop.f32.mrf.mxu0
    %v3091 = vadd.f32 %v2971, %v3090
    %v3092 = vpop.f32.mrf.mxu0
    %v3093 = vadd.f32 %v2967, %v3092
    %v3094 = vpop.f32.mrf.mxu0
    %v3095 = vadd.f32 %v2971, %v3094
    %3096 = vmatprep.mubr.bf16.mxu0 0
    %3097 = vmatmul.mubr.bf16.gmra.mxu0 %v2937
    %v3098 = vpop.f32.mrf.mxu0
    %v3099 = vadd.f32 %v2967, %v3098
    %v3100 = vpop.f32.mrf.mxu0
    %v3101 = vadd.f32 %v2971, %v3100
    %v3102 = vpop.f32.mrf.mxu0
    %v3103 = vadd.f32 %v2967, %v3102
    %v3104 = vpop.f32.mrf.mxu0
    %v3105 = vadd.f32 %v2971, %v3104
    %3106 = vmatprep.mubr.bf16.mxu0 0
    %3107 = vmatmul.mubr.bf16.gmra.mxu0 %v2938
    %v3108 = vpop.f32.mrf.mxu0
    %v3109 = vadd.f32 %v2967, %v3108
    %v3110 = vpop.f32.mrf.mxu0
    %v3111 = vadd.f32 %v2971, %v3110
    %v3112 = vpop.f32.mrf.mxu0
    %v3113 = vadd.f32 %v2967, %v3112
    %v3114 = vpop.f32.mrf.mxu0
    %v3115 = vadd.f32 %v2971, %v3114
    %3116 = vmatprep.mubr.bf16.mxu0 0
    %3117 = vmatmul.mubr.bf16.gmra.mxu0 %v2939
    %v3118 = vpop.f32.mrf.mxu0
    %v3119 = vadd.f32 %v2967, %v3118
    %v3120 = vpop.f32.mrf.mxu0
    %v3121 = vadd.f32 %v2971, %v3120
    %v3122 = vpop.f32.mrf.mxu0
    %v3123 = vadd.f32 %v2967, %v3122
    %v3124 = vpop.f32.mrf.mxu0
    %v3125 = vadd.f32 %v2971, %v3124
    %3126 = vmatprep.mubr.bf16.mxu0 0
    %3127 = vmatmul.mubr.bf16.gmra.mxu0 %v2940
    %v3128 = vpop.f32.mrf.mxu0
    %v3129 = vadd.f32 %v2967, %v3128
    %v3130 = vpop.f32.mrf.mxu0
    %v3131 = vadd.f32 %v2971, %v3130
    %v3132 = vpop.f32.mrf.mxu0
    %v3133 = vadd.f32 %v2967, %v3132
    %v3134 = vpop.f32.mrf.mxu0
    %v3135 = vadd.f32 %v2971, %v3134
    %3136 = vmatprep.mubr.bf16.mxu0 0
    %3137 = vmatmul.mubr.bf16.gmra.mxu0 %v2941
    %v3138 = vpop.f32.mrf.mxu0
    %v3139 = vadd.f32 %v2967, %v3138
    %v3140 = vpop.f32.mrf.mxu0
    %v3141 = vadd.f32 %v2971, %v3140
    %v3142 = vpop.f32.mrf.mxu0
    %v3143 = vadd.f32 %v2967, %v3142
    %v3144 = vpop.f32.mrf.mxu0
    %v3145 = vadd.f32 %v2971, %v3144
    %3146 = vmatprep.mubr.bf16.mxu0 0
    %3147 = vmatmul.mubr.bf16.gmra.mxu0 %v2942
    %v3148 = vpop.f32.mrf.mxu0
    %v3149 = vadd.f32 %v2967, %v3148
    %v3150 = vpop.f32.mrf.mxu0
    %v3151 = vadd.f32 %v2971, %v3150
    %v3152 = vpop.f32.mrf.mxu0
    %v3153 = vadd.f32 %v2967, %v3152
    %v3154 = vpop.f32.mrf.mxu0
    %v3155 = vadd.f32 %v2971, %v3154
    %3156 = vmatprep.mubr.bf16.mxu0 0
    %3157 = vmatmul.mubr.bf16.gmra.mxu0 %v2943
    %v3158 = vpop.f32.mrf.mxu0
    %v3159 = vadd.f32 %v2967, %v3158
    %v3160 = vpop.f32.mrf.mxu0
    %v3161 = vadd.f32 %v2971, %v3160
    %v3162 = vpop.f32.mrf.mxu0
    %v3163 = vadd.f32 %v2967, %v3162
    %v3164 = vpop.f32.mrf.mxu0
    %v3165 = vadd.f32 %v2971, %v3164
    %3166 = vdwg.mxu0
    %v3167 = vmax.f32 %v3089, 0.0
    %v3168 = vmax.f32 %v3091, 0.0
    %v3169 = vmax.f32 %v3093, 0.0
    %v3170 = vmax.f32 %v3095, 0.0
    %v3171 = vmax.f32 %v3099, 0.0
    %v3172 = vmax.f32 %v3101, 0.0
    %v3173 = vmax.f32 %v3103, 0.0
    %v3174 = vmax.f32 %v3105, 0.0
    %v3175 = vmax.f32 %v3109, 0.0
    %v3176 = vmax.f32 %v3111, 0.0
    %v3177 = vmax.f32 %v3113, 0.0
    %v3178 = vmax.f32 %v3115, 0.0
    %v3179 = vmax.f32 %v3119, 0.0
    %v3180 = vmax.f32 %v3121, 0.0
    %v3181 = vmax.f32 %v3123, 0.0
    %v3182 = vmax.f32 %v3125, 0.0
    %v3183 = vmax.f32 %v3129, 0.0
    %v3184 = vmax.f32 %v3131, 0.0
    %v3185 = vmax.f32 %v3133, 0.0
    %v3186 = vmax.f32 %v3135, 0.0
    %v3187 = vmax.f32 %v3139, 0.0
    %v3188 = vmax.f32 %v3141, 0.0
    %v3189 = vmax.f32 %v3143, 0.0
    %v3190 = vmax.f32 %v3145, 0.0
    %v3191 = vmax.f32 %v3149, 0.0
    %v3192 = vmax.f32 %v3151, 0.0
    %v3193 = vmax.f32 %v3153, 0.0
    %v3194 = vmax.f32 %v3155, 0.0
    %v3195 = vmax.f32 %v3159, 0.0
    %v3196 = vmax.f32 %v3161, 0.0
    %v3197 = vmax.f32 %v3163, 0.0
    %v3198 = vmax.f32 %v3165, 0.0
    %v3199 = vpack.c.bf16 %v3169, %v3167
    %v3200 = vpack.c.bf16 %v3170, %v3168
    %v3201 = vpack.c.bf16 %v3173, %v3171
    %v3202 = vpack.c.bf16 %v3174, %v3172
    %v3203 = vpack.c.bf16 %v3177, %v3175
    %v3204 = vpack.c.bf16 %v3178, %v3176
    %v3205 = vpack.c.bf16 %v3181, %v3179
    %v3206 = vpack.c.bf16 %v3182, %v3180
    %v3207 = vpack.c.bf16 %v3185, %v3183
    %v3208 = vpack.c.bf16 %v3186, %v3184
    %v3209 = vpack.c.bf16 %v3189, %v3187
    %v3210 = vpack.c.bf16 %v3190, %v3188
    %v3211 = vpack.c.bf16 %v3193, %v3191
    %v3212 = vpack.c.bf16 %v3194, %v3192
    %v3213 = vpack.c.bf16 %v3197, %v3195
    %v3214 = vpack.c.bf16 %v3198, %v3196
    %s3215 = scalar_lea.vmem [#allocation11], 512
    %v3216 = vld [vmem:[%s3215] sm:$0xf]
    %v3217 = vld [vmem:[%s3215 + $0x4] sm:$0xf]
    %v3218 = vld [vmem:[%s3215 + $0x8] sm:$0xf]
    %v3219 = vld [vmem:[%s3215 + $0xc] sm:$0xf]
    %v3220 = vld [vmem:[%s3215 + $0x10] sm:$0xf]
    %v3221 = vld [vmem:[%s3215 + $0x14] sm:$0xf]
    %v3222 = vld [vmem:[%s3215 + $0x18] sm:$0xf]
    %v3223 = vld [vmem:[%s3215 + $0x1c] sm:$0xf]
    %v3224 = vld [vmem:[%s3215 + $0x20] sm:$0xf]
    %v3225 = vld [vmem:[%s3215 + $0x24] sm:$0xf]
    %v3226 = vld [vmem:[%s3215 + $0x28] sm:$0xf]
    %v3227 = vld [vmem:[%s3215 + $0x2c] sm:$0xf]
    %v3228 = vld [vmem:[%s3215 + $0x30] sm:$0xf]
    %v3229 = vld [vmem:[%s3215 + $0x34] sm:$0xf]
    %v3230 = vld [vmem:[%s3215 + $0x38] sm:$0xf]
    %v3231 = vld [vmem:[%s3215 + $0x3c] sm:$0xf]
    %v3232 = vld [vmem:[%s3215 + $0x40] sm:$0xf]
    %v3233 = vld [vmem:[%s3215 + $0x44] sm:$0xf]
    %v3234 = vld [vmem:[%s3215 + $0x48] sm:$0xf]
    %v3235 = vld [vmem:[%s3215 + $0x4c] sm:$0xf]
    %v3236 = vld [vmem:[%s3215 + $0x50] sm:$0xf]
    %v3237 = vld [vmem:[%s3215 + $0x54] sm:$0xf]
    %v3238 = vld [vmem:[%s3215 + $0x58] sm:$0xf]
    %v3239 = vld [vmem:[%s3215 + $0x5c] sm:$0xf]
    %v3240 = vld [vmem:[%s3215 + $0x60] sm:$0xf]
    %v3241 = vld [vmem:[%s3215 + $0x64] sm:$0xf]
    %v3242 = vld [vmem:[%s3215 + $0x68] sm:$0xf]
    %v3243 = vld [vmem:[%s3215 + $0x6c] sm:$0xf]
    %v3244 = vld [vmem:[%s3215 + $0x70] sm:$0xf]
    %v3245 = vld [vmem:[%s3215 + $0x74] sm:$0xf]
    %v3246 = vld [vmem:[%s3215 + $0x78] sm:$0xf]
    %v3247 = vld [vmem:[%s3215 + $0x7c] sm:$0xf]
    %s3248 = scalar_lea.vmem %s6, 4
    %v3249 = vld [vmem:[%s3248] sm:$0x1]
    %v3251 = vlaneseq
    %v3252 = vshrl.u32 %v3251, 7
    %v3253 = vsub.s32 0, %v3252
    %v3254 = vrot.slane %v3249, %v3253
    %v3288 = vunpack.c.l.b16 %v3216
    %v3289 = vunpack.c.l.b16 %v3217
    %v3290 = vunpack.c.l.b16 %v3218
    %v3291 = vunpack.c.l.b16 %v3219
    %v3292 = vunpack.c.l.b16 %v3220
    %v3293 = vunpack.c.l.b16 %v3221
    %v3294 = vunpack.c.l.b16 %v3222
    %v3295 = vunpack.c.l.b16 %v3223
    %v3296 = vunpack.c.l.b16 %v3224
    %v3297 = vunpack.c.l.b16 %v3225
    %v3298 = vunpack.c.l.b16 %v3226
    %v3299 = vunpack.c.l.b16 %v3227
    %v3300 = vunpack.c.l.b16 %v3228
    %v3301 = vunpack.c.l.b16 %v3229
    %v3302 = vunpack.c.l.b16 %v3230
    %v3303 = vunpack.c.l.b16 %v3231
    %v3304 = vunpack.c.l.b16 %v3232
    %v3305 = vunpack.c.l.b16 %v3233
    %v3306 = vunpack.c.l.b16 %v3234
    %v3307 = vunpack.c.l.b16 %v3235
    %v3308 = vunpack.c.l.b16 %v3236
    %v3309 = vunpack.c.l.b16 %v3237
    %v3310 = vunpack.c.l.b16 %v3238
    %v3311 = vunpack.c.l.b16 %v3239
    %v3312 = vunpack.c.l.b16 %v3240
    %v3313 = vunpack.c.l.b16 %v3241
    %v3314 = vunpack.c.l.b16 %v3242
    %v3315 = vunpack.c.l.b16 %v3243
    %v3316 = vunpack.c.l.b16 %v3244
    %v3317 = vunpack.c.l.b16 %v3245
    %v3318 = vunpack.c.l.b16 %v3246
    %v3319 = vunpack.c.l.b16 %v3247
    %v3320 = vpack.c.b16 %v3289, %v3288
    %v3321 = vpack.c.b16 %v3291, %v3290
    %v3322 = vpack.c.b16 %v3293, %v3292
    %v3323 = vpack.c.b16 %v3295, %v3294
    %v3324 = vpack.c.b16 %v3297, %v3296
    %v3325 = vpack.c.b16 %v3299, %v3298
    %v3326 = vpack.c.b16 %v3301, %v3300
    %v3327 = vpack.c.b16 %v3303, %v3302
    %v3328 = vpack.c.b16 %v3305, %v3304
    %v3329 = vpack.c.b16 %v3307, %v3306
    %v3330 = vpack.c.b16 %v3309, %v3308
    %v3331 = vpack.c.b16 %v3311, %v3310
    %v3332 = vpack.c.b16 %v3313, %v3312
    %v3333 = vpack.c.b16 %v3315, %v3314
    %v3334 = vpack.c.b16 %v3317, %v3316
    %v3335 = vpack.c.b16 %v3319, %v3318
    %3352 = vmatprep.subr.bf16.mxu0 0
    %3353 = vmatpush1.bf16.msra.mxu0 %v3327
    %3354 = vmatprep.subr.bf16.mxu0 0
    %3355 = vmatpush1.bf16.msra.mxu0 %v3326
    %3356 = vmatprep.subr.bf16.mxu0 0
    %3357 = vmatpush1.bf16.msra.mxu0 %v3325
    %3358 = vmatprep.subr.bf16.mxu0 0
    %3359 = vmatpush1.bf16.msra.mxu0 %v3324
    %3360 = vmatprep.subr.bf16.mxu0 0
    %3361 = vmatpush1.bf16.msra.mxu0 %v3323
    %3362 = vmatprep.subr.bf16.mxu0 0
    %3363 = vmatpush1.bf16.msra.mxu0 %v3322
    %3364 = vmatprep.subr.bf16.mxu0 0
    %3365 = vmatpush1.bf16.msra.mxu0 %v3321
    %3366 = vmatprep.subr.bf16.mxu0 0
    %3367 = vmatpush1.bf16.msra.mxu0 %v3320
    %3368 = vmatprep.subr.bf16.mxu0 0
    %3369 = vmatpush2.bf16.msra.mxu0 %v3335
    %3370 = vmatprep.subr.bf16.mxu0 0
    %3371 = vmatpush2.bf16.msra.mxu0 %v3334
    %3372 = vmatprep.subr.bf16.mxu0 0
    %3373 = vmatpush2.bf16.msra.mxu0 %v3333
    %3374 = vmatprep.subr.bf16.mxu0 0
    %3375 = vmatpush2.bf16.msra.mxu0 %v3332
    %3376 = vmatprep.subr.bf16.mxu0 0
    %3377 = vmatpush2.bf16.msra.mxu0 %v3331
    %3378 = vmatprep.subr.bf16.mxu0 0
    %3379 = vmatpush2.bf16.msra.mxu0 %v3330
    %3380 = vmatprep.subr.bf16.mxu0 0
    %3381 = vmatpush2.bf16.msra.mxu0 %v3329
    %3382 = vmatprep.subr.bf16.mxu0 0
    %3383 = vmatpush2.bf16.msra.mxu0 %v3328
    %3384 = vmatprep.mubr.bf16.mxu0 %v3200
    %3385 = vmatmul.mubr.bf16.gmra.mxu0 %v3199
    %v3386 = vpop.f32.mrf.mxu0
    %v3387 = vadd.f32 %v3254, %v3386
    %v3388 = vpop.f32.mrf.mxu0
    %v3389 = vpop.f32.mrf.mxu0
    %v3390 = vadd.f32 %v3254, %v3389
    %v3391 = vpop.f32.mrf.mxu0
    %3392 = vmatprep.mubr.bf16.mxu0 %v3202
    %3393 = vmatmul.mubr.bf16.gmra.mxu0 %v3201
    %v3394 = vpop.f32.mrf.mxu0
    %v3395 = vadd.f32 %v3254, %v3394
    %v3396 = vpop.f32.mrf.mxu0
    %v3397 = vpop.f32.mrf.mxu0
    %v3398 = vadd.f32 %v3254, %v3397
    %v3399 = vpop.f32.mrf.mxu0
    %3400 = vmatprep.mubr.bf16.mxu0 %v3204
    %3401 = vmatmul.mubr.bf16.gmra.mxu0 %v3203
    %v3402 = vpop.f32.mrf.mxu0
    %v3403 = vadd.f32 %v3254, %v3402
    %v3404 = vpop.f32.mrf.mxu0
    %v3405 = vpop.f32.mrf.mxu0
    %v3406 = vadd.f32 %v3254, %v3405
    %v3407 = vpop.f32.mrf.mxu0
    %3408 = vmatprep.mubr.bf16.mxu0 %v3206
    %3409 = vmatmul.mubr.bf16.gmra.mxu0 %v3205
    %v3410 = vpop.f32.mrf.mxu0
    %v3411 = vadd.f32 %v3254, %v3410
    %v3412 = vpop.f32.mrf.mxu0
    %v3413 = vpop.f32.mrf.mxu0
    %v3414 = vadd.f32 %v3254, %v3413
    %v3415 = vpop.f32.mrf.mxu0
    %3416 = vmatprep.mubr.bf16.mxu0 %v3208
    %3417 = vmatmul.mubr.bf16.gmra.mxu0 %v3207
    %v3418 = vpop.f32.mrf.mxu0
    %v3419 = vadd.f32 %v3254, %v3418
    %v3420 = vpop.f32.mrf.mxu0
    %v3421 = vpop.f32.mrf.mxu0
    %v3422 = vadd.f32 %v3254, %v3421
    %v3423 = vpop.f32.mrf.mxu0
    %3424 = vmatprep.mubr.bf16.mxu0 %v3210
    %3425 = vmatmul.mubr.bf16.gmra.mxu0 %v3209
    %v3426 = vpop.f32.mrf.mxu0
    %v3427 = vadd.f32 %v3254, %v3426
    %v3428 = vpop.f32.mrf.mxu0
    %v3429 = vpop.f32.mrf.mxu0
    %v3430 = vadd.f32 %v3254, %v3429
    %v3431 = vpop.f32.mrf.mxu0
    %3432 = vmatprep.mubr.bf16.mxu0 %v3212
    %3433 = vmatmul.mubr.bf16.gmra.mxu0 %v3211
    %v3434 = vpop.f32.mrf.mxu0
    %v3435 = vadd.f32 %v3254, %v3434
    %v3436 = vpop.f32.mrf.mxu0
    %v3437 = vpop.f32.mrf.mxu0
    %v3438 = vadd.f32 %v3254, %v3437
    %v3439 = vpop.f32.mrf.mxu0
    %3440 = vmatprep.mubr.bf16.mxu0 %v3214
    %3441 = vmatmul.mubr.bf16.gmra.mxu0 %v3213
    %v3442 = vpop.f32.mrf.mxu0
    %v3443 = vadd.f32 %v3254, %v3442
    %v3444 = vpop.f32.mrf.mxu0
    %v3445 = vpop.f32.mrf.mxu0
    %v3446 = vadd.f32 %v3254, %v3445
    %v3447 = vpop.f32.mrf.mxu0
    %3448 = vdwg.mxu0
    %v3449 = vpack.c.bf16 %v3390, %v3387
    %v3450 = vpack.c.bf16 %v3398, %v3395
    %v3451 = vpack.c.bf16 %v3406, %v3403
    %v3452 = vpack.c.bf16 %v3414, %v3411
    %v3453 = vpack.c.bf16 %v3422, %v3419
    %v3454 = vpack.c.bf16 %v3430, %v3427
    %v3455 = vpack.c.bf16 %v3438, %v3435
    %v3456 = vpack.c.bf16 %v3446, %v3443
    %v3457 = vld [vmem:[#allocation13] sm:$0xf]
    %v3458 = vld [vmem:[#allocation13 + $0x4] sm:$0xf]
    %v3459 = vld [vmem:[#allocation13 + $0x8] sm:$0xf]
    %v3460 = vld [vmem:[#allocation13 + $0xc] sm:$0xf]
    %v3461 = vld [vmem:[#allocation13 + $0x10] sm:$0xf]
    %v3462 = vld [vmem:[#allocation13 + $0x14] sm:$0xf]
    %v3463 = vld [vmem:[#allocation13 + $0x18] sm:$0xf]
    %v3464 = vld [vmem:[#allocation13 + $0x1c] sm:$0xf]
    %v3465 = vld [vmem:[#allocation13 + $0x20] sm:$0xf]
    %v3466 = vld [vmem:[#allocation13 + $0x24] sm:$0xf]
    %v3467 = vld [vmem:[#allocation13 + $0x28] sm:$0xf]
    %v3468 = vld [vmem:[#allocation13 + $0x2c] sm:$0xf]
    %v3469 = vld [vmem:[#allocation13 + $0x30] sm:$0xf]
    %v3470 = vld [vmem:[#allocation13 + $0x34] sm:$0xf]
    %v3471 = vld [vmem:[#allocation13 + $0x38] sm:$0xf]
    %v3472 = vld [vmem:[#allocation13 + $0x3c] sm:$0xf]
    %v3473 = vld [vmem:[%s9] sm:$0x1]
    %v3475 = vlaneseq
    %v3476 = vshrl.u32 %v3475, 7
    %v3477 = vsub.s32 0, %v3476
    %v3478 = vrot.slane %v3473, %v3477
    %v3496 = vunpack.c.l.b16 %v3457
    %v3497 = vunpack.c.l.b16 %v3458
    %v3498 = vunpack.c.l.b16 %v3459
    %v3499 = vunpack.c.l.b16 %v3460
    %v3500 = vunpack.c.l.b16 %v3461
    %v3501 = vunpack.c.l.b16 %v3462
    %v3502 = vunpack.c.l.b16 %v3463
    %v3503 = vunpack.c.l.b16 %v3464
    %v3504 = vunpack.c.l.b16 %v3465
    %v3505 = vunpack.c.l.b16 %v3466
    %v3506 = vunpack.c.l.b16 %v3467
    %v3507 = vunpack.c.l.b16 %v3468
    %v3508 = vunpack.c.l.b16 %v3469
    %v3509 = vunpack.c.l.b16 %v3470
    %v3510 = vunpack.c.l.b16 %v3471
    %v3511 = vunpack.c.l.b16 %v3472
    %v3512 = vpack.c.b16 %v3497, %v3496
    %v3513 = vpack.c.b16 %v3499, %v3498
    %v3514 = vpack.c.b16 %v3501, %v3500
    %v3515 = vpack.c.b16 %v3503, %v3502
    %v3516 = vpack.c.b16 %v3505, %v3504
    %v3517 = vpack.c.b16 %v3507, %v3506
    %v3518 = vpack.c.b16 %v3509, %v3508
    %v3519 = vpack.c.b16 %v3511, %v3510
    %3528 = vmatprep.subr.bf16.mxu0 0
    %3529 = vmatpush1.bf16.msra.mxu0 %v3519
    %3530 = vmatprep.subr.bf16.mxu0 0
    %3531 = vmatpush1.bf16.msra.mxu0 %v3518
    %3532 = vmatprep.subr.bf16.mxu0 0
    %3533 = vmatpush1.bf16.msra.mxu0 %v3517
    %3534 = vmatprep.subr.bf16.mxu0 0
    %3535 = vmatpush1.bf16.msra.mxu0 %v3516
    %3536 = vmatprep.subr.bf16.mxu0 0
    %3537 = vmatpush1.bf16.msra.mxu0 %v3515
    %3538 = vmatprep.subr.bf16.mxu0 0
    %3539 = vmatpush1.bf16.msra.mxu0 %v3514
    %3540 = vmatprep.subr.bf16.mxu0 0
    %3541 = vmatpush1.bf16.msra.mxu0 %v3513
    %3542 = vmatprep.subr.bf16.mxu0 0
    %3543 = vmatpush1.bf16.msra.mxu0 %v3512
    %3544 = vmatprep.subr.bf16.mxu0 0
    %3545 = vmatpush2.bf16.msra.mxu0 0
    %3546 = vmatprep.subr.bf16.mxu0 0
    %3547 = vmatpush2.bf16.msra.mxu0 0
    %3548 = vmatprep.subr.bf16.mxu0 0
    %3549 = vmatpush2.bf16.msra.mxu0 0
    %3550 = vmatprep.subr.bf16.mxu0 0
    %3551 = vmatpush2.bf16.msra.mxu0 0
    %3552 = vmatprep.subr.bf16.mxu0 0
    %3553 = vmatpush2.bf16.msra.mxu0 0
    %3554 = vmatprep.subr.bf16.mxu0 0
    %3555 = vmatpush2.bf16.msra.mxu0 0
    %3556 = vmatprep.subr.bf16.mxu0 0
    %3557 = vmatpush2.bf16.msra.mxu0 0
    %3558 = vmatprep.subr.bf16.mxu0 0
    %3559 = vmatpush2.bf16.msra.mxu0 0
    %3560 = vmatprep.mubr.bf16.mxu0 0
    %3561 = vmatmul.mubr.bf16.gmra.mxu0 %v3449
    %v3562 = vpop.f32.mrf.mxu0
    %v3563 = vadd.f32 %v3478, %v3562
    %v3564 = vpop.f32.mrf.mxu0
    %v3565 = vpop.f32.mrf.mxu0
    %v3566 = vadd.f32 %v3478, %v3565
    %v3567 = vpop.f32.mrf.mxu0
    %3568 = vmatprep.mubr.bf16.mxu0 0
    %3569 = vmatmul.mubr.bf16.gmra.mxu0 %v3450
    %v3570 = vpop.f32.mrf.mxu0
    %v3571 = vadd.f32 %v3478, %v3570
    %v3572 = vpop.f32.mrf.mxu0
    %v3573 = vpop.f32.mrf.mxu0
    %v3574 = vadd.f32 %v3478, %v3573
    %v3575 = vpop.f32.mrf.mxu0
    %3576 = vmatprep.mubr.bf16.mxu0 0
    %3577 = vmatmul.mubr.bf16.gmra.mxu0 %v3451
    %v3578 = vpop.f32.mrf.mxu0
    %v3579 = vadd.f32 %v3478, %v3578
    %v3580 = vpop.f32.mrf.mxu0
    %v3581 = vpop.f32.mrf.mxu0
    %v3582 = vadd.f32 %v3478, %v3581
    %v3583 = vpop.f32.mrf.mxu0
    %3584 = vmatprep.mubr.bf16.mxu0 0
    %3585 = vmatmul.mubr.bf16.gmra.mxu0 %v3452
    %v3586 = vpop.f32.mrf.mxu0
    %v3587 = vadd.f32 %v3478, %v3586
    %v3588 = vpop.f32.mrf.mxu0
    %v3589 = vpop.f32.mrf.mxu0
    %v3590 = vadd.f32 %v3478, %v3589
    %v3591 = vpop.f32.mrf.mxu0
    %3592 = vmatprep.mubr.bf16.mxu0 0
    %3593 = vmatmul.mubr.bf16.gmra.mxu0 %v3453
    %v3594 = vpop.f32.mrf.mxu0
    %v3595 = vadd.f32 %v3478, %v3594
    %v3596 = vpop.f32.mrf.mxu0
    %v3597 = vpop.f32.mrf.mxu0
    %v3598 = vadd.f32 %v3478, %v3597
    %v3599 = vpop.f32.mrf.mxu0
    %3600 = vmatprep.mubr.bf16.mxu0 0
    %3601 = vmatmul.mubr.bf16.gmra.mxu0 %v3454
    %v3602 = vpop.f32.mrf.mxu0
    %v3603 = vadd.f32 %v3478, %v3602
    %v3604 = vpop.f32.mrf.mxu0
    %v3605 = vpop.f32.mrf.mxu0
    %v3606 = vadd.f32 %v3478, %v3605
    %v3607 = vpop.f32.mrf.mxu0
    %3608 = vmatprep.mubr.bf16.mxu0 0
    %3609 = vmatmul.mubr.bf16.gmra.mxu0 %v3455
    %v3610 = vpop.f32.mrf.mxu0
    %v3611 = vadd.f32 %v3478, %v3610
    %v3612 = vpop.f32.mrf.mxu0
    %v3613 = vpop.f32.mrf.mxu0
    %v3614 = vadd.f32 %v3478, %v3613
    %v3615 = vpop.f32.mrf.mxu0
    %3616 = vmatprep.mubr.bf16.mxu0 0
    %3617 = vmatmul.mubr.bf16.gmra.mxu0 %v3456
    %v3618 = vpop.f32.mrf.mxu0
    %v3619 = vadd.f32 %v3478, %v3618
    %v3620 = vpop.f32.mrf.mxu0
    %v3621 = vpop.f32.mrf.mxu0
    %v3622 = vadd.f32 %v3478, %v3621
    %v3623 = vpop.f32.mrf.mxu0
    %3624 = vdwg.mxu0
    %3625 = vst [vmem:[#allocation15] sm:$0xff] %v3563
    %3626 = vst [vmem:[#allocation15 + $0x8] sm:$0xff] %v3566
    %3627 = vst [vmem:[#allocation15 + $0x10] sm:$0xff] %v3571
    %3628 = vst [vmem:[#allocation15 + $0x18] sm:$0xff] %v3574
    %3629 = vst [vmem:[#allocation15 + $0x20] sm:$0xff] %v3579
    %3630 = vst [vmem:[#allocation15 + $0x28] sm:$0xff] %v3582
    %3631 = vst [vmem:[#allocation15 + $0x30] sm:$0xff] %v3587
    %3632 = vst [vmem:[#allocation15 + $0x38] sm:$0xff] %v3590
    %3633 = vst [vmem:[#allocation15 + $0x40] sm:$0xff] %v3595
    %3634 = vst [vmem:[#allocation15 + $0x48] sm:$0xff] %v3598
    %3635 = vst [vmem:[#allocation15 + $0x50] sm:$0xff] %v3603
    %3636 = vst [vmem:[#allocation15 + $0x58] sm:$0xff] %v3606
    %3637 = vst [vmem:[#allocation15 + $0x60] sm:$0xff] %v3611
    %3638 = vst [vmem:[#allocation15 + $0x68] sm:$0xff] %v3614
    %3639 = vst [vmem:[#allocation15 + $0x70] sm:$0xff] %v3619
    %3640 = vst [vmem:[#allocation15 + $0x78] sm:$0xff] %v3622
    %v3641 = vld [vmem:[%s7] sm:$0xf]
    %v3642 = vpack.c.bf16 %v3566, %v3563
    %v3643 = vpack.c.bf16 %v3574, %v3571
    %v3644 = vpack.c.bf16 %v3582, %v3579
    %v3645 = vpack.c.bf16 %v3590, %v3587
    %v3646 = vpack.c.bf16 %v3598, %v3595
    %v3647 = vpack.c.bf16 %v3606, %v3603
    %v3648 = vpack.c.bf16 %v3614, %v3611
    %v3649 = vpack.c.bf16 %v3622, %v3619
    %3650 = vmatprep.subr.bf16.mxu0 0
    %3651 = vmatpush1.bf16.msra.mxu0 %v3649
    %3652 = vmatprep.subr.bf16.mxu0 0
    %3653 = vmatpush1.bf16.msra.mxu0 %v3648
    %3654 = vmatprep.subr.bf16.mxu0 0
    %3655 = vmatpush1.bf16.msra.mxu0 %v3647
    %3656 = vmatprep.subr.bf16.mxu0 0
    %3657 = vmatpush1.bf16.msra.mxu0 %v3646
    %3658 = vmatprep.subr.bf16.mxu0 0
    %3659 = vmatpush1.bf16.msra.mxu0 %v3645
    %3660 = vmatprep.subr.bf16.mxu0 0
    %3661 = vmatpush1.bf16.msra.mxu0 %v3644
    %3662 = vmatprep.subr.bf16.mxu0 0
    %3663 = vmatpush1.bf16.msra.mxu0 %v3643
    %3664 = vmatprep.subr.bf16.mxu0 0
    %3665 = vmatpush1.bf16.msra.mxu0 %v3642
    %3666 = vmatprep.subr.bf16.mxu0 0
    %3667 = vmatpush2.bf16.msra.mxu0 0
    %3668 = vmatprep.subr.bf16.mxu0 0
    %3669 = vmatpush2.bf16.msra.mxu0 0
    %3670 = vmatprep.subr.bf16.mxu0 0
    %3671 = vmatpush2.bf16.msra.mxu0 0
    %3672 = vmatprep.subr.bf16.mxu0 0
    %3673 = vmatpush2.bf16.msra.mxu0 0
    %3674 = vmatprep.subr.bf16.mxu0 0
    %3675 = vmatpush2.bf16.msra.mxu0 0
    %3676 = vmatprep.subr.bf16.mxu0 0
    %3677 = vmatpush2.bf16.msra.mxu0 0
    %3678 = vmatprep.subr.bf16.mxu0 0
    %3679 = vmatpush2.bf16.msra.mxu0 0
    %3680 = vmatprep.subr.bf16.mxu0 0
    %3681 = vmatpush2.bf16.msra.mxu0 0
    %3682 = vmatprep.mubr.bf16.mxu0 0
    %3683 = vmatmul.mubr.bf16.gmra.mxu0 %v3641
    %v3684 = vpop.f32.mrf.mxu0
    %v3685 = vadd.f32 0.0, %v3684
    %v3686 = vpop.f32.mrf.mxu0
    %v3687 = vpop.f32.mrf.mxu0
    %v3688 = vpop.f32.mrf.mxu0
    %3689 = vdwg.mxu0
    %3690 = vst [vmem:[#allocation14] sm:$0xff] %v3685
    // Predicated region
    $region70: #{tpu_custom_call.1} parent=1 // pred_check
      _
    $region71: #{tpu_custom_call.1} parent=1 // pred_check_branch
      %3692 = sbr.rel (0) target = $region73
    $region72: #{tpu_custom_call.1} parent=1 // pred_region
      %s3694 = ssub.s32 128, 128
      %3695 = vsyncadd [#allocation4], %s3694
      %s3697 = sshll.u32 [#allocation14], 4
      %s3698 = int_to_ptr.vmem [resolvable:$true] %s3697
      %3700 = dma.vmem_to_hbm [thread:$0]  %s3698, 128, %s10, [#allocation4]
    $region73: #{tpu_custom_call.1} parent=1 // pred_fallthru
      _
    // Predicated region
    $region74: #{tpu_custom_call.1} parent=1 // pred_check
      _
    $region75: #{tpu_custom_call.1} parent=1 // pred_check_branch
      %3702 = sbr.rel (0) target = $region77
    $region76: #{tpu_custom_call.1} parent=1 // pred_region
      %s3704 = ssub.s32 2048, 2048
      %3705 = vsyncadd [#allocation16], %s3704
      %s3706 = sshll.u32 [#allocation15], 4
      %s3707 = int_to_ptr.vmem [resolvable:$true] %s3706
      %3712 = dma.vmem_to_hbm [thread:$0]  %s3707, 2048, %s11, [#allocation16], 128, 128, 8
    $region77: #{tpu_custom_call.1} parent=1 // pred_fallthru
      _
    // Predicated region
    $region78: #{tpu_custom_call.1} parent=1 // pred_check
      _
    $region79: #{tpu_custom_call.1} parent=1 // pred_check_branch
      %3714 = sbr.rel (0) target = $region81
    $region80: #{tpu_custom_call.1} parent=1 // pred_region
      %3715 = dma.done [#allocation4], 128
    $region81: #{tpu_custom_call.1} parent=1 // pred_fallthru
      _
    // Predicated region
    $region82: #{tpu_custom_call.1} parent=1 // pred_check
      _
    $region83: #{tpu_custom_call.1} parent=1 // pred_check_branch
      %3717 = sbr.rel (0) target = $region85
    $region84: #{tpu_custom_call.1} parent=1 // pred_region
      %3718 = dma.done [#allocation16], 2048
    $region85: #{tpu_custom_call.1} parent=1 // pred_fallthru
      _
    %3719 = vsyncpa [#allocation3], 1
    %3720 = vsyncpa [#allocation6], 1
    %3721 = vsyncpa [#allocation9], 1
    %3722 = vsyncpa [#allocation12], 1
    %3723 = vsyncpa [#allocation4], 1
    %3724 = vsyncpa [#allocation16], 1

</llo_original>
